<compile_context>
chip_gen: v7x
topology: tpu7x:2x2x1
jax: 0.10.0
libtpu: 0.0.40
codegen_flags: <defaults>
</compile_context>

<pallas_src>
import jax
import jax.numpy as jnp
from jax.experimental import pallas as pl
from jax.experimental.pallas import tpu as pltpu

BN_EPS = 1e-5


def _fused_kernel(x_ref, s_ref, w_ref, gamma_ref, beta_ref, o_ref):
    # x_ref:     (Cin, P)   pre-gate activations, channel-major (f32)
    # s_ref:     (1, Cin)   per-channel gate logits (f32)
    # w_ref:     (Cb, Cin)  1x1 conv weight slice (bf16, stored at rest)
    # gamma_ref: (Cb, 1)    BN scale slice (f32)
    # beta_ref:  (Cb, 1)    BN shift slice (f32)
    # o_ref:     (Cb, P)    output slice (f32)

    # Sigmoid in f32 (EUP) on the tiny (1, Cin) vector, single bf16 cast, then
    # fold the gate into the bf16 weight (exact: 1x1 conv sums over Cin).
    gate = jax.nn.sigmoid(s_ref[...]).astype(jnp.bfloat16)            # (1, Cin)
    w_g = w_ref[...] * gate                                           # (Cb, Cin) bf16

    # MXU matmul: bf16 operands, f32 accumulation.
    x_bf = x_ref[...].astype(jnp.bfloat16)                            # (Cin, P)
    y = jnp.dot(w_g, x_bf, preferred_element_type=jnp.float32)        # (Cb, P) f32

    # Single-pass batch-norm statistics (biased variance, per output channel).
    inv_p = jnp.float32(1.0 / y.shape[1])
    s1 = jnp.sum(y, axis=1, keepdims=True)                            # (Cb, 1)
    s2 = jnp.sum(y * y, axis=1, keepdims=True)                        # (Cb, 1)
    mean = s1 * inv_p
    var = jnp.maximum(s2 * inv_p - mean * mean, 0.0)

    scale = gamma_ref[...] * jax.lax.rsqrt(var + BN_EPS)              # (Cb, 1)
    shift = beta_ref[...] - mean * scale                              # (Cb, 1)
    o_ref[...] = (y * scale + shift).astype(o_ref.dtype)


def fused_sigmoid_mul_conv_bn(x_nchw, s_nc11, w_bf16, gamma, beta, *, cout_blocks=None):
    """x_nchw: (1, Cin, H, W) f32; s_nc11: (1, Cin, 1, 1) f32;
    w_bf16: (Cout, Cin) bf16 conv weight (stored bf16 at rest);
    gamma/beta: (Cout,) f32."""
    N, Cin, H, W = x_nchw.shape
    assert N == 1, "channel-major fast path assumes batch size 1 (as in the module)"
    Cout = w_bf16.shape[0]
    P = H * W

    if cout_blocks is None:
        # Split Cout across TensorCores only on v7x (2 TC/chip). On v5e/v6e a
        # grid would only add per-step overhead at this problem size.
        try:
            kind = jax.devices()[0].device_kind.lower()
        except Exception:  # pragma: no cover - defensive
            kind = ""
        cout_blocks = 2 if ("v7" in kind and Cout % 2 == 0 and (Cout // 2) % 8 == 0) else 1
    assert Cout % cout_blocks == 0
    cb = Cout // cout_blocks

    # Free reshapes only (no transposes / HBM round trips).
    x_cm = x_nchw.reshape(Cin, P)          # (Cin, P) channel-major
    s_flat = s_nc11.reshape(1, Cin)        # (1, Cin)
    g_flat = gamma.reshape(Cout, 1)        # (Cout, 1)
    b_flat = beta.reshape(Cout, 1)         # (Cout, 1)

    out_cm = pl.pallas_call(
        _fused_kernel,
        out_shape=jax.ShapeDtypeStruct((Cout, P), jnp.float32),
        grid=(cout_blocks,),
        in_specs=[
            pl.BlockSpec((Cin, P), lambda i: (0, 0)),    # x: same block every step
            pl.BlockSpec((1, Cin), lambda i: (0, 0)),    # gate logits
            pl.BlockSpec((cb, Cin), lambda i: (i, 0)),   # weight slice
            pl.BlockSpec((cb, 1), lambda i: (i, 0)),     # gamma slice
            pl.BlockSpec((cb, 1), lambda i: (i, 0)),     # beta slice
        ],
        out_specs=pl.BlockSpec((cb, P), lambda i: (i, 0)),
        compiler_params=pltpu.CompilerParams(dimension_semantics=("parallel",)),
    )(x_cm, s_flat, w_bf16, g_flat, b_flat)

    # (Cout, H*W) -> (1, Cout, H, W): free reshape.
    return out_cm.reshape(1, Cout, H, W)


def _reference(x_nchw, s_nc11, w_oi11, gamma, beta):
    xs = x_nchw * jax.nn.sigmoid(s_nc11)
    y = jax.lax.conv_general_dilated(
        xs, w_oi11, window_strides=(1, 1), padding="VALID",
        dimension_numbers=("NCHW", "OIHW", "NCHW"),
        precision=jax.lax.Precision.HIGHEST)
    mean = jnp.mean(y, axis=(0, 2, 3), keepdims=True)
    var = jnp.mean((y - mean) ** 2, axis=(0, 2, 3), keepdims=True)
    return (y - mean) * jax.lax.rsqrt(var + BN_EPS) * gamma.reshape(1, -1, 1, 1) \
        + beta.reshape(1, -1, 1, 1)


if __name__ == "__main__":
    # Shapes implied by the module: x446 (1,1344,14,14), x450 (1,1344,1,1),
    # Conv2d(1344 -> 224, 1x1, bias=False), BatchNorm2d(224).
    N, Cin, H, W, Cout = 1, 1344, 14, 14, 224

    key = jax.random.PRNGKey(0)
    k1, k2, k3, k4, k5 = jax.random.split(key, 5)
    x446 = jax.random.normal(k1, (N, Cin, H, W), dtype=jnp.float32)
    x450 = jax.random.normal(k2, (1, Cin, 1, 1), dtype=jnp.float32)
    # Deterministic parameter init (synthetic; no checkpoint load).
    conv_w = jax.random.normal(k3, (Cout, Cin, 1, 1), dtype=jnp.float32) * 0.02
    bn_gamma = 1.0 + 0.1 * jax.random.normal(k4, (Cout,), dtype=jnp.float32)
    bn_beta = 0.1 * jax.random.normal(k5, (Cout,), dtype=jnp.float32)

    # Weight stored bf16 at rest (one-time parameter conversion, not per call).
    conv_w_bf16 = conv_w.reshape(Cout, Cin).astype(jnp.bfloat16)
    conv_w_bf16 = jax.block_until_ready(conv_w_bf16)

    out = fused_sigmoid_mul_conv_bn(x446, x450, conv_w_bf16, bn_gamma, bn_beta)
    out = jax.block_until_ready(out)

    ref = jax.block_until_ready(_reference(x446, x450, conv_w, bn_gamma, bn_beta))
    assert out.shape == (N, Cout, H, W), out.shape
    # Tolerance relaxed vs an all-f32 version: weight stored bf16 and MXU runs
    # with bf16 operands (f32 accumulation); BN keeps the error O(1e-3).
    assert jnp.allclose(out, ref, rtol=2e-2, atol=2e-2), "mismatch vs reference"

    print("KERNEL_OK")
</pallas_src>

<mosaic_0001>
module attributes {stable_mosaic.version = 11 : i64} {
  func.func @_fused_kernel(%arg0: i32, %arg1: memref<1344x196xf32, #tpu.memory_space<vmem>>, %arg2: memref<1x1344xf32, #tpu.memory_space<vmem>>, %arg3: memref<224x1344xbf16, #tpu.memory_space<vmem>>, %arg4: memref<224x1xf32, #tpu.memory_space<vmem>>, %arg5: memref<224x1xf32, #tpu.memory_space<vmem>>, %arg6: memref<224x196xf32, #tpu.memory_space<vmem>>) attributes {dimension_semantics = [#tpu.dimension_semantics<parallel>], iteration_bounds = array<i64: 1>, scalar_prefetch = 0 : i64, scratch_operands = 0 : i64, tpu.core_type = #tpu.core_type<tc>, window_params = [{pipeline_mode = #tpu.pipeline_mode<synchronous>, transform_indices = @transform_0, window_bounds = array<i64: 1344, 196>}, {pipeline_mode = #tpu.pipeline_mode<synchronous>, transform_indices = @transform_1, window_bounds = array<i64: 1, 1344>}, {transform_indices = @transform_2, window_bounds = array<i64: 224, 1344>}, {transform_indices = @transform_3, window_bounds = array<i64: 224, 1>}, {transform_indices = @transform_4, window_bounds = array<i64: 224, 1>}, {transform_indices = @transform_5, window_bounds = array<i64: 224, 196>}]} {
    %c0 = arith.constant 0 : index
    %c0_0 = arith.constant 0 : index
    %0 = vector.load %arg2[%c0, %c0_0] : memref<1x1344xf32, #tpu.memory_space<vmem>>, vector<1x1344xf32>
    %1 = arith.negf %0 : vector<1x1344xf32>
    %2 = math.exp %1 : vector<1x1344xf32>
    %cst = arith.constant 1.000000e+00 : f32
    %3 = vector.broadcast %cst : f32 to vector<1x1344xf32>
    %4 = arith.addf %3, %2 : vector<1x1344xf32>
    %5 = arith.divf %3, %4 : vector<1x1344xf32>
    %6 = arith.truncf %5 : vector<1x1344xf32> to vector<1x1344xbf16>
    %c0_1 = arith.constant 0 : index
    %c0_2 = arith.constant 0 : index
    %7 = vector.load %arg3[%c0_1, %c0_2] : memref<224x1344xbf16, #tpu.memory_space<vmem>>, vector<224x1344xbf16>
    %8 = vector.broadcast %6 : vector<1x1344xbf16> to vector<224x1344xbf16>
    %9 = arith.mulf %7, %8 : vector<224x1344xbf16>
    %c0_3 = arith.constant 0 : index
    %c0_4 = arith.constant 0 : index
    %10 = vector.load %arg1[%c0_3, %c0_4] : memref<1344x196xf32, #tpu.memory_space<vmem>>, vector<1344x196xf32>
    %11 = arith.truncf %10 : vector<1344x196xf32> to vector<1344x196xbf16>
    %cst_5 = arith.constant dense<0.000000e+00> : vector<224x196xf32>
    %12 = tpu.matmul %9, %11, %cst_5 {dimension_numbers = #tpu.dot_dimension_numbers<[1], [0], [0], [1], [0, 0, 1, 1], [], []>} : vector<224x1344xbf16>, vector<1344x196xbf16>, vector<224x196xf32> -> vector<224x196xf32>
    %cst_6 = arith.constant dense<0.000000e+00> : vector<224xf32>
    %13 = vector.multi_reduction <add>, %12, %cst_6 [1] : vector<224x196xf32> to vector<224xf32>
    %14 = vector.shape_cast %13 : vector<224xf32> to vector<224x1xf32>
    %15 = arith.mulf %12, %12 : vector<224x196xf32>
    %cst_7 = arith.constant dense<0.000000e+00> : vector<224xf32>
    %16 = vector.multi_reduction <add>, %15, %cst_7 [1] : vector<224x196xf32> to vector<224xf32>
    %17 = vector.shape_cast %16 : vector<224xf32> to vector<224x1xf32>
    %cst_8 = arith.constant 0.00510204071 : f32
    %18 = vector.broadcast %cst_8 : f32 to vector<224x1xf32>
    %19 = arith.mulf %14, %18 : vector<224x1xf32>
    %cst_9 = arith.constant 0.00510204071 : f32
    %20 = vector.broadcast %cst_9 : f32 to vector<224x1xf32>
    %21 = arith.mulf %17, %20 : vector<224x1xf32>
    %22 = arith.mulf %19, %19 : vector<224x1xf32>
    %23 = arith.subf %21, %22 : vector<224x1xf32>
    %cst_10 = arith.constant 0.000000e+00 : f32
    %24 = vector.broadcast %cst_10 : f32 to vector<224x1xf32>
    %25 = arith.maximumf %23, %24 : vector<224x1xf32>
    %c0_11 = arith.constant 0 : index
    %c0_12 = arith.constant 0 : index
    %26 = vector.load %arg4[%c0_11, %c0_12] : memref<224x1xf32, #tpu.memory_space<vmem>>, vector<224x1xf32>
    %cst_13 = arith.constant 9.99999974E-6 : f32
    %27 = vector.broadcast %cst_13 : f32 to vector<224x1xf32>
    %28 = arith.addf %25, %27 : vector<224x1xf32>
    %29 = math.rsqrt %28 : vector<224x1xf32>
    %30 = arith.mulf %26, %29 : vector<224x1xf32>
    %c0_14 = arith.constant 0 : index
    %c0_15 = arith.constant 0 : index
    %31 = vector.load %arg5[%c0_14, %c0_15] : memref<224x1xf32, #tpu.memory_space<vmem>>, vector<224x1xf32>
    %32 = arith.mulf %19, %30 : vector<224x1xf32>
    %33 = arith.subf %31, %32 : vector<224x1xf32>
    %34 = vector.broadcast %30 : vector<224x1xf32> to vector<224x196xf32>
    %35 = arith.mulf %12, %34 : vector<224x196xf32>
    %36 = vector.broadcast %33 : vector<224x1xf32> to vector<224x196xf32>
    %37 = arith.addf %35, %36 : vector<224x196xf32>
    %c0_16 = arith.constant 0 : index
    %c0_17 = arith.constant 0 : index
    %38 = vector.load %arg6[%c0_16, %c0_17] : memref<224x196xf32, #tpu.memory_space<vmem>>, vector<224x196xf32>
    tpu.vector_store %arg6[%c0_16, %c0_17], %37 {strides = array<i32>} : memref<224x196xf32, #tpu.memory_space<vmem>>, vector<224x196xf32>,
    return
  }
  func.func @transform_0(%arg0: i32) -> (i32, i32) {
    %c0_i32 = arith.constant 0 : i32
    %c0_i32_0 = arith.constant 0 : i32
    %c0_i32_1 = arith.constant 0 : i32
    return %c0_i32, %c0_i32_0 : i32, i32
  }
  func.func @transform_1(%arg0: i32) -> (i32, i32) {
    %c0_i32 = arith.constant 0 : i32
    %c0_i32_0 = arith.constant 0 : i32
    %c0_i32_1 = arith.constant 0 : i32
    return %c0_i32, %c0_i32_0 : i32, i32
  }
  func.func @transform_2(%arg0: i32) -> (i32, i32) {
    %c0_i32 = arith.constant 0 : i32
    %c0_i32_0 = arith.constant 0 : i32
    return %arg0, %c0_i32 : i32, i32
  }
  func.func @transform_3(%arg0: i32) -> (i32, i32) {
    %c0_i32 = arith.constant 0 : i32
    %c0_i32_0 = arith.constant 0 : i32
    return %arg0, %c0_i32 : i32, i32
  }
  func.func @transform_4(%arg0: i32) -> (i32, i32) {
    %c0_i32 = arith.constant 0 : i32
    %c0_i32_0 = arith.constant 0 : i32
    return %arg0, %c0_i32 : i32, i32
  }
  func.func @transform_5(%arg0: i32) -> (i32, i32) {
    %c0_i32 = arith.constant 0 : i32
    %c0_i32_0 = arith.constant 0 : i32
    return %arg0, %c0_i32 : i32, i32
  }
}

</mosaic_0001>

<llo_original>
// kernel: tpu_custom_call.1
$region0: #{tpu_custom_call.1}
  #allocation0 [shape = 'u32[]', space=smem, size = 0x4, offset = 0x4, fixed_abs, tag = 'smem constant byte address 0x4 - core index']
  #allocation1 [shape = 'u32[144,128]{1,0:T(1,128)}', space=vmem, size = 0x12000, scoped, tag = 'internal scratch']
  %s0 = inlined_call_operand.vmem [shape: f32[1344,196], index: 0, kind: input, shape index: {}]
  %s1 = inlined_call_operand.vmem [shape: f32[1,1344], index: 1, kind: input, shape index: {}]
  %s2 = inlined_call_operand.vmem [shape: bf16[224,1344], index: 2, kind: input, shape index: {}]
  %s3 = inlined_call_operand.vmem [shape: f32[224,1], index: 3, kind: input, shape index: {}]
  %s4 = inlined_call_operand.vmem [shape: f32[224,1], index: 4, kind: input, shape index: {}]
  %s5 = inlined_call_operand.vmem [shape: f32[224,196], index: 5, kind: output, shape index: {}]
  %s6 = sld [smem:[#allocation0]]
  $region30: #{tpu_custom_call.1} parent=0
    _
  %s8 = ssub.s32 1, %s6
  %s9 = scalar_select 0, %s8, %s6
  // Predicated region
  $region2: #{tpu_custom_call.1} parent=0 // pred_check
    _
  $region3: #{tpu_custom_call.1} parent=0 // pred_check_branch
    %11 = sbr.rel (0) target = $region5
  $region4: #{tpu_custom_call.1} parent=0 // pred_region
    _
  $region5: #{tpu_custom_call.1} parent=0 // pred_fallthru
    _
  // Predicated region
  $region6: #{tpu_custom_call.1} parent=0 // pred_check
    _
  $region7: #{tpu_custom_call.1} parent=0 // pred_check_branch
    %13 = sbr.rel (0) target = $region9
  $region8: #{tpu_custom_call.1} parent=0 // pred_region
    _
  $region9: #{tpu_custom_call.1} parent=0 // pred_fallthru
    _
  // Predicated region
  $region10: #{tpu_custom_call.1} parent=0 // pred_check
    _
  $region11: #{tpu_custom_call.1} parent=0 // pred_check_branch
    %15 = sbr.rel (0) target = $region13
  $region12: #{tpu_custom_call.1} parent=0 // pred_region
    _
  $region13: #{tpu_custom_call.1} parent=0 // pred_fallthru
    _
  // Predicated region
  $region14: #{tpu_custom_call.1} parent=0 // pred_check
    _
  $region15: #{tpu_custom_call.1} parent=0 // pred_check_branch
    %17 = sbr.rel (0) target = $region17
  $region16: #{tpu_custom_call.1} parent=0 // pred_region
    _
  $region17: #{tpu_custom_call.1} parent=0 // pred_fallthru
    _
  // Predicated region
  $region18: #{tpu_custom_call.1} parent=0 // pred_check
    _
  $region19: #{tpu_custom_call.1} parent=0 // pred_check_branch
    %19 = sbr.rel (0) target = $region21
  $region20: #{tpu_custom_call.1} parent=0 // pred_region
    _
  $region21: #{tpu_custom_call.1} parent=0 // pred_fallthru
    _
  %v21 = vld [vmem:[%s1] sm:$0xff]
  %v22 = vld [vmem:[%s1 + $0x8] sm:$0x7]
  %v23 = vxor.u32 %v21, 2147483648
  %v24 = vxor.u32 %v22, 2147483648
  %v25 = vmul.f32 %v23, 1.442695
  %v26 = vpow.pop %v25
  %v27 = vmul.f32 %v24, 1.442695
  %v28 = vpow.pop %v27
  %v29 = vadd.f32 %v26, 1.0
  %v30 = vadd.f32 %v28, 1.0
  %v31 = vrcp.pop %v29
  %v32 = vmul.f32 1.0, %v31
  %v33 = vrcp.pop %v30
  %v34 = vmul.f32 1.0, %v33
  %v37 = vlaneseq
  %v38 = vshrl.u32 %v37, 7
  %v39 = vsub.s32 0, %v38
  %v40 = vrot.slane %v32, %v39
  %v41 = vlaneseq
  %v42 = vshrl.u32 %v41, 7
  %v43 = vsub.s32 1, %v42
  %v44 = vrot.slane %v32, %v43
  %v45 = vlaneseq
  %v46 = vshrl.u32 %v45, 7
  %v47 = vsub.s32 2, %v46
  %v48 = vrot.slane %v32, %v47
  %v49 = vlaneseq
  %v50 = vshrl.u32 %v49, 7
  %v51 = vsub.s32 3, %v50
  %v52 = vrot.slane %v32, %v51
  %v53 = vlaneseq
  %v54 = vshrl.u32 %v53, 7
  %v55 = vsub.s32 4, %v54
  %v56 = vrot.slane %v32, %v55
  %v57 = vlaneseq
  %v58 = vshrl.u32 %v57, 7
  %v59 = vsub.s32 5, %v58
  %v60 = vrot.slane %v32, %v59
  %v61 = vlaneseq
  %v62 = vshrl.u32 %v61, 7
  %v63 = vsub.s32 6, %v62
  %v64 = vrot.slane %v32, %v63
  %v65 = vlaneseq
  %v66 = vshrl.u32 %v65, 7
  %v67 = vsub.s32 7, %v66
  %v68 = vrot.slane %v32, %v67
  %v69 = vlaneseq
  %v70 = vshrl.u32 %v69, 7
  %v71 = vsub.s32 0, %v70
  %v72 = vrot.slane %v34, %v71
  %v73 = vlaneseq
  %v74 = vshrl.u32 %v73, 7
  %v75 = vsub.s32 1, %v74
  %v76 = vrot.slane %v34, %v75
  %v77 = vlaneseq
  %v78 = vshrl.u32 %v77, 7
  %v79 = vsub.s32 2, %v78
  %v80 = vrot.slane %v34, %v79
  %v92 = vpack.c.bf16 %v40, %v40
  %v93 = vpack.c.bf16 %v44, %v44
  %v94 = vpack.c.bf16 %v48, %v48
  %v95 = vpack.c.bf16 %v52, %v52
  %v96 = vpack.c.bf16 %v56, %v56
  %v97 = vpack.c.bf16 %v60, %v60
  %v98 = vpack.c.bf16 %v64, %v64
  %v99 = vpack.c.bf16 %v68, %v68
  %v100 = vpack.c.bf16 %v72, %v72
  %v101 = vpack.c.bf16 %v76, %v76
  %v102 = vpack.c.bf16 %v80, %v80
  %v103 = vld [vmem:[%s2] sm:$0xff]
  %v104 = vld [vmem:[%s2 + $0x8] sm:$0xff]
  %v105 = vld [vmem:[%s2 + $0x10] sm:$0xff]
  %v106 = vld [vmem:[%s2 + $0x18] sm:$0xff]
  %v107 = vld [vmem:[%s2 + $0x20] sm:$0xff]
  %v108 = vld [vmem:[%s2 + $0x28] sm:$0xf]
  %v109 = vld [vmem:[%s2 + $0x2c] sm:$0xff]
  %v110 = vld [vmem:[%s2 + $0x34] sm:$0xff]
  %v111 = vld [vmem:[%s2 + $0x3c] sm:$0xff]
  %v112 = vld [vmem:[%s2 + $0x44] sm:$0xff]
  %v113 = vld [vmem:[%s2 + $0x4c] sm:$0xff]
  %v114 = vld [vmem:[%s2 + $0x54] sm:$0xf]
  %v115 = vld [vmem:[%s2 + $0x58] sm:$0xff]
  %v116 = vld [vmem:[%s2 + $0x60] sm:$0xff]
  %v117 = vld [vmem:[%s2 + $0x68] sm:$0xff]
  %v118 = vld [vmem:[%s2 + $0x70] sm:$0xff]
  %v119 = vld [vmem:[%s2 + $0x78] sm:$0xff]
  %v120 = vld [vmem:[%s2 + $0x80] sm:$0xf]
  %v121 = vld [vmem:[%s2 + $0x84] sm:$0xff]
  %v122 = vld [vmem:[%s2 + $0x8c] sm:$0xff]
  %v123 = vld [vmem:[%s2 + $0x94] sm:$0xff]
  %v124 = vld [vmem:[%s2 + $0x9c] sm:$0xff]
  %v125 = vld [vmem:[%s2 + $0xa4] sm:$0xff]
  %v126 = vld [vmem:[%s2 + $0xac] sm:$0xf]
  %v127 = vld [vmem:[%s2 + $0xb0] sm:$0xff]
  %v128 = vld [vmem:[%s2 + $0xb8] sm:$0xff]
  %v129 = vld [vmem:[%s2 + $0xc0] sm:$0xff]
  %v130 = vld [vmem:[%s2 + $0xc8] sm:$0xff]
  %v131 = vld [vmem:[%s2 + $0xd0] sm:$0xff]
  %v132 = vld [vmem:[%s2 + $0xd8] sm:$0xf]
  %v133 = vld [vmem:[%s2 + $0xdc] sm:$0xff]
  %v134 = vld [vmem:[%s2 + $0xe4] sm:$0xff]
  %v135 = vld [vmem:[%s2 + $0xec] sm:$0xff]
  %v136 = vld [vmem:[%s2 + $0xf4] sm:$0xff]
  %v137 = vld [vmem:[%s2 + $0xfc] sm:$0xff]
  %v138 = vld [vmem:[%s2 + $0x104] sm:$0xf]
  %v139 = vld [vmem:[%s2 + $0x108] sm:$0xff]
  %v140 = vld [vmem:[%s2 + $0x110] sm:$0xff]
  %v141 = vld [vmem:[%s2 + $0x118] sm:$0xff]
  %v142 = vld [vmem:[%s2 + $0x120] sm:$0xff]
  %v143 = vld [vmem:[%s2 + $0x128] sm:$0xff]
  %v144 = vld [vmem:[%s2 + $0x130] sm:$0xf]
  %v145 = vld [vmem:[%s2 + $0x134] sm:$0xff]
  %v146 = vld [vmem:[%s2 + $0x13c] sm:$0xff]
  %v147 = vld [vmem:[%s2 + $0x144] sm:$0xff]
  %v148 = vld [vmem:[%s2 + $0x14c] sm:$0xff]
  %v149 = vld [vmem:[%s2 + $0x154] sm:$0xff]
  %v150 = vld [vmem:[%s2 + $0x15c] sm:$0xf]
  %v151 = vld [vmem:[%s2 + $0x160] sm:$0xff]
  %v152 = vld [vmem:[%s2 + $0x168] sm:$0xff]
  %v153 = vld [vmem:[%s2 + $0x170] sm:$0xff]
  %v154 = vld [vmem:[%s2 + $0x178] sm:$0xff]
  %v155 = vld [vmem:[%s2 + $0x180] sm:$0xff]
  %v156 = vld [vmem:[%s2 + $0x188] sm:$0xf]
  %v157 = vld [vmem:[%s2 + $0x18c] sm:$0xff]
  %v158 = vld [vmem:[%s2 + $0x194] sm:$0xff]
  %v159 = vld [vmem:[%s2 + $0x19c] sm:$0xff]
  %v160 = vld [vmem:[%s2 + $0x1a4] sm:$0xff]
  %v161 = vld [vmem:[%s2 + $0x1ac] sm:$0xff]
  %v162 = vld [vmem:[%s2 + $0x1b4] sm:$0xf]
  %v163 = vld [vmem:[%s2 + $0x1b8] sm:$0xff]
  %v164 = vld [vmem:[%s2 + $0x1c0] sm:$0xff]
  %v165 = vld [vmem:[%s2 + $0x1c8] sm:$0xff]
  %v166 = vld [vmem:[%s2 + $0x1d0] sm:$0xff]
  %v167 = vld [vmem:[%s2 + $0x1d8] sm:$0xff]
  %v168 = vld [vmem:[%s2 + $0x1e0] sm:$0xf]
  %v169 = vld [vmem:[%s2 + $0x1e4] sm:$0xff]
  %v170 = vld [vmem:[%s2 + $0x1ec] sm:$0xff]
  %v171 = vld [vmem:[%s2 + $0x1f4] sm:$0xff]
  %v172 = vld [vmem:[%s2 + $0x1fc] sm:$0xff]
  %v173 = vld [vmem:[%s2 + $0x204] sm:$0xff]
  %v174 = vld [vmem:[%s2 + $0x20c] sm:$0xf]
  %v175 = vld [vmem:[%s2 + $0x210] sm:$0xff]
  %v176 = vld [vmem:[%s2 + $0x218] sm:$0xff]
  %v177 = vld [vmem:[%s2 + $0x220] sm:$0xff]
  %v178 = vld [vmem:[%s2 + $0x228] sm:$0xff]
  %v179 = vld [vmem:[%s2 + $0x230] sm:$0xff]
  %v180 = vld [vmem:[%s2 + $0x238] sm:$0xf]
  %v181 = vld [vmem:[%s2 + $0x23c] sm:$0xff]
  %v182 = vld [vmem:[%s2 + $0x244] sm:$0xff]
  %v183 = vld [vmem:[%s2 + $0x24c] sm:$0xff]
  %v184 = vld [vmem:[%s2 + $0x254] sm:$0xff]
  %v185 = vld [vmem:[%s2 + $0x25c] sm:$0xff]
  %v186 = vld [vmem:[%s2 + $0x264] sm:$0xf]
  %v187 = vld [vmem:[%s2 + $0x268] sm:$0xff]
  %v188 = vld [vmem:[%s2 + $0x270] sm:$0xff]
  %v189 = vld [vmem:[%s2 + $0x278] sm:$0xff]
  %v190 = vld [vmem:[%s2 + $0x280] sm:$0xff]
  %v191 = vld [vmem:[%s2 + $0x288] sm:$0xff]
  %v192 = vld [vmem:[%s2 + $0x290] sm:$0xf]
  %v193 = vld [vmem:[%s2 + $0x294] sm:$0xff]
  %v194 = vld [vmem:[%s2 + $0x29c] sm:$0xff]
  %v195 = vld [vmem:[%s2 + $0x2a4] sm:$0xff]
  %v196 = vld [vmem:[%s2 + $0x2ac] sm:$0xff]
  %v197 = vld [vmem:[%s2 + $0x2b4] sm:$0xff]
  %v198 = vld [vmem:[%s2 + $0x2bc] sm:$0xf]
  %v199 = vld [vmem:[%s2 + $0x2c0] sm:$0xff]
  %v200 = vld [vmem:[%s2 + $0x2c8] sm:$0xff]
  %v201 = vld [vmem:[%s2 + $0x2d0] sm:$0xff]
  %v202 = vld [vmem:[%s2 + $0x2d8] sm:$0xff]
  %v203 = vld [vmem:[%s2 + $0x2e0] sm:$0xff]
  %v204 = vld [vmem:[%s2 + $0x2e8] sm:$0xf]
  %v205 = vld [vmem:[%s2 + $0x2ec] sm:$0xff]
  %v206 = vld [vmem:[%s2 + $0x2f4] sm:$0xff]
  %v207 = vld [vmem:[%s2 + $0x2fc] sm:$0xff]
  %v208 = vld [vmem:[%s2 + $0x304] sm:$0xff]
  %v209 = vld [vmem:[%s2 + $0x30c] sm:$0xff]
  %v210 = vld [vmem:[%s2 + $0x314] sm:$0xf]
  %v211 = vld [vmem:[%s2 + $0x318] sm:$0xff]
  %v212 = vld [vmem:[%s2 + $0x320] sm:$0xff]
  %v213 = vld [vmem:[%s2 + $0x328] sm:$0xff]
  %v214 = vld [vmem:[%s2 + $0x330] sm:$0xff]
  %v215 = vld [vmem:[%s2 + $0x338] sm:$0xff]
  %v216 = vld [vmem:[%s2 + $0x340] sm:$0xf]
  %v217 = vld [vmem:[%s2 + $0x344] sm:$0xff]
  %v218 = vld [vmem:[%s2 + $0x34c] sm:$0xff]
  %v219 = vld [vmem:[%s2 + $0x354] sm:$0xff]
  %v220 = vld [vmem:[%s2 + $0x35c] sm:$0xff]
  %v221 = vld [vmem:[%s2 + $0x364] sm:$0xff]
  %v222 = vld [vmem:[%s2 + $0x36c] sm:$0xf]
  %v223 = vld [vmem:[%s2 + $0x370] sm:$0xff]
  %v224 = vld [vmem:[%s2 + $0x378] sm:$0xff]
  %v225 = vld [vmem:[%s2 + $0x380] sm:$0xff]
  %v226 = vld [vmem:[%s2 + $0x388] sm:$0xff]
  %v227 = vld [vmem:[%s2 + $0x390] sm:$0xff]
  %v228 = vld [vmem:[%s2 + $0x398] sm:$0xf]
  %v229 = vld [vmem:[%s2 + $0x39c] sm:$0xff]
  %v230 = vld [vmem:[%s2 + $0x3a4] sm:$0xff]
  %v231 = vld [vmem:[%s2 + $0x3ac] sm:$0xff]
  %v232 = vld [vmem:[%s2 + $0x3b4] sm:$0xff]
  %v233 = vld [vmem:[%s2 + $0x3bc] sm:$0xff]
  %v234 = vld [vmem:[%s2 + $0x3c4] sm:$0xf]
  %v235 = vld [vmem:[%s2 + $0x3c8] sm:$0xff]
  %v236 = vld [vmem:[%s2 + $0x3d0] sm:$0xff]
  %v237 = vld [vmem:[%s2 + $0x3d8] sm:$0xff]
  %v238 = vld [vmem:[%s2 + $0x3e0] sm:$0xff]
  %v239 = vld [vmem:[%s2 + $0x3e8] sm:$0xff]
  %v240 = vld [vmem:[%s2 + $0x3f0] sm:$0xf]
  %v241 = vld [vmem:[%s2 + $0x3f4] sm:$0xff]
  %v242 = vld [vmem:[%s2 + $0x3fc] sm:$0xff]
  %v243 = vld [vmem:[%s2 + $0x404] sm:$0xff]
  %v244 = vld [vmem:[%s2 + $0x40c] sm:$0xff]
  %v245 = vld [vmem:[%s2 + $0x414] sm:$0xff]
  %v246 = vld [vmem:[%s2 + $0x41c] sm:$0xf]
  %v247 = vld [vmem:[%s2 + $0x420] sm:$0xff]
  %v248 = vld [vmem:[%s2 + $0x428] sm:$0xff]
  %v249 = vld [vmem:[%s2 + $0x430] sm:$0xff]
  %v250 = vld [vmem:[%s2 + $0x438] sm:$0xff]
  %v251 = vld [vmem:[%s2 + $0x440] sm:$0xff]
  %v252 = vld [vmem:[%s2 + $0x448] sm:$0xf]
  %v253 = vld [vmem:[%s2 + $0x44c] sm:$0xff]
  %v254 = vld [vmem:[%s2 + $0x454] sm:$0xff]
  %v255 = vld [vmem:[%s2 + $0x45c] sm:$0xff]
  %v256 = vld [vmem:[%s2 + $0x464] sm:$0xff]
  %v257 = vld [vmem:[%s2 + $0x46c] sm:$0xff]
  %v258 = vld [vmem:[%s2 + $0x474] sm:$0xf]
  %v259 = vld [vmem:[%s2 + $0x478] sm:$0xff]
  %v260 = vld [vmem:[%s2 + $0x480] sm:$0xff]
  %v261 = vld [vmem:[%s2 + $0x488] sm:$0xff]
  %v262 = vld [vmem:[%s2 + $0x490] sm:$0xff]
  %v263 = vld [vmem:[%s2 + $0x498] sm:$0xff]
  %v264 = vld [vmem:[%s2 + $0x4a0] sm:$0xf]
  %v265 = vld [vmem:[%s2 + $0x4a4] sm:$0xff]
  %v266 = vld [vmem:[%s2 + $0x4ac] sm:$0xff]
  %v267 = vld [vmem:[%s2 + $0x4b4] sm:$0xff]
  %v268 = vld [vmem:[%s2 + $0x4bc] sm:$0xff]
  %v269 = vld [vmem:[%s2 + $0x4c4] sm:$0xff]
  %v270 = vld [vmem:[%s2 + $0x4cc] sm:$0xf]
  %v272 = vpack.i.b16 %v92, %v92
  %v274 = vlaneseq
  %v275 = vshrl.u32 %v274, 7
  %v276 = vsub.s32 0, %v275
  %v277 = vrot.slane %v272, %v276
  %v279 = vpack.i.b16 %v93, %v93
  %v281 = vlaneseq
  %v282 = vshrl.u32 %v281, 7
  %v283 = vsub.s32 0, %v282
  %v284 = vrot.slane %v279, %v283
  %v286 = vpack.i.b16 %v94, %v94
  %v288 = vlaneseq
  %v289 = vshrl.u32 %v288, 7
  %v290 = vsub.s32 0, %v289
  %v291 = vrot.slane %v286, %v290
  %v293 = vpack.i.b16 %v95, %v95
  %v295 = vlaneseq
  %v296 = vshrl.u32 %v295, 7
  %v297 = vsub.s32 0, %v296
  %v298 = vrot.slane %v293, %v297
  %v300 = vpack.i.b16 %v96, %v96
  %v302 = vlaneseq
  %v303 = vshrl.u32 %v302, 7
  %v304 = vsub.s32 0, %v303
  %v305 = vrot.slane %v300, %v304
  %v307 = vpack.i.b16 %v97, %v97
  %v309 = vlaneseq
  %v310 = vshrl.u32 %v309, 7
  %v311 = vsub.s32 0, %v310
  %v312 = vrot.slane %v307, %v311
  %v314 = vpack.i.b16 %v98, %v98
  %v316 = vlaneseq
  %v317 = vshrl.u32 %v316, 7
  %v318 = vsub.s32 0, %v317
  %v319 = vrot.slane %v314, %v318
  %v321 = vpack.i.b16 %v99, %v99
  %v323 = vlaneseq
  %v324 = vshrl.u32 %v323, 7
  %v325 = vsub.s32 0, %v324
  %v326 = vrot.slane %v321, %v325
  %v328 = vpack.i.b16 %v100, %v100
  %v330 = vlaneseq
  %v331 = vshrl.u32 %v330, 7
  %v332 = vsub.s32 0, %v331
  %v333 = vrot.slane %v328, %v332
  %v335 = vpack.i.b16 %v101, %v101
  %v337 = vlaneseq
  %v338 = vshrl.u32 %v337, 7
  %v339 = vsub.s32 0, %v338
  %v340 = vrot.slane %v335, %v339
  %v342 = vpack.i.b16 %v102, %v102
  %v344 = vlaneseq
  %v345 = vshrl.u32 %v344, 7
  %v346 = vsub.s32 0, %v345
  %v347 = vrot.slane %v342, %v346
  %v359 = vunpack.c.l.b16 %v277
  %v360 = vunpack.c.l.b16 %v284
  %v361 = vunpack.c.l.b16 %v291
  %v362 = vunpack.c.l.b16 %v298
  %v363 = vunpack.c.l.b16 %v305
  %v364 = vunpack.c.l.b16 %v312
  %v365 = vunpack.c.l.b16 %v319
  %v366 = vunpack.c.l.b16 %v326
  %v367 = vunpack.c.l.b16 %v333
  %v368 = vunpack.c.l.b16 %v340
  %v369 = vunpack.c.l.b16 %v347
  %v370 = vpack.c.b16 %v360, %v359
  %v371 = vpack.c.b16 %v362, %v361
  %v372 = vpack.c.b16 %v364, %v363
  %v373 = vpack.c.b16 %v366, %v365
  %v374 = vpack.c.b16 %v368, %v367
  %v375 = vpack.c.b16 %v369, %v369
  %v382 = vmul.bf16 %v103, %v370
  %v383 = vmul.bf16 %v104, %v371
  %v384 = vmul.bf16 %v105, %v372
  %v385 = vmul.bf16 %v106, %v373
  %v386 = vmul.bf16 %v107, %v374
  %v387 = vmul.bf16 %v108, %v375
  %v388 = vmul.bf16 %v109, %v370
  %v389 = vmul.bf16 %v110, %v371
  %v390 = vmul.bf16 %v111, %v372
  %v391 = vmul.bf16 %v112, %v373
  %v392 = vmul.bf16 %v113, %v374
  %v393 = vmul.bf16 %v114, %v375
  %v394 = vmul.bf16 %v115, %v370
  %v395 = vmul.bf16 %v116, %v371
  %v396 = vmul.bf16 %v117, %v372
  %v397 = vmul.bf16 %v118, %v373
  %v398 = vmul.bf16 %v119, %v374
  %v399 = vmul.bf16 %v120, %v375
  %v400 = vmul.bf16 %v121, %v370
  %v401 = vmul.bf16 %v122, %v371
  %v402 = vmul.bf16 %v123, %v372
  %v403 = vmul.bf16 %v124, %v373
  %v404 = vmul.bf16 %v125, %v374
  %v405 = vmul.bf16 %v126, %v375
  %v406 = vmul.bf16 %v127, %v370
  %v407 = vmul.bf16 %v128, %v371
  %v408 = vmul.bf16 %v129, %v372
  %v409 = vmul.bf16 %v130, %v373
  %v410 = vmul.bf16 %v131, %v374
  %v411 = vmul.bf16 %v132, %v375
  %v412 = vmul.bf16 %v133, %v370
  %v413 = vmul.bf16 %v134, %v371
  %v414 = vmul.bf16 %v135, %v372
  %v415 = vmul.bf16 %v136, %v373
  %v416 = vmul.bf16 %v137, %v374
  %v417 = vmul.bf16 %v138, %v375
  %v418 = vmul.bf16 %v139, %v370
  %v419 = vmul.bf16 %v140, %v371
  %v420 = vmul.bf16 %v141, %v372
  %v421 = vmul.bf16 %v142, %v373
  %v422 = vmul.bf16 %v143, %v374
  %v423 = vmul.bf16 %v144, %v375
  %v424 = vmul.bf16 %v145, %v370
  %v425 = vmul.bf16 %v146, %v371
  %v426 = vmul.bf16 %v147, %v372
  %v427 = vmul.bf16 %v148, %v373
  %v428 = vmul.bf16 %v149, %v374
  %v429 = vmul.bf16 %v150, %v375
  %v430 = vmul.bf16 %v151, %v370
  %v431 = vmul.bf16 %v152, %v371
  %v432 = vmul.bf16 %v153, %v372
  %v433 = vmul.bf16 %v154, %v373
  %v434 = vmul.bf16 %v155, %v374
  %v435 = vmul.bf16 %v156, %v375
  %v436 = vmul.bf16 %v157, %v370
  %v437 = vmul.bf16 %v158, %v371
  %v438 = vmul.bf16 %v159, %v372
  %v439 = vmul.bf16 %v160, %v373
  %v440 = vmul.bf16 %v161, %v374
  %v441 = vmul.bf16 %v162, %v375
  %v442 = vmul.bf16 %v163, %v370
  %v443 = vmul.bf16 %v164, %v371
  %v444 = vmul.bf16 %v165, %v372
  %v445 = vmul.bf16 %v166, %v373
  %v446 = vmul.bf16 %v167, %v374
  %v447 = vmul.bf16 %v168, %v375
  %v448 = vmul.bf16 %v169, %v370
  %v449 = vmul.bf16 %v170, %v371
  %v450 = vmul.bf16 %v171, %v372
  %v451 = vmul.bf16 %v172, %v373
  %v452 = vmul.bf16 %v173, %v374
  %v453 = vmul.bf16 %v174, %v375
  %v454 = vmul.bf16 %v175, %v370
  %v455 = vmul.bf16 %v176, %v371
  %v456 = vmul.bf16 %v177, %v372
  %v457 = vmul.bf16 %v178, %v373
  %v458 = vmul.bf16 %v179, %v374
  %v459 = vmul.bf16 %v180, %v375
  %v460 = vmul.bf16 %v181, %v370
  %v461 = vmul.bf16 %v182, %v371
  %v462 = vmul.bf16 %v183, %v372
  %v463 = vmul.bf16 %v184, %v373
  %v464 = vmul.bf16 %v185, %v374
  %v465 = vmul.bf16 %v186, %v375
  %v466 = vmul.bf16 %v187, %v370
  %v467 = vmul.bf16 %v188, %v371
  %v468 = vmul.bf16 %v189, %v372
  %v469 = vmul.bf16 %v190, %v373
  %v470 = vmul.bf16 %v191, %v374
  %v471 = vmul.bf16 %v192, %v375
  %v472 = vmul.bf16 %v193, %v370
  %v473 = vmul.bf16 %v194, %v371
  %v474 = vmul.bf16 %v195, %v372
  %v475 = vmul.bf16 %v196, %v373
  %v476 = vmul.bf16 %v197, %v374
  %v477 = vmul.bf16 %v198, %v375
  %v478 = vmul.bf16 %v199, %v370
  %v479 = vmul.bf16 %v200, %v371
  %v480 = vmul.bf16 %v201, %v372
  %v481 = vmul.bf16 %v202, %v373
  %v482 = vmul.bf16 %v203, %v374
  %v483 = vmul.bf16 %v204, %v375
  %v484 = vmul.bf16 %v205, %v370
  %v485 = vmul.bf16 %v206, %v371
  %v486 = vmul.bf16 %v207, %v372
  %v487 = vmul.bf16 %v208, %v373
  %v488 = vmul.bf16 %v209, %v374
  %v489 = vmul.bf16 %v210, %v375
  %v490 = vmul.bf16 %v211, %v370
  %v491 = vmul.bf16 %v212, %v371
  %v492 = vmul.bf16 %v213, %v372
  %v493 = vmul.bf16 %v214, %v373
  %v494 = vmul.bf16 %v215, %v374
  %v495 = vmul.bf16 %v216, %v375
  %v496 = vmul.bf16 %v217, %v370
  %v497 = vmul.bf16 %v218, %v371
  %v498 = vmul.bf16 %v219, %v372
  %v499 = vmul.bf16 %v220, %v373
  %v500 = vmul.bf16 %v221, %v374
  %v501 = vmul.bf16 %v222, %v375
  %v502 = vmul.bf16 %v223, %v370
  %v503 = vmul.bf16 %v224, %v371
  %v504 = vmul.bf16 %v225, %v372
  %v505 = vmul.bf16 %v226, %v373
  %v506 = vmul.bf16 %v227, %v374
  %v507 = vmul.bf16 %v228, %v375
  %v508 = vmul.bf16 %v229, %v370
  %v509 = vmul.bf16 %v230, %v371
  %v510 = vmul.bf16 %v231, %v372
  %v511 = vmul.bf16 %v232, %v373
  %v512 = vmul.bf16 %v233, %v374
  %v513 = vmul.bf16 %v234, %v375
  %v514 = vmul.bf16 %v235, %v370
  %v515 = vmul.bf16 %v236, %v371
  %v516 = vmul.bf16 %v237, %v372
  %v517 = vmul.bf16 %v238, %v373
  %v518 = vmul.bf16 %v239, %v374
  %v519 = vmul.bf16 %v240, %v375
  %v520 = vmul.bf16 %v241, %v370
  %v521 = vmul.bf16 %v242, %v371
  %v522 = vmul.bf16 %v243, %v372
  %v523 = vmul.bf16 %v244, %v373
  %v524 = vmul.bf16 %v245, %v374
  %v525 = vmul.bf16 %v246, %v375
  %v526 = vmul.bf16 %v247, %v370
  %v527 = vmul.bf16 %v248, %v371
  %v528 = vmul.bf16 %v249, %v372
  %v529 = vmul.bf16 %v250, %v373
  %v530 = vmul.bf16 %v251, %v374
  %v531 = vmul.bf16 %v252, %v375
  %v532 = vmul.bf16 %v253, %v370
  %v533 = vmul.bf16 %v254, %v371
  %v534 = vmul.bf16 %v255, %v372
  %v535 = vmul.bf16 %v256, %v373
  %v536 = vmul.bf16 %v257, %v374
  %v537 = vmul.bf16 %v258, %v375
  %v538 = vmul.bf16 %v259, %v370
  %v539 = vmul.bf16 %v260, %v371
  %v540 = vmul.bf16 %v261, %v372
  %v541 = vmul.bf16 %v262, %v373
  %v542 = vmul.bf16 %v263, %v374
  %v543 = vmul.bf16 %v264, %v375
  %v544 = vmul.bf16 %v265, %v370
  %v545 = vmul.bf16 %v266, %v371
  %v546 = vmul.bf16 %v267, %v372
  %v547 = vmul.bf16 %v268, %v373
  %v548 = vmul.bf16 %v269, %v374
  %v549 = vmul.bf16 %v270, %v375
  %v550 = vld [vmem:[%s0] sm:$0xff]
  %v551 = vld [vmem:[%s0 + $0x8] sm:$0xff]
  %v552 = vld [vmem:[%s0 + $0x10] sm:$0xff]
  %v553 = vld [vmem:[%s0 + $0x18] sm:$0xff]
  %v554 = vld [vmem:[%s0 + $0x20] sm:$0xff]
  %v555 = vld [vmem:[%s0 + $0x28] sm:$0xff]
  %v556 = vld [vmem:[%s0 + $0x30] sm:$0xff]
  %v557 = vld [vmem:[%s0 + $0x38] sm:$0xff]
  %v558 = vld [vmem:[%s0 + $0x40] sm:$0xff]
  %v559 = vld [vmem:[%s0 + $0x48] sm:$0xff]
  %v560 = vld [vmem:[%s0 + $0x50] sm:$0xff]
  %v561 = vld [vmem:[%s0 + $0x58] sm:$0xff]
  %v562 = vld [vmem:[%s0 + $0x60] sm:$0xff]
  %v563 = vld [vmem:[%s0 + $0x68] sm:$0xff]
  %v564 = vld [vmem:[%s0 + $0x70] sm:$0xff]
  %v565 = vld [vmem:[%s0 + $0x78] sm:$0xff]
  %v566 = vld [vmem:[%s0 + $0x80] sm:$0xff]
  %v567 = vld [vmem:[%s0 + $0x88] sm:$0xff]
  %v568 = vld [vmem:[%s0 + $0x90] sm:$0xff]
  %v569 = vld [vmem:[%s0 + $0x98] sm:$0xff]
  %v570 = vld [vmem:[%s0 + $0xa0] sm:$0xff]
  %v571 = vld [vmem:[%s0 + $0xa8] sm:$0xff]
  %v572 = vld [vmem:[%s0 + $0xb0] sm:$0xff]
  %v573 = vld [vmem:[%s0 + $0xb8] sm:$0xff]
  %v574 = vld [vmem:[%s0 + $0xc0] sm:$0xff]
  %v575 = vld [vmem:[%s0 + $0xc8] sm:$0xff]
  %v576 = vld [vmem:[%s0 + $0xd0] sm:$0xff]
  %v577 = vld [vmem:[%s0 + $0xd8] sm:$0xff]
  %v578 = vld [vmem:[%s0 + $0xe0] sm:$0xff]
  %v579 = vld [vmem:[%s0 + $0xe8] sm:$0xff]
  %v580 = vld [vmem:[%s0 + $0xf0] sm:$0xff]
  %v581 = vld [vmem:[%s0 + $0xf8] sm:$0xff]
  %v582 = vld [vmem:[%s0 + $0x100] sm:$0xff]
  %v583 = vld [vmem:[%s0 + $0x108] sm:$0xff]
  %v584 = vld [vmem:[%s0 + $0x110] sm:$0xff]
  %v585 = vld [vmem:[%s0 + $0x118] sm:$0xff]
  %v586 = vld [vmem:[%s0 + $0x120] sm:$0xff]
  %v587 = vld [vmem:[%s0 + $0x128] sm:$0xff]
  %v588 = vld [vmem:[%s0 + $0x130] sm:$0xff]
  %v589 = vld [vmem:[%s0 + $0x138] sm:$0xff]
  %v590 = vld [vmem:[%s0 + $0x140] sm:$0xff]
  %v591 = vld [vmem:[%s0 + $0x148] sm:$0xff]
  %v592 = vld [vmem:[%s0 + $0x150] sm:$0xff]
  %v593 = vld [vmem:[%s0 + $0x158] sm:$0xff]
  %v594 = vld [vmem:[%s0 + $0x160] sm:$0xff]
  %v595 = vld [vmem:[%s0 + $0x168] sm:$0xff]
  %v596 = vld [vmem:[%s0 + $0x170] sm:$0xff]
  %v597 = vld [vmem:[%s0 + $0x178] sm:$0xff]
  %v598 = vld [vmem:[%s0 + $0x180] sm:$0xff]
  %v599 = vld [vmem:[%s0 + $0x188] sm:$0xff]
  %v600 = vld [vmem:[%s0 + $0x190] sm:$0xff]
  %v601 = vld [vmem:[%s0 + $0x198] sm:$0xff]
  %v602 = vld [vmem:[%s0 + $0x1a0] sm:$0xff]
  %v603 = vld [vmem:[%s0 + $0x1a8] sm:$0xff]
  %v604 = vld [vmem:[%s0 + $0x1b0] sm:$0xff]
  %v605 = vld [vmem:[%s0 + $0x1b8] sm:$0xff]
  %v606 = vld [vmem:[%s0 + $0x1c0] sm:$0xff]
  %v607 = vld [vmem:[%s0 + $0x1c8] sm:$0xff]
  %v608 = vld [vmem:[%s0 + $0x1d0] sm:$0xff]
  %v609 = vld [vmem:[%s0 + $0x1d8] sm:$0xff]
  %v610 = vld [vmem:[%s0 + $0x1e0] sm:$0xff]
  %v611 = vld [vmem:[%s0 + $0x1e8] sm:$0xff]
  %v612 = vld [vmem:[%s0 + $0x1f0] sm:$0xff]
  %v613 = vld [vmem:[%s0 + $0x1f8] sm:$0xff]
  %v614 = vld [vmem:[%s0 + $0x200] sm:$0xff]
  %v615 = vld [vmem:[%s0 + $0x208] sm:$0xff]
  %v616 = vld [vmem:[%s0 + $0x210] sm:$0xff]
  %v617 = vld [vmem:[%s0 + $0x218] sm:$0xff]
  %v618 = vld [vmem:[%s0 + $0x220] sm:$0xff]
  %v619 = vld [vmem:[%s0 + $0x228] sm:$0xff]
  %v620 = vld [vmem:[%s0 + $0x230] sm:$0xff]
  %v621 = vld [vmem:[%s0 + $0x238] sm:$0xff]
  %v622 = vld [vmem:[%s0 + $0x240] sm:$0xff]
  %v623 = vld [vmem:[%s0 + $0x248] sm:$0xff]
  %v624 = vld [vmem:[%s0 + $0x250] sm:$0xff]
  %v625 = vld [vmem:[%s0 + $0x258] sm:$0xff]
  %v626 = vld [vmem:[%s0 + $0x260] sm:$0xff]
  %v627 = vld [vmem:[%s0 + $0x268] sm:$0xff]
  %v628 = vld [vmem:[%s0 + $0x270] sm:$0xff]
  %v629 = vld [vmem:[%s0 + $0x278] sm:$0xff]
  %v630 = vld [vmem:[%s0 + $0x280] sm:$0xff]
  %v631 = vld [vmem:[%s0 + $0x288] sm:$0xff]
  %v632 = vld [vmem:[%s0 + $0x290] sm:$0xff]
  %v633 = vld [vmem:[%s0 + $0x298] sm:$0xff]
  %v634 = vld [vmem:[%s0 + $0x2a0] sm:$0xff]
  %v635 = vld [vmem:[%s0 + $0x2a8] sm:$0xff]
  %v636 = vld [vmem:[%s0 + $0x2b0] sm:$0xff]
  %v637 = vld [vmem:[%s0 + $0x2b8] sm:$0xff]
  %v638 = vld [vmem:[%s0 + $0x2c0] sm:$0xff]
  %v639 = vld [vmem:[%s0 + $0x2c8] sm:$0xff]
  %v640 = vld [vmem:[%s0 + $0x2d0] sm:$0xff]
  %v641 = vld [vmem:[%s0 + $0x2d8] sm:$0xff]
  %v642 = vld [vmem:[%s0 + $0x2e0] sm:$0xff]
  %v643 = vld [vmem:[%s0 + $0x2e8] sm:$0xff]
  %v644 = vld [vmem:[%s0 + $0x2f0] sm:$0xff]
  %v645 = vld [vmem:[%s0 + $0x2f8] sm:$0xff]
  %v646 = vld [vmem:[%s0 + $0x300] sm:$0xff]
  %v647 = vld [vmem:[%s0 + $0x308] sm:$0xff]
  %v648 = vld [vmem:[%s0 + $0x310] sm:$0xff]
  %v649 = vld [vmem:[%s0 + $0x318] sm:$0xff]
  %v650 = vld [vmem:[%s0 + $0x320] sm:$0xff]
  %v651 = vld [vmem:[%s0 + $0x328] sm:$0xff]
  %v652 = vld [vmem:[%s0 + $0x330] sm:$0xff]
  %v653 = vld [vmem:[%s0 + $0x338] sm:$0xff]
  %v654 = vld [vmem:[%s0 + $0x340] sm:$0xff]
  %v655 = vld [vmem:[%s0 + $0x348] sm:$0xff]
  %v656 = vld [vmem:[%s0 + $0x350] sm:$0xff]
  %v657 = vld [vmem:[%s0 + $0x358] sm:$0xff]
  %v658 = vld [vmem:[%s0 + $0x360] sm:$0xff]
  %v659 = vld [vmem:[%s0 + $0x368] sm:$0xff]
  %v660 = vld [vmem:[%s0 + $0x370] sm:$0xff]
  %v661 = vld [vmem:[%s0 + $0x378] sm:$0xff]
  %v662 = vld [vmem:[%s0 + $0x380] sm:$0xff]
  %v663 = vld [vmem:[%s0 + $0x388] sm:$0xff]
  %v664 = vld [vmem:[%s0 + $0x390] sm:$0xff]
  %v665 = vld [vmem:[%s0 + $0x398] sm:$0xff]
  %v666 = vld [vmem:[%s0 + $0x3a0] sm:$0xff]
  %v667 = vld [vmem:[%s0 + $0x3a8] sm:$0xff]
  %v668 = vld [vmem:[%s0 + $0x3b0] sm:$0xff]
  %v669 = vld [vmem:[%s0 + $0x3b8] sm:$0xff]
  %v670 = vld [vmem:[%s0 + $0x3c0] sm:$0xff]
  %v671 = vld [vmem:[%s0 + $0x3c8] sm:$0xff]
  %v672 = vld [vmem:[%s0 + $0x3d0] sm:$0xff]
  %v673 = vld [vmem:[%s0 + $0x3d8] sm:$0xff]
  %v674 = vld [vmem:[%s0 + $0x3e0] sm:$0xff]
  %v675 = vld [vmem:[%s0 + $0x3e8] sm:$0xff]
  %v676 = vld [vmem:[%s0 + $0x3f0] sm:$0xff]
  %v677 = vld [vmem:[%s0 + $0x3f8] sm:$0xff]
  %v678 = vld [vmem:[%s0 + $0x400] sm:$0xff]
  %v679 = vld [vmem:[%s0 + $0x408] sm:$0xff]
  %v680 = vld [vmem:[%s0 + $0x410] sm:$0xff]
  %v681 = vld [vmem:[%s0 + $0x418] sm:$0xff]
  %v682 = vld [vmem:[%s0 + $0x420] sm:$0xff]
  %v683 = vld [vmem:[%s0 + $0x428] sm:$0xff]
  %v684 = vld [vmem:[%s0 + $0x430] sm:$0xff]
  %v685 = vld [vmem:[%s0 + $0x438] sm:$0xff]
  %v686 = vld [vmem:[%s0 + $0x440] sm:$0xff]
  %v687 = vld [vmem:[%s0 + $0x448] sm:$0xff]
  %v688 = vld [vmem:[%s0 + $0x450] sm:$0xff]
  %v689 = vld [vmem:[%s0 + $0x458] sm:$0xff]
  %v690 = vld [vmem:[%s0 + $0x460] sm:$0xff]
  %v691 = vld [vmem:[%s0 + $0x468] sm:$0xff]
  %v692 = vld [vmem:[%s0 + $0x470] sm:$0xff]
  %v693 = vld [vmem:[%s0 + $0x478] sm:$0xff]
  %v694 = vld [vmem:[%s0 + $0x480] sm:$0xff]
  %v695 = vld [vmem:[%s0 + $0x488] sm:$0xff]
  %v696 = vld [vmem:[%s0 + $0x490] sm:$0xff]
  %v697 = vld [vmem:[%s0 + $0x498] sm:$0xff]
  %v698 = vld [vmem:[%s0 + $0x4a0] sm:$0xff]
  %v699 = vld [vmem:[%s0 + $0x4a8] sm:$0xff]
  %v700 = vld [vmem:[%s0 + $0x4b0] sm:$0xff]
  %v701 = vld [vmem:[%s0 + $0x4b8] sm:$0xff]
  %v702 = vld [vmem:[%s0 + $0x4c0] sm:$0xff]
  %v703 = vld [vmem:[%s0 + $0x4c8] sm:$0xff]
  %v704 = vld [vmem:[%s0 + $0x4d0] sm:$0xff]
  %v705 = vld [vmem:[%s0 + $0x4d8] sm:$0xff]
  %v706 = vld [vmem:[%s0 + $0x4e0] sm:$0xff]
  %v707 = vld [vmem:[%s0 + $0x4e8] sm:$0xff]
  %v708 = vld [vmem:[%s0 + $0x4f0] sm:$0xff]
  %v709 = vld [vmem:[%s0 + $0x4f8] sm:$0xff]
  %v710 = vld [vmem:[%s0 + $0x500] sm:$0xff]
  %v711 = vld [vmem:[%s0 + $0x508] sm:$0xff]
  %v712 = vld [vmem:[%s0 + $0x510] sm:$0xff]
  %v713 = vld [vmem:[%s0 + $0x518] sm:$0xff]
  %v714 = vld [vmem:[%s0 + $0x520] sm:$0xff]
  %v715 = vld [vmem:[%s0 + $0x528] sm:$0xff]
  %v716 = vld [vmem:[%s0 + $0x530] sm:$0xff]
  %v717 = vld [vmem:[%s0 + $0x538] sm:$0xff]
  %v718 = vld [vmem:[%s0 + $0x540] sm:$0xff]
  %v719 = vld [vmem:[%s0 + $0x548] sm:$0xff]
  %v720 = vld [vmem:[%s0 + $0x550] sm:$0xff]
  %v721 = vld [vmem:[%s0 + $0x558] sm:$0xff]
  %v722 = vld [vmem:[%s0 + $0x560] sm:$0xff]
  %v723 = vld [vmem:[%s0 + $0x568] sm:$0xff]
  %v724 = vld [vmem:[%s0 + $0x570] sm:$0xff]
  %v725 = vld [vmem:[%s0 + $0x578] sm:$0xff]
  %v726 = vld [vmem:[%s0 + $0x580] sm:$0xff]
  %v727 = vld [vmem:[%s0 + $0x588] sm:$0xff]
  %v728 = vld [vmem:[%s0 + $0x590] sm:$0xff]
  %v729 = vld [vmem:[%s0 + $0x598] sm:$0xff]
  %v730 = vld [vmem:[%s0 + $0x5a0] sm:$0xff]
  %v731 = vld [vmem:[%s0 + $0x5a8] sm:$0xff]
  %v732 = vld [vmem:[%s0 + $0x5b0] sm:$0xff]
  %v733 = vld [vmem:[%s0 + $0x5b8] sm:$0xff]
  %v734 = vld [vmem:[%s0 + $0x5c0] sm:$0xff]
  %v735 = vld [vmem:[%s0 + $0x5c8] sm:$0xff]
  %v736 = vld [vmem:[%s0 + $0x5d0] sm:$0xff]
  %v737 = vld [vmem:[%s0 + $0x5d8] sm:$0xff]
  %v738 = vld [vmem:[%s0 + $0x5e0] sm:$0xff]
  %v739 = vld [vmem:[%s0 + $0x5e8] sm:$0xff]
  %v740 = vld [vmem:[%s0 + $0x5f0] sm:$0xff]
  %v741 = vld [vmem:[%s0 + $0x5f8] sm:$0xff]
  %v742 = vld [vmem:[%s0 + $0x600] sm:$0xff]
  %v743 = vld [vmem:[%s0 + $0x608] sm:$0xff]
  %v744 = vld [vmem:[%s0 + $0x610] sm:$0xff]
  %v745 = vld [vmem:[%s0 + $0x618] sm:$0xff]
  %v746 = vld [vmem:[%s0 + $0x620] sm:$0xff]
  %v747 = vld [vmem:[%s0 + $0x628] sm:$0xff]
  %v748 = vld [vmem:[%s0 + $0x630] sm:$0xff]
  %v749 = vld [vmem:[%s0 + $0x638] sm:$0xff]
  %v750 = vld [vmem:[%s0 + $0x640] sm:$0xff]
  %v751 = vld [vmem:[%s0 + $0x648] sm:$0xff]
  %v752 = vld [vmem:[%s0 + $0x650] sm:$0xff]
  %v753 = vld [vmem:[%s0 + $0x658] sm:$0xff]
  %v754 = vld [vmem:[%s0 + $0x660] sm:$0xff]
  %v755 = vld [vmem:[%s0 + $0x668] sm:$0xff]
  %v756 = vld [vmem:[%s0 + $0x670] sm:$0xff]
  %v757 = vld [vmem:[%s0 + $0x678] sm:$0xff]
  %v758 = vld [vmem:[%s0 + $0x680] sm:$0xff]
  %v759 = vld [vmem:[%s0 + $0x688] sm:$0xff]
  %v760 = vld [vmem:[%s0 + $0x690] sm:$0xff]
  %v761 = vld [vmem:[%s0 + $0x698] sm:$0xff]
  %v762 = vld [vmem:[%s0 + $0x6a0] sm:$0xff]
  %v763 = vld [vmem:[%s0 + $0x6a8] sm:$0xff]
  %v764 = vld [vmem:[%s0 + $0x6b0] sm:$0xff]
  %v765 = vld [vmem:[%s0 + $0x6b8] sm:$0xff]
  %v766 = vld [vmem:[%s0 + $0x6c0] sm:$0xff]
  %v767 = vld [vmem:[%s0 + $0x6c8] sm:$0xff]
  %v768 = vld [vmem:[%s0 + $0x6d0] sm:$0xff]
  %v769 = vld [vmem:[%s0 + $0x6d8] sm:$0xff]
  %v770 = vld [vmem:[%s0 + $0x6e0] sm:$0xff]
  %v771 = vld [vmem:[%s0 + $0x6e8] sm:$0xff]
  %v772 = vld [vmem:[%s0 + $0x6f0] sm:$0xff]
  %v773 = vld [vmem:[%s0 + $0x6f8] sm:$0xff]
  %v774 = vld [vmem:[%s0 + $0x700] sm:$0xff]
  %v775 = vld [vmem:[%s0 + $0x708] sm:$0xff]
  %v776 = vld [vmem:[%s0 + $0x710] sm:$0xff]
  %v777 = vld [vmem:[%s0 + $0x718] sm:$0xff]
  %v778 = vld [vmem:[%s0 + $0x720] sm:$0xff]
  %v779 = vld [vmem:[%s0 + $0x728] sm:$0xff]
  %v780 = vld [vmem:[%s0 + $0x730] sm:$0xff]
  %v781 = vld [vmem:[%s0 + $0x738] sm:$0xff]
  %v782 = vld [vmem:[%s0 + $0x740] sm:$0xff]
  %v783 = vld [vmem:[%s0 + $0x748] sm:$0xff]
  %v784 = vld [vmem:[%s0 + $0x750] sm:$0xff]
  %v785 = vld [vmem:[%s0 + $0x758] sm:$0xff]
  %v786 = vld [vmem:[%s0 + $0x760] sm:$0xff]
  %v787 = vld [vmem:[%s0 + $0x768] sm:$0xff]
  %v788 = vld [vmem:[%s0 + $0x770] sm:$0xff]
  %v789 = vld [vmem:[%s0 + $0x778] sm:$0xff]
  %v790 = vld [vmem:[%s0 + $0x780] sm:$0xff]
  %v791 = vld [vmem:[%s0 + $0x788] sm:$0xff]
  %v792 = vld [vmem:[%s0 + $0x790] sm:$0xff]
  %v793 = vld [vmem:[%s0 + $0x798] sm:$0xff]
  %v794 = vld [vmem:[%s0 + $0x7a0] sm:$0xff]
  %v795 = vld [vmem:[%s0 + $0x7a8] sm:$0xff]
  %v796 = vld [vmem:[%s0 + $0x7b0] sm:$0xff]
  %v797 = vld [vmem:[%s0 + $0x7b8] sm:$0xff]
  %v798 = vld [vmem:[%s0 + $0x7c0] sm:$0xff]
  %v799 = vld [vmem:[%s0 + $0x7c8] sm:$0xff]
  %v800 = vld [vmem:[%s0 + $0x7d0] sm:$0xff]
  %v801 = vld [vmem:[%s0 + $0x7d8] sm:$0xff]
  %v802 = vld [vmem:[%s0 + $0x7e0] sm:$0xff]
  %v803 = vld [vmem:[%s0 + $0x7e8] sm:$0xff]
  %v804 = vld [vmem:[%s0 + $0x7f0] sm:$0xff]
  %v805 = vld [vmem:[%s0 + $0x7f8] sm:$0xff]
  %v806 = vld [vmem:[%s0 + $0x800] sm:$0xff]
  %v807 = vld [vmem:[%s0 + $0x808] sm:$0xff]
  %v808 = vld [vmem:[%s0 + $0x810] sm:$0xff]
  %v809 = vld [vmem:[%s0 + $0x818] sm:$0xff]
  %v810 = vld [vmem:[%s0 + $0x820] sm:$0xff]
  %v811 = vld [vmem:[%s0 + $0x828] sm:$0xff]
  %v812 = vld [vmem:[%s0 + $0x830] sm:$0xff]
  %v813 = vld [vmem:[%s0 + $0x838] sm:$0xff]
  %v814 = vld [vmem:[%s0 + $0x840] sm:$0xff]
  %v815 = vld [vmem:[%s0 + $0x848] sm:$0xff]
  %v816 = vld [vmem:[%s0 + $0x850] sm:$0xff]
  %v817 = vld [vmem:[%s0 + $0x858] sm:$0xff]
  %v818 = vld [vmem:[%s0 + $0x860] sm:$0xff]
  %v819 = vld [vmem:[%s0 + $0x868] sm:$0xff]
  %v820 = vld [vmem:[%s0 + $0x870] sm:$0xff]
  %v821 = vld [vmem:[%s0 + $0x878] sm:$0xff]
  %v822 = vld [vmem:[%s0 + $0x880] sm:$0xff]
  %v823 = vld [vmem:[%s0 + $0x888] sm:$0xff]
  %v824 = vld [vmem:[%s0 + $0x890] sm:$0xff]
  %v825 = vld [vmem:[%s0 + $0x898] sm:$0xff]
  %v826 = vld [vmem:[%s0 + $0x8a0] sm:$0xff]
  %v827 = vld [vmem:[%s0 + $0x8a8] sm:$0xff]
  %v828 = vld [vmem:[%s0 + $0x8b0] sm:$0xff]
  %v829 = vld [vmem:[%s0 + $0x8b8] sm:$0xff]
  %v830 = vld [vmem:[%s0 + $0x8c0] sm:$0xff]
  %v831 = vld [vmem:[%s0 + $0x8c8] sm:$0xff]
  %v832 = vld [vmem:[%s0 + $0x8d0] sm:$0xff]
  %v833 = vld [vmem:[%s0 + $0x8d8] sm:$0xff]
  %v834 = vld [vmem:[%s0 + $0x8e0] sm:$0xff]
  %v835 = vld [vmem:[%s0 + $0x8e8] sm:$0xff]
  %v836 = vld [vmem:[%s0 + $0x8f0] sm:$0xff]
  %v837 = vld [vmem:[%s0 + $0x8f8] sm:$0xff]
  %v838 = vld [vmem:[%s0 + $0x900] sm:$0xff]
  %v839 = vld [vmem:[%s0 + $0x908] sm:$0xff]
  %v840 = vld [vmem:[%s0 + $0x910] sm:$0xff]
  %v841 = vld [vmem:[%s0 + $0x918] sm:$0xff]
  %v842 = vld [vmem:[%s0 + $0x920] sm:$0xff]
  %v843 = vld [vmem:[%s0 + $0x928] sm:$0xff]
  %v844 = vld [vmem:[%s0 + $0x930] sm:$0xff]
  %v845 = vld [vmem:[%s0 + $0x938] sm:$0xff]
  %v846 = vld [vmem:[%s0 + $0x940] sm:$0xff]
  %v847 = vld [vmem:[%s0 + $0x948] sm:$0xff]
  %v848 = vld [vmem:[%s0 + $0x950] sm:$0xff]
  %v849 = vld [vmem:[%s0 + $0x958] sm:$0xff]
  %v850 = vld [vmem:[%s0 + $0x960] sm:$0xff]
  %v851 = vld [vmem:[%s0 + $0x968] sm:$0xff]
  %v852 = vld [vmem:[%s0 + $0x970] sm:$0xff]
  %v853 = vld [vmem:[%s0 + $0x978] sm:$0xff]
  %v854 = vld [vmem:[%s0 + $0x980] sm:$0xff]
  %v855 = vld [vmem:[%s0 + $0x988] sm:$0xff]
  %v856 = vld [vmem:[%s0 + $0x990] sm:$0xff]
  %v857 = vld [vmem:[%s0 + $0x998] sm:$0xff]
  %v858 = vld [vmem:[%s0 + $0x9a0] sm:$0xff]
  %v859 = vld [vmem:[%s0 + $0x9a8] sm:$0xff]
  %v860 = vld [vmem:[%s0 + $0x9b0] sm:$0xff]
  %v861 = vld [vmem:[%s0 + $0x9b8] sm:$0xff]
  %v862 = vld [vmem:[%s0 + $0x9c0] sm:$0xff]
  %v863 = vld [vmem:[%s0 + $0x9c8] sm:$0xff]
  %v864 = vld [vmem:[%s0 + $0x9d0] sm:$0xff]
  %v865 = vld [vmem:[%s0 + $0x9d8] sm:$0xff]
  %v866 = vld [vmem:[%s0 + $0x9e0] sm:$0xff]
  %v867 = vld [vmem:[%s0 + $0x9e8] sm:$0xff]
  %v868 = vld [vmem:[%s0 + $0x9f0] sm:$0xff]
  %v869 = vld [vmem:[%s0 + $0x9f8] sm:$0xff]
  %v870 = vld [vmem:[%s0 + $0xa00] sm:$0xff]
  %v871 = vld [vmem:[%s0 + $0xa08] sm:$0xff]
  %v872 = vld [vmem:[%s0 + $0xa10] sm:$0xff]
  %v873 = vld [vmem:[%s0 + $0xa18] sm:$0xff]
  %v874 = vld [vmem:[%s0 + $0xa20] sm:$0xff]
  %v875 = vld [vmem:[%s0 + $0xa28] sm:$0xff]
  %v876 = vld [vmem:[%s0 + $0xa30] sm:$0xff]
  %v877 = vld [vmem:[%s0 + $0xa38] sm:$0xff]
  %v878 = vld [vmem:[%s0 + $0xa40] sm:$0xff]
  %v879 = vld [vmem:[%s0 + $0xa48] sm:$0xff]
  %v880 = vld [vmem:[%s0 + $0xa50] sm:$0xff]
  %v881 = vld [vmem:[%s0 + $0xa58] sm:$0xff]
  %v882 = vld [vmem:[%s0 + $0xa60] sm:$0xff]
  %v883 = vld [vmem:[%s0 + $0xa68] sm:$0xff]
  %v884 = vld [vmem:[%s0 + $0xa70] sm:$0xff]
  %v885 = vld [vmem:[%s0 + $0xa78] sm:$0xff]
  %v886 = vpack.c.bf16 %v552, %v550
  %v887 = vpack.c.bf16 %v553, %v551
  %v888 = vpack.c.bf16 %v556, %v554
  %v889 = vpack.c.bf16 %v557, %v555
  %v890 = vpack.c.bf16 %v560, %v558
  %v891 = vpack.c.bf16 %v561, %v559
  %v892 = vpack.c.bf16 %v564, %v562
  %v893 = vpack.c.bf16 %v565, %v563
  %v894 = vpack.c.bf16 %v568, %v566
  %v895 = vpack.c.bf16 %v569, %v567
  %v896 = vpack.c.bf16 %v572, %v570
  %v897 = vpack.c.bf16 %v573, %v571
  %v898 = vpack.c.bf16 %v576, %v574
  %v899 = vpack.c.bf16 %v577, %v575
  %v900 = vpack.c.bf16 %v580, %v578
  %v901 = vpack.c.bf16 %v581, %v579
  %v902 = vpack.c.bf16 %v584, %v582
  %v903 = vpack.c.bf16 %v585, %v583
  %v904 = vpack.c.bf16 %v588, %v586
  %v905 = vpack.c.bf16 %v589, %v587
  %v906 = vpack.c.bf16 %v592, %v590
  %v907 = vpack.c.bf16 %v593, %v591
  %v908 = vpack.c.bf16 %v596, %v594
  %v909 = vpack.c.bf16 %v597, %v595
  %v910 = vpack.c.bf16 %v600, %v598
  %v911 = vpack.c.bf16 %v601, %v599
  %v912 = vpack.c.bf16 %v604, %v602
  %v913 = vpack.c.bf16 %v605, %v603
  %v914 = vpack.c.bf16 %v608, %v606
  %v915 = vpack.c.bf16 %v609, %v607
  %v916 = vpack.c.bf16 %v612, %v610
  %v917 = vpack.c.bf16 %v613, %v611
  %v918 = vpack.c.bf16 %v616, %v614
  %v919 = vpack.c.bf16 %v617, %v615
  %v920 = vpack.c.bf16 %v620, %v618
  %v921 = vpack.c.bf16 %v621, %v619
  %v922 = vpack.c.bf16 %v624, %v622
  %v923 = vpack.c.bf16 %v625, %v623
  %v924 = vpack.c.bf16 %v628, %v626
  %v925 = vpack.c.bf16 %v629, %v627
  %v926 = vpack.c.bf16 %v632, %v630
  %v927 = vpack.c.bf16 %v633, %v631
  %v928 = vpack.c.bf16 %v636, %v634
  %v929 = vpack.c.bf16 %v637, %v635
  %v930 = vpack.c.bf16 %v640, %v638
  %v931 = vpack.c.bf16 %v641, %v639
  %v932 = vpack.c.bf16 %v644, %v642
  %v933 = vpack.c.bf16 %v645, %v643
  %v934 = vpack.c.bf16 %v648, %v646
  %v935 = vpack.c.bf16 %v649, %v647
  %v936 = vpack.c.bf16 %v652, %v650
  %v937 = vpack.c.bf16 %v653, %v651
  %v938 = vpack.c.bf16 %v656, %v654
  %v939 = vpack.c.bf16 %v657, %v655
  %v940 = vpack.c.bf16 %v660, %v658
  %v941 = vpack.c.bf16 %v661, %v659
  %v942 = vpack.c.bf16 %v664, %v662
  %v943 = vpack.c.bf16 %v665, %v663
  %v944 = vpack.c.bf16 %v668, %v666
  %v945 = vpack.c.bf16 %v669, %v667
  %v946 = vpack.c.bf16 %v672, %v670
  %v947 = vpack.c.bf16 %v673, %v671
  %v948 = vpack.c.bf16 %v676, %v674
  %v949 = vpack.c.bf16 %v677, %v675
  %v950 = vpack.c.bf16 %v680, %v678
  %v951 = vpack.c.bf16 %v681, %v679
  %v952 = vpack.c.bf16 %v684, %v682
  %v953 = vpack.c.bf16 %v685, %v683
  %v954 = vpack.c.bf16 %v688, %v686
  %v955 = vpack.c.bf16 %v689, %v687
  %v956 = vpack.c.bf16 %v692, %v690
  %v957 = vpack.c.bf16 %v693, %v691
  %v958 = vpack.c.bf16 %v696, %v694
  %v959 = vpack.c.bf16 %v697, %v695
  %v960 = vpack.c.bf16 %v700, %v698
  %v961 = vpack.c.bf16 %v701, %v699
  %v962 = vpack.c.bf16 %v704, %v702
  %v963 = vpack.c.bf16 %v705, %v703
  %v964 = vpack.c.bf16 %v708, %v706
  %v965 = vpack.c.bf16 %v709, %v707
  %v966 = vpack.c.bf16 %v712, %v710
  %v967 = vpack.c.bf16 %v713, %v711
  %v968 = vpack.c.bf16 %v716, %v714
  %v969 = vpack.c.bf16 %v717, %v715
  %v970 = vpack.c.bf16 %v720, %v718
  %v971 = vpack.c.bf16 %v721, %v719
  %v972 = vpack.c.bf16 %v724, %v722
  %v973 = vpack.c.bf16 %v725, %v723
  %v974 = vpack.c.bf16 %v728, %v726
  %v975 = vpack.c.bf16 %v729, %v727
  %v976 = vpack.c.bf16 %v732, %v730
  %v977 = vpack.c.bf16 %v733, %v731
  %v978 = vpack.c.bf16 %v736, %v734
  %v979 = vpack.c.bf16 %v737, %v735
  %v980 = vpack.c.bf16 %v740, %v738
  %v981 = vpack.c.bf16 %v741, %v739
  %v982 = vpack.c.bf16 %v744, %v742
  %v983 = vpack.c.bf16 %v745, %v743
  %v984 = vpack.c.bf16 %v748, %v746
  %v985 = vpack.c.bf16 %v749, %v747
  %v986 = vpack.c.bf16 %v752, %v750
  %v987 = vpack.c.bf16 %v753, %v751
  %v988 = vpack.c.bf16 %v756, %v754
  %v989 = vpack.c.bf16 %v757, %v755
  %v990 = vpack.c.bf16 %v760, %v758
  %v991 = vpack.c.bf16 %v761, %v759
  %v992 = vpack.c.bf16 %v764, %v762
  %v993 = vpack.c.bf16 %v765, %v763
  %v994 = vpack.c.bf16 %v768, %v766
  %v995 = vpack.c.bf16 %v769, %v767
  %v996 = vpack.c.bf16 %v772, %v770
  %v997 = vpack.c.bf16 %v773, %v771
  %v998 = vpack.c.bf16 %v776, %v774
  %v999 = vpack.c.bf16 %v777, %v775
  %v1000 = vpack.c.bf16 %v780, %v778
  %v1001 = vpack.c.bf16 %v781, %v779
  %v1002 = vpack.c.bf16 %v784, %v782
  %v1003 = vpack.c.bf16 %v785, %v783
  %v1004 = vpack.c.bf16 %v788, %v786
  %v1005 = vpack.c.bf16 %v789, %v787
  %v1006 = vpack.c.bf16 %v792, %v790
  %v1007 = vpack.c.bf16 %v793, %v791
  %v1008 = vpack.c.bf16 %v796, %v794
  %v1009 = vpack.c.bf16 %v797, %v795
  %v1010 = vpack.c.bf16 %v800, %v798
  %v1011 = vpack.c.bf16 %v801, %v799
  %v1012 = vpack.c.bf16 %v804, %v802
  %v1013 = vpack.c.bf16 %v805, %v803
  %v1014 = vpack.c.bf16 %v808, %v806
  %v1015 = vpack.c.bf16 %v809, %v807
  %v1016 = vpack.c.bf16 %v812, %v810
  %v1017 = vpack.c.bf16 %v813, %v811
  %v1018 = vpack.c.bf16 %v816, %v814
  %v1019 = vpack.c.bf16 %v817, %v815
  %v1020 = vpack.c.bf16 %v820, %v818
  %v1021 = vpack.c.bf16 %v821, %v819
  %v1022 = vpack.c.bf16 %v824, %v822
  %v1023 = vpack.c.bf16 %v825, %v823
  %v1024 = vpack.c.bf16 %v828, %v826
  %v1025 = vpack.c.bf16 %v829, %v827
  %v1026 = vpack.c.bf16 %v832, %v830
  %v1027 = vpack.c.bf16 %v833, %v831
  %v1028 = vpack.c.bf16 %v836, %v834
  %v1029 = vpack.c.bf16 %v837, %v835
  %v1030 = vpack.c.bf16 %v840, %v838
  %v1031 = vpack.c.bf16 %v841, %v839
  %v1032 = vpack.c.bf16 %v844, %v842
  %v1033 = vpack.c.bf16 %v845, %v843
  %v1034 = vpack.c.bf16 %v848, %v846
  %v1035 = vpack.c.bf16 %v849, %v847
  %v1036 = vpack.c.bf16 %v852, %v850
  %v1037 = vpack.c.bf16 %v853, %v851
  %v1038 = vpack.c.bf16 %v856, %v854
  %v1039 = vpack.c.bf16 %v857, %v855
  %v1040 = vpack.c.bf16 %v860, %v858
  %v1041 = vpack.c.bf16 %v861, %v859
  %v1042 = vpack.c.bf16 %v864, %v862
  %v1043 = vpack.c.bf16 %v865, %v863
  %v1044 = vpack.c.bf16 %v868, %v866
  %v1045 = vpack.c.bf16 %v869, %v867
  %v1046 = vpack.c.bf16 %v872, %v870
  %v1047 = vpack.c.bf16 %v873, %v871
  %v1048 = vpack.c.bf16 %v876, %v874
  %v1049 = vpack.c.bf16 %v877, %v875
  %v1050 = vpack.c.bf16 %v880, %v878
  %v1051 = vpack.c.bf16 %v881, %v879
  %v1052 = vpack.c.bf16 %v884, %v882
  %v1053 = vpack.c.bf16 %v885, %v883
  %v1222 = vunpack.c.l.b16 %v382
  %v1223 = vunpack.c.h.b16 %v382
  %v1224 = vunpack.c.l.b16 %v383
  %v1225 = vunpack.c.h.b16 %v383
  %v1226 = vunpack.c.l.b16 %v384
  %v1227 = vunpack.c.h.b16 %v384
  %v1228 = vunpack.c.l.b16 %v385
  %v1229 = vunpack.c.h.b16 %v385
  %v1230 = vunpack.c.l.b16 %v386
  %v1231 = vunpack.c.h.b16 %v386
  %v1232 = vunpack.c.l.b16 %v387
  %v1233 = vunpack.c.l.b16 %v388
  %v1234 = vunpack.c.h.b16 %v388
  %v1235 = vunpack.c.l.b16 %v389
  %v1236 = vunpack.c.h.b16 %v389
  %v1237 = vunpack.c.l.b16 %v390
  %v1238 = vunpack.c.h.b16 %v390
  %v1239 = vunpack.c.l.b16 %v391
  %v1240 = vunpack.c.h.b16 %v391
  %v1241 = vunpack.c.l.b16 %v392
  %v1242 = vunpack.c.h.b16 %v392
  %v1243 = vunpack.c.l.b16 %v393
  %v1244 = vunpack.c.l.b16 %v394
  %v1245 = vunpack.c.h.b16 %v394
  %v1246 = vunpack.c.l.b16 %v395
  %v1247 = vunpack.c.h.b16 %v395
  %v1248 = vunpack.c.l.b16 %v396
  %v1249 = vunpack.c.h.b16 %v396
  %v1250 = vunpack.c.l.b16 %v397
  %v1251 = vunpack.c.h.b16 %v397
  %v1252 = vunpack.c.l.b16 %v398
  %v1253 = vunpack.c.h.b16 %v398
  %v1254 = vunpack.c.l.b16 %v399
  %v1255 = vunpack.c.l.b16 %v400
  %v1256 = vunpack.c.h.b16 %v400
  %v1257 = vunpack.c.l.b16 %v401
  %v1258 = vunpack.c.h.b16 %v401
  %v1259 = vunpack.c.l.b16 %v402
  %v1260 = vunpack.c.h.b16 %v402
  %v1261 = vunpack.c.l.b16 %v403
  %v1262 = vunpack.c.h.b16 %v403
  %v1263 = vunpack.c.l.b16 %v404
  %v1264 = vunpack.c.h.b16 %v404
  %v1265 = vunpack.c.l.b16 %v405
  %v1266 = vunpack.c.l.b16 %v406
  %v1267 = vunpack.c.h.b16 %v406
  %v1268 = vunpack.c.l.b16 %v407
  %v1269 = vunpack.c.h.b16 %v407
  %v1270 = vunpack.c.l.b16 %v408
  %v1271 = vunpack.c.h.b16 %v408
  %v1272 = vunpack.c.l.b16 %v409
  %v1273 = vunpack.c.h.b16 %v409
  %v1274 = vunpack.c.l.b16 %v410
  %v1275 = vunpack.c.h.b16 %v410
  %v1276 = vunpack.c.l.b16 %v411
  %v1277 = vunpack.c.l.b16 %v412
  %v1278 = vunpack.c.h.b16 %v412
  %v1279 = vunpack.c.l.b16 %v413
  %v1280 = vunpack.c.h.b16 %v413
  %v1281 = vunpack.c.l.b16 %v414
  %v1282 = vunpack.c.h.b16 %v414
  %v1283 = vunpack.c.l.b16 %v415
  %v1284 = vunpack.c.h.b16 %v415
  %v1285 = vunpack.c.l.b16 %v416
  %v1286 = vunpack.c.h.b16 %v416
  %v1287 = vunpack.c.l.b16 %v417
  %v1288 = vunpack.c.l.b16 %v418
  %v1289 = vunpack.c.h.b16 %v418
  %v1290 = vunpack.c.l.b16 %v419
  %v1291 = vunpack.c.h.b16 %v419
  %v1292 = vunpack.c.l.b16 %v420
  %v1293 = vunpack.c.h.b16 %v420
  %v1294 = vunpack.c.l.b16 %v421
  %v1295 = vunpack.c.h.b16 %v421
  %v1296 = vunpack.c.l.b16 %v422
  %v1297 = vunpack.c.h.b16 %v422
  %v1298 = vunpack.c.l.b16 %v423
  %v1299 = vunpack.c.l.b16 %v424
  %v1300 = vunpack.c.h.b16 %v424
  %v1301 = vunpack.c.l.b16 %v425
  %v1302 = vunpack.c.h.b16 %v425
  %v1303 = vunpack.c.l.b16 %v426
  %v1304 = vunpack.c.h.b16 %v426
  %v1305 = vunpack.c.l.b16 %v427
  %v1306 = vunpack.c.h.b16 %v427
  %v1307 = vunpack.c.l.b16 %v428
  %v1308 = vunpack.c.h.b16 %v428
  %v1309 = vunpack.c.l.b16 %v429
  %v1310 = vunpack.c.l.b16 %v430
  %v1311 = vunpack.c.h.b16 %v430
  %v1312 = vunpack.c.l.b16 %v431
  %v1313 = vunpack.c.h.b16 %v431
  %v1314 = vunpack.c.l.b16 %v432
  %v1315 = vunpack.c.h.b16 %v432
  %v1316 = vunpack.c.l.b16 %v433
  %v1317 = vunpack.c.h.b16 %v433
  %v1318 = vunpack.c.l.b16 %v434
  %v1319 = vunpack.c.h.b16 %v434
  %v1320 = vunpack.c.l.b16 %v435
  %v1321 = vunpack.c.l.b16 %v436
  %v1322 = vunpack.c.h.b16 %v436
  %v1323 = vunpack.c.l.b16 %v437
  %v1324 = vunpack.c.h.b16 %v437
  %v1325 = vunpack.c.l.b16 %v438
  %v1326 = vunpack.c.h.b16 %v438
  %v1327 = vunpack.c.l.b16 %v439
  %v1328 = vunpack.c.h.b16 %v439
  %v1329 = vunpack.c.l.b16 %v440
  %v1330 = vunpack.c.h.b16 %v440
  %v1331 = vunpack.c.l.b16 %v441
  %v1332 = vunpack.c.l.b16 %v442
  %v1333 = vunpack.c.h.b16 %v442
  %v1334 = vunpack.c.l.b16 %v443
  %v1335 = vunpack.c.h.b16 %v443
  %v1336 = vunpack.c.l.b16 %v444
  %v1337 = vunpack.c.h.b16 %v444
  %v1338 = vunpack.c.l.b16 %v445
  %v1339 = vunpack.c.h.b16 %v445
  %v1340 = vunpack.c.l.b16 %v446
  %v1341 = vunpack.c.h.b16 %v446
  %v1342 = vunpack.c.l.b16 %v447
  %v1343 = vunpack.c.l.b16 %v448
  %v1344 = vunpack.c.h.b16 %v448
  %v1345 = vunpack.c.l.b16 %v449
  %v1346 = vunpack.c.h.b16 %v449
  %v1347 = vunpack.c.l.b16 %v450
  %v1348 = vunpack.c.h.b16 %v450
  %v1349 = vunpack.c.l.b16 %v451
  %v1350 = vunpack.c.h.b16 %v451
  %v1351 = vunpack.c.l.b16 %v452
  %v1352 = vunpack.c.h.b16 %v452
  %v1353 = vunpack.c.l.b16 %v453
  %v1354 = vunpack.c.l.b16 %v454
  %v1355 = vunpack.c.h.b16 %v454
  %v1356 = vunpack.c.l.b16 %v455
  %v1357 = vunpack.c.h.b16 %v455
  %v1358 = vunpack.c.l.b16 %v456
  %v1359 = vunpack.c.h.b16 %v456
  %v1360 = vunpack.c.l.b16 %v457
  %v1361 = vunpack.c.h.b16 %v457
  %v1362 = vunpack.c.l.b16 %v458
  %v1363 = vunpack.c.h.b16 %v458
  %v1364 = vunpack.c.l.b16 %v459
  %v1365 = vunpack.c.l.b16 %v460
  %v1366 = vunpack.c.h.b16 %v460
  %v1367 = vunpack.c.l.b16 %v461
  %v1368 = vunpack.c.h.b16 %v461
  %v1369 = vunpack.c.l.b16 %v462
  %v1370 = vunpack.c.h.b16 %v462
  %v1371 = vunpack.c.l.b16 %v463
  %v1372 = vunpack.c.h.b16 %v463
  %v1373 = vunpack.c.l.b16 %v464
  %v1374 = vunpack.c.h.b16 %v464
  %v1375 = vunpack.c.l.b16 %v465
  %v1376 = vunpack.c.l.b16 %v466
  %v1377 = vunpack.c.h.b16 %v466
  %v1378 = vunpack.c.l.b16 %v467
  %v1379 = vunpack.c.h.b16 %v467
  %v1380 = vunpack.c.l.b16 %v468
  %v1381 = vunpack.c.h.b16 %v468
  %v1382 = vunpack.c.l.b16 %v469
  %v1383 = vunpack.c.h.b16 %v469
  %v1384 = vunpack.c.l.b16 %v470
  %v1385 = vunpack.c.h.b16 %v470
  %v1386 = vunpack.c.l.b16 %v471
  %v1387 = vunpack.c.l.b16 %v472
  %v1388 = vunpack.c.h.b16 %v472
  %v1389 = vunpack.c.l.b16 %v473
  %v1390 = vunpack.c.h.b16 %v473
  %v1391 = vunpack.c.l.b16 %v474
  %v1392 = vunpack.c.h.b16 %v474
  %v1393 = vunpack.c.l.b16 %v475
  %v1394 = vunpack.c.h.b16 %v475
  %v1395 = vunpack.c.l.b16 %v476
  %v1396 = vunpack.c.h.b16 %v476
  %v1397 = vunpack.c.l.b16 %v477
  %v1398 = vunpack.c.l.b16 %v478
  %v1399 = vunpack.c.h.b16 %v478
  %v1400 = vunpack.c.l.b16 %v479
  %v1401 = vunpack.c.h.b16 %v479
  %v1402 = vunpack.c.l.b16 %v480
  %v1403 = vunpack.c.h.b16 %v480
  %v1404 = vunpack.c.l.b16 %v481
  %v1405 = vunpack.c.h.b16 %v481
  %v1406 = vunpack.c.l.b16 %v482
  %v1407 = vunpack.c.h.b16 %v482
  %v1408 = vunpack.c.l.b16 %v483
  %v1409 = vunpack.c.l.b16 %v484
  %v1410 = vunpack.c.h.b16 %v484
  %v1411 = vunpack.c.l.b16 %v485
  %v1412 = vunpack.c.h.b16 %v485
  %v1413 = vunpack.c.l.b16 %v486
  %v1414 = vunpack.c.h.b16 %v486
  %v1415 = vunpack.c.l.b16 %v487
  %v1416 = vunpack.c.h.b16 %v487
  %v1417 = vunpack.c.l.b16 %v488
  %v1418 = vunpack.c.h.b16 %v488
  %v1419 = vunpack.c.l.b16 %v489
  %v1420 = vunpack.c.l.b16 %v490
  %v1421 = vunpack.c.h.b16 %v490
  %v1422 = vunpack.c.l.b16 %v491
  %v1423 = vunpack.c.h.b16 %v491
  %v1424 = vunpack.c.l.b16 %v492
  %v1425 = vunpack.c.h.b16 %v492
  %v1426 = vunpack.c.l.b16 %v493
  %v1427 = vunpack.c.h.b16 %v493
  %v1428 = vunpack.c.l.b16 %v494
  %v1429 = vunpack.c.h.b16 %v494
  %v1430 = vunpack.c.l.b16 %v495
  %v1431 = vunpack.c.l.b16 %v496
  %v1432 = vunpack.c.h.b16 %v496
  %v1433 = vunpack.c.l.b16 %v497
  %v1434 = vunpack.c.h.b16 %v497
  %v1435 = vunpack.c.l.b16 %v498
  %v1436 = vunpack.c.h.b16 %v498
  %v1437 = vunpack.c.l.b16 %v499
  %v1438 = vunpack.c.h.b16 %v499
  %v1439 = vunpack.c.l.b16 %v500
  %v1440 = vunpack.c.h.b16 %v500
  %v1441 = vunpack.c.l.b16 %v501
  %v1442 = vunpack.c.l.b16 %v502
  %v1443 = vunpack.c.h.b16 %v502
  %v1444 = vunpack.c.l.b16 %v503
  %v1445 = vunpack.c.h.b16 %v503
  %v1446 = vunpack.c.l.b16 %v504
  %v1447 = vunpack.c.h.b16 %v504
  %v1448 = vunpack.c.l.b16 %v505
  %v1449 = vunpack.c.h.b16 %v505
  %v1450 = vunpack.c.l.b16 %v506
  %v1451 = vunpack.c.h.b16 %v506
  %v1452 = vunpack.c.l.b16 %v507
  %v1453 = vunpack.c.l.b16 %v508
  %v1454 = vunpack.c.h.b16 %v508
  %v1455 = vunpack.c.l.b16 %v509
  %v1456 = vunpack.c.h.b16 %v509
  %v1457 = vunpack.c.l.b16 %v510
  %v1458 = vunpack.c.h.b16 %v510
  %v1459 = vunpack.c.l.b16 %v511
  %v1460 = vunpack.c.h.b16 %v511
  %v1461 = vunpack.c.l.b16 %v512
  %v1462 = vunpack.c.h.b16 %v512
  %v1463 = vunpack.c.l.b16 %v513
  %v1464 = vunpack.c.l.b16 %v514
  %v1465 = vunpack.c.h.b16 %v514
  %v1466 = vunpack.c.l.b16 %v515
  %v1467 = vunpack.c.h.b16 %v515
  %v1468 = vunpack.c.l.b16 %v516
  %v1469 = vunpack.c.h.b16 %v516
  %v1470 = vunpack.c.l.b16 %v517
  %v1471 = vunpack.c.h.b16 %v517
  %v1472 = vunpack.c.l.b16 %v518
  %v1473 = vunpack.c.h.b16 %v518
  %v1474 = vunpack.c.l.b16 %v519
  %v1475 = vunpack.c.l.b16 %v520
  %v1476 = vunpack.c.h.b16 %v520
  %v1477 = vunpack.c.l.b16 %v521
  %v1478 = vunpack.c.h.b16 %v521
  %v1479 = vunpack.c.l.b16 %v522
  %v1480 = vunpack.c.h.b16 %v522
  %v1481 = vunpack.c.l.b16 %v523
  %v1482 = vunpack.c.h.b16 %v523
  %v1483 = vunpack.c.l.b16 %v524
  %v1484 = vunpack.c.h.b16 %v524
  %v1485 = vunpack.c.l.b16 %v525
  %v1486 = vunpack.c.l.b16 %v526
  %v1487 = vunpack.c.h.b16 %v526
  %v1488 = vunpack.c.l.b16 %v527
  %v1489 = vunpack.c.h.b16 %v527
  %v1490 = vunpack.c.l.b16 %v528
  %v1491 = vunpack.c.h.b16 %v528
  %v1492 = vunpack.c.l.b16 %v529
  %v1493 = vunpack.c.h.b16 %v529
  %v1494 = vunpack.c.l.b16 %v530
  %v1495 = vunpack.c.h.b16 %v530
  %v1496 = vunpack.c.l.b16 %v531
  %v1497 = vunpack.c.l.b16 %v532
  %v1498 = vunpack.c.h.b16 %v532
  %v1499 = vunpack.c.l.b16 %v533
  %v1500 = vunpack.c.h.b16 %v533
  %v1501 = vunpack.c.l.b16 %v534
  %v1502 = vunpack.c.h.b16 %v534
  %v1503 = vunpack.c.l.b16 %v535
  %v1504 = vunpack.c.h.b16 %v535
  %v1505 = vunpack.c.l.b16 %v536
  %v1506 = vunpack.c.h.b16 %v536
  %v1507 = vunpack.c.l.b16 %v537
  %v1508 = vunpack.c.l.b16 %v538
  %v1509 = vunpack.c.h.b16 %v538
  %v1510 = vunpack.c.l.b16 %v539
  %v1511 = vunpack.c.h.b16 %v539
  %v1512 = vunpack.c.l.b16 %v540
  %v1513 = vunpack.c.h.b16 %v540
  %v1514 = vunpack.c.l.b16 %v541
  %v1515 = vunpack.c.h.b16 %v541
  %v1516 = vunpack.c.l.b16 %v542
  %v1517 = vunpack.c.h.b16 %v542
  %v1518 = vunpack.c.l.b16 %v543
  %v1519 = vunpack.c.l.b16 %v544
  %v1520 = vunpack.c.h.b16 %v544
  %v1521 = vunpack.c.l.b16 %v545
  %v1522 = vunpack.c.h.b16 %v545
  %v1523 = vunpack.c.l.b16 %v546
  %v1524 = vunpack.c.h.b16 %v546
  %v1525 = vunpack.c.l.b16 %v547
  %v1526 = vunpack.c.h.b16 %v547
  %v1527 = vunpack.c.l.b16 %v548
  %v1528 = vunpack.c.h.b16 %v548
  %v1529 = vunpack.c.l.b16 %v549
  %v1530 = vpack.c.b16 %v1233, %v1222
  %v1531 = vpack.c.b16 %v1234, %v1223
  %v1532 = vpack.c.b16 %v1235, %v1224
  %v1533 = vpack.c.b16 %v1236, %v1225
  %v1534 = vpack.c.b16 %v1237, %v1226
  %v1535 = vpack.c.b16 %v1238, %v1227
  %v1536 = vpack.c.b16 %v1239, %v1228
  %v1537 = vpack.c.b16 %v1240, %v1229
  %v1538 = vpack.c.b16 %v1241, %v1230
  %v1539 = vpack.c.b16 %v1242, %v1231
  %v1540 = vpack.c.b16 %v1243, %v1232
  %v1541 = vpack.c.b16 %v1255, %v1244
  %v1542 = vpack.c.b16 %v1256, %v1245
  %v1543 = vpack.c.b16 %v1257, %v1246
  %v1544 = vpack.c.b16 %v1258, %v1247
  %v1545 = vpack.c.b16 %v1259, %v1248
  %v1546 = vpack.c.b16 %v1260, %v1249
  %v1547 = vpack.c.b16 %v1261, %v1250
  %v1548 = vpack.c.b16 %v1262, %v1251
  %v1549 = vpack.c.b16 %v1263, %v1252
  %v1550 = vpack.c.b16 %v1264, %v1253
  %v1551 = vpack.c.b16 %v1265, %v1254
  %v1552 = vpack.c.b16 %v1277, %v1266
  %v1553 = vpack.c.b16 %v1278, %v1267
  %v1554 = vpack.c.b16 %v1279, %v1268
  %v1555 = vpack.c.b16 %v1280, %v1269
  %v1556 = vpack.c.b16 %v1281, %v1270
  %v1557 = vpack.c.b16 %v1282, %v1271
  %v1558 = vpack.c.b16 %v1283, %v1272
  %v1559 = vpack.c.b16 %v1284, %v1273
  %v1560 = vpack.c.b16 %v1285, %v1274
  %v1561 = vpack.c.b16 %v1286, %v1275
  %v1562 = vpack.c.b16 %v1287, %v1276
  %v1563 = vpack.c.b16 %v1299, %v1288
  %v1564 = vpack.c.b16 %v1300, %v1289
  %v1565 = vpack.c.b16 %v1301, %v1290
  %v1566 = vpack.c.b16 %v1302, %v1291
  %v1567 = vpack.c.b16 %v1303, %v1292
  %v1568 = vpack.c.b16 %v1304, %v1293
  %v1569 = vpack.c.b16 %v1305, %v1294
  %v1570 = vpack.c.b16 %v1306, %v1295
  %v1571 = vpack.c.b16 %v1307, %v1296
  %v1572 = vpack.c.b16 %v1308, %v1297
  %v1573 = vpack.c.b16 %v1309, %v1298
  %v1574 = vpack.c.b16 %v1321, %v1310
  %v1575 = vpack.c.b16 %v1322, %v1311
  %v1576 = vpack.c.b16 %v1323, %v1312
  %v1577 = vpack.c.b16 %v1324, %v1313
  %v1578 = vpack.c.b16 %v1325, %v1314
  %v1579 = vpack.c.b16 %v1326, %v1315
  %v1580 = vpack.c.b16 %v1327, %v1316
  %v1581 = vpack.c.b16 %v1328, %v1317
  %v1582 = vpack.c.b16 %v1329, %v1318
  %v1583 = vpack.c.b16 %v1330, %v1319
  %v1584 = vpack.c.b16 %v1331, %v1320
  %v1585 = vpack.c.b16 %v1343, %v1332
  %v1586 = vpack.c.b16 %v1344, %v1333
  %v1587 = vpack.c.b16 %v1345, %v1334
  %v1588 = vpack.c.b16 %v1346, %v1335
  %v1589 = vpack.c.b16 %v1347, %v1336
  %v1590 = vpack.c.b16 %v1348, %v1337
  %v1591 = vpack.c.b16 %v1349, %v1338
  %v1592 = vpack.c.b16 %v1350, %v1339
  %v1593 = vpack.c.b16 %v1351, %v1340
  %v1594 = vpack.c.b16 %v1352, %v1341
  %v1595 = vpack.c.b16 %v1353, %v1342
  %v1596 = vpack.c.b16 %v1365, %v1354
  %v1597 = vpack.c.b16 %v1366, %v1355
  %v1598 = vpack.c.b16 %v1367, %v1356
  %v1599 = vpack.c.b16 %v1368, %v1357
  %v1600 = vpack.c.b16 %v1369, %v1358
  %v1601 = vpack.c.b16 %v1370, %v1359
  %v1602 = vpack.c.b16 %v1371, %v1360
  %v1603 = vpack.c.b16 %v1372, %v1361
  %v1604 = vpack.c.b16 %v1373, %v1362
  %v1605 = vpack.c.b16 %v1374, %v1363
  %v1606 = vpack.c.b16 %v1375, %v1364
  %v1607 = vpack.c.b16 %v1387, %v1376
  %v1608 = vpack.c.b16 %v1388, %v1377
  %v1609 = vpack.c.b16 %v1389, %v1378
  %v1610 = vpack.c.b16 %v1390, %v1379
  %v1611 = vpack.c.b16 %v1391, %v1380
  %v1612 = vpack.c.b16 %v1392, %v1381
  %v1613 = vpack.c.b16 %v1393, %v1382
  %v1614 = vpack.c.b16 %v1394, %v1383
  %v1615 = vpack.c.b16 %v1395, %v1384
  %v1616 = vpack.c.b16 %v1396, %v1385
  %v1617 = vpack.c.b16 %v1397, %v1386
  %v1618 = vpack.c.b16 %v1409, %v1398
  %v1619 = vpack.c.b16 %v1410, %v1399
  %v1620 = vpack.c.b16 %v1411, %v1400
  %v1621 = vpack.c.b16 %v1412, %v1401
  %v1622 = vpack.c.b16 %v1413, %v1402
  %v1623 = vpack.c.b16 %v1414, %v1403
  %v1624 = vpack.c.b16 %v1415, %v1404
  %v1625 = vpack.c.b16 %v1416, %v1405
  %v1626 = vpack.c.b16 %v1417, %v1406
  %v1627 = vpack.c.b16 %v1418, %v1407
  %v1628 = vpack.c.b16 %v1419, %v1408
  %v1629 = vpack.c.b16 %v1431, %v1420
  %v1630 = vpack.c.b16 %v1432, %v1421
  %v1631 = vpack.c.b16 %v1433, %v1422
  %v1632 = vpack.c.b16 %v1434, %v1423
  %v1633 = vpack.c.b16 %v1435, %v1424
  %v1634 = vpack.c.b16 %v1436, %v1425
  %v1635 = vpack.c.b16 %v1437, %v1426
  %v1636 = vpack.c.b16 %v1438, %v1427
  %v1637 = vpack.c.b16 %v1439, %v1428
  %v1638 = vpack.c.b16 %v1440, %v1429
  %v1639 = vpack.c.b16 %v1441, %v1430
  %v1640 = vpack.c.b16 %v1453, %v1442
  %v1641 = vpack.c.b16 %v1454, %v1443
  %v1642 = vpack.c.b16 %v1455, %v1444
  %v1643 = vpack.c.b16 %v1456, %v1445
  %v1644 = vpack.c.b16 %v1457, %v1446
  %v1645 = vpack.c.b16 %v1458, %v1447
  %v1646 = vpack.c.b16 %v1459, %v1448
  %v1647 = vpack.c.b16 %v1460, %v1449
  %v1648 = vpack.c.b16 %v1461, %v1450
  %v1649 = vpack.c.b16 %v1462, %v1451
  %v1650 = vpack.c.b16 %v1463, %v1452
  %v1651 = vpack.c.b16 %v1475, %v1464
  %v1652 = vpack.c.b16 %v1476, %v1465
  %v1653 = vpack.c.b16 %v1477, %v1466
  %v1654 = vpack.c.b16 %v1478, %v1467
  %v1655 = vpack.c.b16 %v1479, %v1468
  %v1656 = vpack.c.b16 %v1480, %v1469
  %v1657 = vpack.c.b16 %v1481, %v1470
  %v1658 = vpack.c.b16 %v1482, %v1471
  %v1659 = vpack.c.b16 %v1483, %v1472
  %v1660 = vpack.c.b16 %v1484, %v1473
  %v1661 = vpack.c.b16 %v1485, %v1474
  %v1662 = vpack.c.b16 %v1497, %v1486
  %v1663 = vpack.c.b16 %v1498, %v1487
  %v1664 = vpack.c.b16 %v1499, %v1488
  %v1665 = vpack.c.b16 %v1500, %v1489
  %v1666 = vpack.c.b16 %v1501, %v1490
  %v1667 = vpack.c.b16 %v1502, %v1491
  %v1668 = vpack.c.b16 %v1503, %v1492
  %v1669 = vpack.c.b16 %v1504, %v1493
  %v1670 = vpack.c.b16 %v1505, %v1494
  %v1671 = vpack.c.b16 %v1506, %v1495
  %v1672 = vpack.c.b16 %v1507, %v1496
  %v1673 = vpack.c.b16 %v1519, %v1508
  %v1674 = vpack.c.b16 %v1520, %v1509
  %v1675 = vpack.c.b16 %v1521, %v1510
  %v1676 = vpack.c.b16 %v1522, %v1511
  %v1677 = vpack.c.b16 %v1523, %v1512
  %v1678 = vpack.c.b16 %v1524, %v1513
  %v1679 = vpack.c.b16 %v1525, %v1514
  %v1680 = vpack.c.b16 %v1526, %v1515
  %v1681 = vpack.c.b16 %v1527, %v1516
  %v1682 = vpack.c.b16 %v1528, %v1517
  %v1683 = vpack.c.b16 %v1529, %v1518
  %vm1824 = vcmask 523264
  %v1826 = vsel %vm1824, %v1540, 0
  %v1829 = vsel %vm1824, %v1551, 0
  %v1832 = vsel %vm1824, %v1562, 0
  %v1835 = vsel %vm1824, %v1573, 0
  %v1838 = vsel %vm1824, %v1584, 0
  %v1841 = vsel %vm1824, %v1595, 0
  %v1844 = vsel %vm1824, %v1606, 0
  %v1847 = vsel %vm1824, %v1617, 0
  %v1850 = vsel %vm1824, %v1628, 0
  %v1853 = vsel %vm1824, %v1639, 0
  %v1856 = vsel %vm1824, %v1650, 0
  %v1859 = vsel %vm1824, %v1661, 0
  %v1862 = vsel %vm1824, %v1672, 0
  %v1865 = vsel %vm1824, %v1683, 0
  %1867 = vmatprep.subr.bf16.mxu0 %v887
  %1868 = vmatpush1.bf16.msra.mxu0 %v886
  %1869 = vmatprep.subr.bf16.mxu0 %v889
  %1870 = vmatpush1.bf16.msra.mxu0 %v888
  %1871 = vmatprep.subr.bf16.mxu0 %v891
  %1872 = vmatpush1.bf16.msra.mxu0 %v890
  %1873 = vmatprep.subr.bf16.mxu0 %v893
  %1874 = vmatpush1.bf16.msra.mxu0 %v892
  %1875 = vmatprep.subr.bf16.mxu0 %v895
  %1876 = vmatpush1.bf16.msra.mxu0 %v894
  %1877 = vmatprep.subr.bf16.mxu0 %v897
  %1878 = vmatpush1.bf16.msra.mxu0 %v896
  %1879 = vmatprep.subr.bf16.mxu0 %v899
  %1880 = vmatpush1.bf16.msra.mxu0 %v898
  %1881 = vmatprep.subr.bf16.mxu0 %v901
  %1882 = vmatpush1.bf16.msra.mxu0 %v900
  %1883 = vmatprep.subr.bf16.mxu0 %v903
  %1884 = vmatpush1.bf16.msra.mxu0 %v902
  %1885 = vmatprep.subr.bf16.mxu0 %v905
  %1886 = vmatpush1.bf16.msra.mxu0 %v904
  %1887 = vmatprep.subr.bf16.mxu0 %v907
  %1888 = vmatpush1.bf16.msra.mxu0 %v906
  %1889 = vmatprep.subr.bf16.mxu0 %v909
  %1890 = vmatpush1.bf16.msra.mxu0 %v908
  %1891 = vmatprep.subr.bf16.mxu0 %v911
  %1892 = vmatpush1.bf16.msra.mxu0 %v910
  %1893 = vmatprep.subr.bf16.mxu0 %v913
  %1894 = vmatpush1.bf16.msra.mxu0 %v912
  %1895 = vmatprep.subr.bf16.mxu0 %v915
  %1896 = vmatpush1.bf16.msra.mxu0 %v914
  %1897 = vmatprep.subr.bf16.mxu0 %v917
  %1898 = vmatpush1.bf16.msra.mxu0 %v916
  %1899 = vmatprep.mubr.bf16.mxu0 %v1531
  %1900 = vmatmul.mubr.bf16.gmra.mrb[0].mxu0 %v1530
  %v1901 = vpop.f32.mrb[0].mxu0
  %v1902 = vadd.f32 0.0, %v1901
  %v1903 = vpop.f32.mrb[0].mxu0
  %v1904 = vadd.f32 0.0, %v1903
  %v1905 = vpop.f32.mrb[0].mxu0
  %v1906 = vadd.f32 0.0, %v1905
  %v1907 = vpop.f32.mrb[0].mxu0
  %v1908 = vadd.f32 0.0, %v1907
  %1909 = vmatprep.mubr.bf16.mxu0 %v1542
  %1910 = vmatmul.mubr.bf16.gmra.mrb[0].mxu0 %v1541
  %v1911 = vpop.f32.mrb[0].mxu0
  %v1912 = vadd.f32 0.0, %v1911
  %v1913 = vpop.f32.mrb[0].mxu0
  %v1914 = vadd.f32 0.0, %v1913
  %v1915 = vpop.f32.mrb[0].mxu0
  %v1916 = vadd.f32 0.0, %v1915
  %v1917 = vpop.f32.mrb[0].mxu0
  %v1918 = vadd.f32 0.0, %v1917
  %1919 = vmatprep.mubr.bf16.mxu0 %v1553
  %1920 = vmatmul.mubr.bf16.gmra.mrb[0].mxu0 %v1552
  %v1921 = vpop.f32.mrb[0].mxu0
  %v1922 = vadd.f32 0.0, %v1921
  %v1923 = vpop.f32.mrb[0].mxu0
  %v1924 = vadd.f32 0.0, %v1923
  %v1925 = vpop.f32.mrb[0].mxu0
  %v1926 = vadd.f32 0.0, %v1925
  %v1927 = vpop.f32.mrb[0].mxu0
  %v1928 = vadd.f32 0.0, %v1927
  %1929 = vmatprep.mubr.bf16.mxu0 %v1564
  %1930 = vmatmul.mubr.bf16.gmra.mrb[0].mxu0 %v1563
  %v1931 = vpop.f32.mrb[0].mxu0
  %v1932 = vadd.f32 0.0, %v1931
  %v1933 = vpop.f32.mrb[0].mxu0
  %v1934 = vadd.f32 0.0, %v1933
  %v1935 = vpop.f32.mrb[0].mxu0
  %v1936 = vadd.f32 0.0, %v1935
  %v1937 = vpop.f32.mrb[0].mxu0
  %v1938 = vadd.f32 0.0, %v1937
  %1939 = vmatprep.mubr.bf16.mxu0 %v1575
  %1940 = vmatmul.mubr.bf16.gmra.mrb[0].mxu0 %v1574
  %v1941 = vpop.f32.mrb[0].mxu0
  %v1942 = vadd.f32 0.0, %v1941
  %v1943 = vpop.f32.mrb[0].mxu0
  %v1944 = vadd.f32 0.0, %v1943
  %v1945 = vpop.f32.mrb[0].mxu0
  %v1946 = vadd.f32 0.0, %v1945
  %v1947 = vpop.f32.mrb[0].mxu0
  %v1948 = vadd.f32 0.0, %v1947
  %1949 = vmatprep.mubr.bf16.mxu0 %v1586
  %1950 = vmatmul.mubr.bf16.gmra.mrb[0].mxu0 %v1585
  %v1951 = vpop.f32.mrb[0].mxu0
  %v1952 = vadd.f32 0.0, %v1951
  %v1953 = vpop.f32.mrb[0].mxu0
  %v1954 = vadd.f32 0.0, %v1953
  %v1955 = vpop.f32.mrb[0].mxu0
  %v1956 = vadd.f32 0.0, %v1955
  %v1957 = vpop.f32.mrb[0].mxu0
  %v1958 = vadd.f32 0.0, %v1957
  %1959 = vmatprep.mubr.bf16.mxu0 %v1597
  %1960 = vmatmul.mubr.bf16.gmra.mrb[0].mxu0 %v1596
  %v1961 = vpop.f32.mrb[0].mxu0
  %v1962 = vadd.f32 0.0, %v1961
  %v1963 = vpop.f32.mrb[0].mxu0
  %v1964 = vadd.f32 0.0, %v1963
  %v1965 = vpop.f32.mrb[0].mxu0
  %v1966 = vadd.f32 0.0, %v1965
  %v1967 = vpop.f32.mrb[0].mxu0
  %v1968 = vadd.f32 0.0, %v1967
  %1969 = vmatprep.mubr.bf16.mxu0 %v1608
  %1970 = vmatmul.mubr.bf16.gmra.mrb[0].mxu0 %v1607
  %v1971 = vpop.f32.mrb[0].mxu0
  %v1972 = vadd.f32 0.0, %v1971
  %v1973 = vpop.f32.mrb[0].mxu0
  %v1974 = vadd.f32 0.0, %v1973
  %v1975 = vpop.f32.mrb[0].mxu0
  %v1976 = vadd.f32 0.0, %v1975
  %v1977 = vpop.f32.mrb[0].mxu0
  %v1978 = vadd.f32 0.0, %v1977
  %1979 = vmatprep.mubr.bf16.mxu0 %v1619
  %1980 = vmatmul.mubr.bf16.gmra.mrb[0].mxu0 %v1618
  %v1981 = vpop.f32.mrb[0].mxu0
  %v1982 = vadd.f32 0.0, %v1981
  %v1983 = vpop.f32.mrb[0].mxu0
  %v1984 = vadd.f32 0.0, %v1983
  %v1985 = vpop.f32.mrb[0].mxu0
  %v1986 = vadd.f32 0.0, %v1985
  %v1987 = vpop.f32.mrb[0].mxu0
  %v1988 = vadd.f32 0.0, %v1987
  %1989 = vmatprep.mubr.bf16.mxu0 %v1630
  %1990 = vmatmul.mubr.bf16.gmra.mrb[0].mxu0 %v1629
  %v1991 = vpop.f32.mrb[0].mxu0
  %v1992 = vadd.f32 0.0, %v1991
  %v1993 = vpop.f32.mrb[0].mxu0
  %v1994 = vadd.f32 0.0, %v1993
  %v1995 = vpop.f32.mrb[0].mxu0
  %v1996 = vadd.f32 0.0, %v1995
  %v1997 = vpop.f32.mrb[0].mxu0
  %v1998 = vadd.f32 0.0, %v1997
  %1999 = vmatprep.mubr.bf16.mxu0 %v1641
  %2000 = vmatmul.mubr.bf16.gmra.mrb[0].mxu0 %v1640
  %v2001 = vpop.f32.mrb[0].mxu0
  %v2002 = vadd.f32 0.0, %v2001
  %v2003 = vpop.f32.mrb[0].mxu0
  %v2004 = vadd.f32 0.0, %v2003
  %v2005 = vpop.f32.mrb[0].mxu0
  %v2006 = vadd.f32 0.0, %v2005
  %v2007 = vpop.f32.mrb[0].mxu0
  %v2008 = vadd.f32 0.0, %v2007
  %2009 = vmatprep.mubr.bf16.mxu0 %v1652
  %2010 = vmatmul.mubr.bf16.gmra.mrb[0].mxu0 %v1651
  %v2011 = vpop.f32.mrb[0].mxu0
  %v2012 = vadd.f32 0.0, %v2011
  %v2013 = vpop.f32.mrb[0].mxu0
  %v2014 = vadd.f32 0.0, %v2013
  %v2015 = vpop.f32.mrb[0].mxu0
  %v2016 = vadd.f32 0.0, %v2015
  %v2017 = vpop.f32.mrb[0].mxu0
  %v2018 = vadd.f32 0.0, %v2017
  %2019 = vmatprep.mubr.bf16.mxu0 %v1663
  %2020 = vmatmul.mubr.bf16.gmra.mrb[0].mxu0 %v1662
  %v2021 = vpop.f32.mrb[0].mxu0
  %v2022 = vadd.f32 0.0, %v2021
  %v2023 = vpop.f32.mrb[0].mxu0
  %v2024 = vadd.f32 0.0, %v2023
  %v2025 = vpop.f32.mrb[0].mxu0
  %v2026 = vadd.f32 0.0, %v2025
  %v2027 = vpop.f32.mrb[0].mxu0
  %v2028 = vadd.f32 0.0, %v2027
  %2029 = vmatprep.mubr.bf16.mxu0 %v1674
  %2030 = vmatmul.mubr.bf16.gmra.mrb[0].mxu0 %v1673
  %v2031 = vpop.f32.mrb[0].mxu0
  %v2032 = vadd.f32 0.0, %v2031
  %v2033 = vpop.f32.mrb[0].mxu0
  %v2034 = vadd.f32 0.0, %v2033
  %v2035 = vpop.f32.mrb[0].mxu0
  %v2036 = vadd.f32 0.0, %v2035
  %v2037 = vpop.f32.mrb[0].mxu0
  %v2038 = vadd.f32 0.0, %v2037
  %2039 = vdwg.mxu0
  %2040 = vmatprep.subr.bf16.mxu0 %v919
  %2041 = vmatpush1.bf16.msra.mxu0 %v918
  %2042 = vmatprep.subr.bf16.mxu0 %v921
  %2043 = vmatpush1.bf16.msra.mxu0 %v920
  %2044 = vmatprep.subr.bf16.mxu0 %v923
  %2045 = vmatpush1.bf16.msra.mxu0 %v922
  %2046 = vmatprep.subr.bf16.mxu0 %v925
  %2047 = vmatpush1.bf16.msra.mxu0 %v924
  %2048 = vmatprep.subr.bf16.mxu0 %v927
  %2049 = vmatpush1.bf16.msra.mxu0 %v926
  %2050 = vmatprep.subr.bf16.mxu0 %v929
  %2051 = vmatpush1.bf16.msra.mxu0 %v928
  %2052 = vmatprep.subr.bf16.mxu0 %v931
  %2053 = vmatpush1.bf16.msra.mxu0 %v930
  %2054 = vmatprep.subr.bf16.mxu0 %v933
  %2055 = vmatpush1.bf16.msra.mxu0 %v932
  %2056 = vmatprep.subr.bf16.mxu0 %v935
  %2057 = vmatpush1.bf16.msra.mxu0 %v934
  %2058 = vmatprep.subr.bf16.mxu0 %v937
  %2059 = vmatpush1.bf16.msra.mxu0 %v936
  %2060 = vmatprep.subr.bf16.mxu0 %v939
  %2061 = vmatpush1.bf16.msra.mxu0 %v938
  %2062 = vmatprep.subr.bf16.mxu0 %v941
  %2063 = vmatpush1.bf16.msra.mxu0 %v940
  %2064 = vmatprep.subr.bf16.mxu0 %v943
  %2065 = vmatpush1.bf16.msra.mxu0 %v942
  %2066 = vmatprep.subr.bf16.mxu0 %v945
  %2067 = vmatpush1.bf16.msra.mxu0 %v944
  %2068 = vmatprep.subr.bf16.mxu0 %v947
  %2069 = vmatpush1.bf16.msra.mxu0 %v946
  %2070 = vmatprep.subr.bf16.mxu0 %v949
  %2071 = vmatpush1.bf16.msra.mxu0 %v948
  %2072 = vmatprep.mubr.bf16.mxu0 %v1533
  %2073 = vmatmul.mubr.bf16.gmra.mrb[0].mxu0 %v1532
  %v2074 = vpop.f32.mrb[0].mxu0
  %v2075 = vadd.f32 %v1902, %v2074
  %v2076 = vpop.f32.mrb[0].mxu0
  %v2077 = vadd.f32 %v1904, %v2076
  %v2078 = vpop.f32.mrb[0].mxu0
  %v2079 = vadd.f32 %v1906, %v2078
  %v2080 = vpop.f32.mrb[0].mxu0
  %v2081 = vadd.f32 %v1908, %v2080
  %2082 = vmatprep.mubr.bf16.mxu0 %v1544
  %2083 = vmatmul.mubr.bf16.gmra.mrb[0].mxu0 %v1543
  %v2084 = vpop.f32.mrb[0].mxu0
  %v2085 = vadd.f32 %v1912, %v2084
  %v2086 = vpop.f32.mrb[0].mxu0
  %v2087 = vadd.f32 %v1914, %v2086
  %v2088 = vpop.f32.mrb[0].mxu0
  %v2089 = vadd.f32 %v1916, %v2088
  %v2090 = vpop.f32.mrb[0].mxu0
  %v2091 = vadd.f32 %v1918, %v2090
  %2092 = vmatprep.mubr.bf16.mxu0 %v1555
  %2093 = vmatmul.mubr.bf16.gmra.mrb[0].mxu0 %v1554
  %v2094 = vpop.f32.mrb[0].mxu0
  %v2095 = vadd.f32 %v1922, %v2094
  %v2096 = vpop.f32.mrb[0].mxu0
  %v2097 = vadd.f32 %v1924, %v2096
  %v2098 = vpop.f32.mrb[0].mxu0
  %v2099 = vadd.f32 %v1926, %v2098
  %v2100 = vpop.f32.mrb[0].mxu0
  %v2101 = vadd.f32 %v1928, %v2100
  %2102 = vmatprep.mubr.bf16.mxu0 %v1566
  %2103 = vmatmul.mubr.bf16.gmra.mrb[0].mxu0 %v1565
  %v2104 = vpop.f32.mrb[0].mxu0
  %v2105 = vadd.f32 %v1932, %v2104
  %v2106 = vpop.f32.mrb[0].mxu0
  %v2107 = vadd.f32 %v1934, %v2106
  %v2108 = vpop.f32.mrb[0].mxu0
  %v2109 = vadd.f32 %v1936, %v2108
  %v2110 = vpop.f32.mrb[0].mxu0
  %v2111 = vadd.f32 %v1938, %v2110
  %2112 = vmatprep.mubr.bf16.mxu0 %v1577
  %2113 = vmatmul.mubr.bf16.gmra.mrb[0].mxu0 %v1576
  %v2114 = vpop.f32.mrb[0].mxu0
  %v2115 = vadd.f32 %v1942, %v2114
  %v2116 = vpop.f32.mrb[0].mxu0
  %v2117 = vadd.f32 %v1944, %v2116
  %v2118 = vpop.f32.mrb[0].mxu0
  %v2119 = vadd.f32 %v1946, %v2118
  %v2120 = vpop.f32.mrb[0].mxu0
  %v2121 = vadd.f32 %v1948, %v2120
  %2122 = vmatprep.mubr.bf16.mxu0 %v1588
  %2123 = vmatmul.mubr.bf16.gmra.mrb[0].mxu0 %v1587
  %v2124 = vpop.f32.mrb[0].mxu0
  %v2125 = vadd.f32 %v1952, %v2124
  %v2126 = vpop.f32.mrb[0].mxu0
  %v2127 = vadd.f32 %v1954, %v2126
  %v2128 = vpop.f32.mrb[0].mxu0
  %v2129 = vadd.f32 %v1956, %v2128
  %v2130 = vpop.f32.mrb[0].mxu0
  %v2131 = vadd.f32 %v1958, %v2130
  %2132 = vmatprep.mubr.bf16.mxu0 %v1599
  %2133 = vmatmul.mubr.bf16.gmra.mrb[0].mxu0 %v1598
  %v2134 = vpop.f32.mrb[0].mxu0
  %v2135 = vadd.f32 %v1962, %v2134
  %v2136 = vpop.f32.mrb[0].mxu0
  %v2137 = vadd.f32 %v1964, %v2136
  %v2138 = vpop.f32.mrb[0].mxu0
  %v2139 = vadd.f32 %v1966, %v2138
  %v2140 = vpop.f32.mrb[0].mxu0
  %v2141 = vadd.f32 %v1968, %v2140
  %2142 = vmatprep.mubr.bf16.mxu0 %v1610
  %2143 = vmatmul.mubr.bf16.gmra.mrb[0].mxu0 %v1609
  %v2144 = vpop.f32.mrb[0].mxu0
  %v2145 = vadd.f32 %v1972, %v2144
  %v2146 = vpop.f32.mrb[0].mxu0
  %v2147 = vadd.f32 %v1974, %v2146
  %v2148 = vpop.f32.mrb[0].mxu0
  %v2149 = vadd.f32 %v1976, %v2148
  %v2150 = vpop.f32.mrb[0].mxu0
  %v2151 = vadd.f32 %v1978, %v2150
  %2152 = vmatprep.mubr.bf16.mxu0 %v1621
  %2153 = vmatmul.mubr.bf16.gmra.mrb[0].mxu0 %v1620
  %v2154 = vpop.f32.mrb[0].mxu0
  %v2155 = vadd.f32 %v1982, %v2154
  %v2156 = vpop.f32.mrb[0].mxu0
  %v2157 = vadd.f32 %v1984, %v2156
  %v2158 = vpop.f32.mrb[0].mxu0
  %v2159 = vadd.f32 %v1986, %v2158
  %v2160 = vpop.f32.mrb[0].mxu0
  %v2161 = vadd.f32 %v1988, %v2160
  %2162 = vmatprep.mubr.bf16.mxu0 %v1632
  %2163 = vmatmul.mubr.bf16.gmra.mrb[0].mxu0 %v1631
  %v2164 = vpop.f32.mrb[0].mxu0
  %v2165 = vadd.f32 %v1992, %v2164
  %v2166 = vpop.f32.mrb[0].mxu0
  %v2167 = vadd.f32 %v1994, %v2166
  %v2168 = vpop.f32.mrb[0].mxu0
  %v2169 = vadd.f32 %v1996, %v2168
  %v2170 = vpop.f32.mrb[0].mxu0
  %v2171 = vadd.f32 %v1998, %v2170
  %2172 = vmatprep.mubr.bf16.mxu0 %v1643
  %2173 = vmatmul.mubr.bf16.gmra.mrb[0].mxu0 %v1642
  %v2174 = vpop.f32.mrb[0].mxu0
  %v2175 = vadd.f32 %v2002, %v2174
  %v2176 = vpop.f32.mrb[0].mxu0
  %v2177 = vadd.f32 %v2004, %v2176
  %v2178 = vpop.f32.mrb[0].mxu0
  %v2179 = vadd.f32 %v2006, %v2178
  %v2180 = vpop.f32.mrb[0].mxu0
  %v2181 = vadd.f32 %v2008, %v2180
  %2182 = vmatprep.mubr.bf16.mxu0 %v1654
  %2183 = vmatmul.mubr.bf16.gmra.mrb[0].mxu0 %v1653
  %v2184 = vpop.f32.mrb[0].mxu0
  %v2185 = vadd.f32 %v2012, %v2184
  %v2186 = vpop.f32.mrb[0].mxu0
  %v2187 = vadd.f32 %v2014, %v2186
  %v2188 = vpop.f32.mrb[0].mxu0
  %v2189 = vadd.f32 %v2016, %v2188
  %v2190 = vpop.f32.mrb[0].mxu0
  %v2191 = vadd.f32 %v2018, %v2190
  %2192 = vmatprep.mubr.bf16.mxu0 %v1665
  %2193 = vmatmul.mubr.bf16.gmra.mrb[0].mxu0 %v1664
  %v2194 = vpop.f32.mrb[0].mxu0
  %v2195 = vadd.f32 %v2022, %v2194
  %v2196 = vpop.f32.mrb[0].mxu0
  %v2197 = vadd.f32 %v2024, %v2196
  %v2198 = vpop.f32.mrb[0].mxu0
  %v2199 = vadd.f32 %v2026, %v2198
  %v2200 = vpop.f32.mrb[0].mxu0
  %v2201 = vadd.f32 %v2028, %v2200
  %2202 = vmatprep.mubr.bf16.mxu0 %v1676
  %2203 = vmatmul.mubr.bf16.gmra.mrb[0].mxu0 %v1675
  %v2204 = vpop.f32.mrb[0].mxu0
  %v2205 = vadd.f32 %v2032, %v2204
  %v2206 = vpop.f32.mrb[0].mxu0
  %v2207 = vadd.f32 %v2034, %v2206
  %v2208 = vpop.f32.mrb[0].mxu0
  %v2209 = vadd.f32 %v2036, %v2208
  %v2210 = vpop.f32.mrb[0].mxu0
  %v2211 = vadd.f32 %v2038, %v2210
  %2212 = vdwg.mxu0
  %2213 = vmatprep.subr.bf16.mxu0 %v951
  %2214 = vmatpush1.bf16.msra.mxu0 %v950
  %2215 = vmatprep.subr.bf16.mxu0 %v953
  %2216 = vmatpush1.bf16.msra.mxu0 %v952
  %2217 = vmatprep.subr.bf16.mxu0 %v955
  %2218 = vmatpush1.bf16.msra.mxu0 %v954
  %2219 = vmatprep.subr.bf16.mxu0 %v957
  %2220 = vmatpush1.bf16.msra.mxu0 %v956
  %2221 = vmatprep.subr.bf16.mxu0 %v959
  %2222 = vmatpush1.bf16.msra.mxu0 %v958
  %2223 = vmatprep.subr.bf16.mxu0 %v961
  %2224 = vmatpush1.bf16.msra.mxu0 %v960
  %2225 = vmatprep.subr.bf16.mxu0 %v963
  %2226 = vmatpush1.bf16.msra.mxu0 %v962
  %2227 = vmatprep.subr.bf16.mxu0 %v965
  %2228 = vmatpush1.bf16.msra.mxu0 %v964
  %2229 = vmatprep.subr.bf16.mxu0 %v967
  %2230 = vmatpush1.bf16.msra.mxu0 %v966
  %2231 = vmatprep.subr.bf16.mxu0 %v969
  %2232 = vmatpush1.bf16.msra.mxu0 %v968
  %2233 = vmatprep.subr.bf16.mxu0 %v971
  %2234 = vmatpush1.bf16.msra.mxu0 %v970
  %2235 = vmatprep.subr.bf16.mxu0 %v973
  %2236 = vmatpush1.bf16.msra.mxu0 %v972
  %2237 = vmatprep.subr.bf16.mxu0 %v975
  %2238 = vmatpush1.bf16.msra.mxu0 %v974
  %2239 = vmatprep.subr.bf16.mxu0 %v977
  %2240 = vmatpush1.bf16.msra.mxu0 %v976
  %2241 = vmatprep.subr.bf16.mxu0 %v979
  %2242 = vmatpush1.bf16.msra.mxu0 %v978
  %2243 = vmatprep.subr.bf16.mxu0 %v981
  %2244 = vmatpush1.bf16.msra.mxu0 %v980
  %2245 = vmatprep.mubr.bf16.mxu0 %v1535
  %2246 = vmatmul.mubr.bf16.gmra.mrb[0].mxu0 %v1534
  %v2247 = vpop.f32.mrb[0].mxu0
  %v2248 = vadd.f32 %v2075, %v2247
  %v2249 = vpop.f32.mrb[0].mxu0
  %v2250 = vadd.f32 %v2077, %v2249
  %v2251 = vpop.f32.mrb[0].mxu0
  %v2252 = vadd.f32 %v2079, %v2251
  %v2253 = vpop.f32.mrb[0].mxu0
  %v2254 = vadd.f32 %v2081, %v2253
  %2255 = vmatprep.mubr.bf16.mxu0 %v1546
  %2256 = vmatmul.mubr.bf16.gmra.mrb[0].mxu0 %v1545
  %v2257 = vpop.f32.mrb[0].mxu0
  %v2258 = vadd.f32 %v2085, %v2257
  %v2259 = vpop.f32.mrb[0].mxu0
  %v2260 = vadd.f32 %v2087, %v2259
  %v2261 = vpop.f32.mrb[0].mxu0
  %v2262 = vadd.f32 %v2089, %v2261
  %v2263 = vpop.f32.mrb[0].mxu0
  %v2264 = vadd.f32 %v2091, %v2263
  %2265 = vmatprep.mubr.bf16.mxu0 %v1557
  %2266 = vmatmul.mubr.bf16.gmra.mrb[0].mxu0 %v1556
  %v2267 = vpop.f32.mrb[0].mxu0
  %v2268 = vadd.f32 %v2095, %v2267
  %v2269 = vpop.f32.mrb[0].mxu0
  %v2270 = vadd.f32 %v2097, %v2269
  %v2271 = vpop.f32.mrb[0].mxu0
  %v2272 = vadd.f32 %v2099, %v2271
  %v2273 = vpop.f32.mrb[0].mxu0
  %v2274 = vadd.f32 %v2101, %v2273
  %2275 = vmatprep.mubr.bf16.mxu0 %v1568
  %2276 = vmatmul.mubr.bf16.gmra.mrb[0].mxu0 %v1567
  %v2277 = vpop.f32.mrb[0].mxu0
  %v2278 = vadd.f32 %v2105, %v2277
  %v2279 = vpop.f32.mrb[0].mxu0
  %v2280 = vadd.f32 %v2107, %v2279
  %v2281 = vpop.f32.mrb[0].mxu0
  %v2282 = vadd.f32 %v2109, %v2281
  %v2283 = vpop.f32.mrb[0].mxu0
  %v2284 = vadd.f32 %v2111, %v2283
  %2285 = vmatprep.mubr.bf16.mxu0 %v1579
  %2286 = vmatmul.mubr.bf16.gmra.mrb[0].mxu0 %v1578
  %v2287 = vpop.f32.mrb[0].mxu0
  %v2288 = vadd.f32 %v2115, %v2287
  %v2289 = vpop.f32.mrb[0].mxu0
  %v2290 = vadd.f32 %v2117, %v2289
  %v2291 = vpop.f32.mrb[0].mxu0
  %v2292 = vadd.f32 %v2119, %v2291
  %v2293 = vpop.f32.mrb[0].mxu0
  %v2294 = vadd.f32 %v2121, %v2293
  %2295 = vmatprep.mubr.bf16.mxu0 %v1590
  %2296 = vmatmul.mubr.bf16.gmra.mrb[0].mxu0 %v1589
  %v2297 = vpop.f32.mrb[0].mxu0
  %v2298 = vadd.f32 %v2125, %v2297
  %v2299 = vpop.f32.mrb[0].mxu0
  %v2300 = vadd.f32 %v2127, %v2299
  %v2301 = vpop.f32.mrb[0].mxu0
  %v2302 = vadd.f32 %v2129, %v2301
  %v2303 = vpop.f32.mrb[0].mxu0
  %v2304 = vadd.f32 %v2131, %v2303
  %2305 = vmatprep.mubr.bf16.mxu0 %v1601
  %2306 = vmatmul.mubr.bf16.gmra.mrb[0].mxu0 %v1600
  %v2307 = vpop.f32.mrb[0].mxu0
  %v2308 = vadd.f32 %v2135, %v2307
  %v2309 = vpop.f32.mrb[0].mxu0
  %v2310 = vadd.f32 %v2137, %v2309
  %v2311 = vpop.f32.mrb[0].mxu0
  %v2312 = vadd.f32 %v2139, %v2311
  %v2313 = vpop.f32.mrb[0].mxu0
  %v2314 = vadd.f32 %v2141, %v2313
  %2315 = vmatprep.mubr.bf16.mxu0 %v1612
  %2316 = vmatmul.mubr.bf16.gmra.mrb[0].mxu0 %v1611
  %v2317 = vpop.f32.mrb[0].mxu0
  %v2318 = vadd.f32 %v2145, %v2317
  %v2319 = vpop.f32.mrb[0].mxu0
  %v2320 = vadd.f32 %v2147, %v2319
  %v2321 = vpop.f32.mrb[0].mxu0
  %v2322 = vadd.f32 %v2149, %v2321
  %v2323 = vpop.f32.mrb[0].mxu0
  %v2324 = vadd.f32 %v2151, %v2323
  %2325 = vmatprep.mubr.bf16.mxu0 %v1623
  %2326 = vmatmul.mubr.bf16.gmra.mrb[0].mxu0 %v1622
  %v2327 = vpop.f32.mrb[0].mxu0
  %v2328 = vadd.f32 %v2155, %v2327
  %v2329 = vpop.f32.mrb[0].mxu0
  %v2330 = vadd.f32 %v2157, %v2329
  %v2331 = vpop.f32.mrb[0].mxu0
  %v2332 = vadd.f32 %v2159, %v2331
  %v2333 = vpop.f32.mrb[0].mxu0
  %v2334 = vadd.f32 %v2161, %v2333
  %2335 = vmatprep.mubr.bf16.mxu0 %v1634
  %2336 = vmatmul.mubr.bf16.gmra.mrb[0].mxu0 %v1633
  %v2337 = vpop.f32.mrb[0].mxu0
  %v2338 = vadd.f32 %v2165, %v2337
  %v2339 = vpop.f32.mrb[0].mxu0
  %v2340 = vadd.f32 %v2167, %v2339
  %v2341 = vpop.f32.mrb[0].mxu0
  %v2342 = vadd.f32 %v2169, %v2341
  %v2343 = vpop.f32.mrb[0].mxu0
  %v2344 = vadd.f32 %v2171, %v2343
  %2345 = vmatprep.mubr.bf16.mxu0 %v1645
  %2346 = vmatmul.mubr.bf16.gmra.mrb[0].mxu0 %v1644
  %v2347 = vpop.f32.mrb[0].mxu0
  %v2348 = vadd.f32 %v2175, %v2347
  %v2349 = vpop.f32.mrb[0].mxu0
  %v2350 = vadd.f32 %v2177, %v2349
  %v2351 = vpop.f32.mrb[0].mxu0
  %v2352 = vadd.f32 %v2179, %v2351
  %v2353 = vpop.f32.mrb[0].mxu0
  %v2354 = vadd.f32 %v2181, %v2353
  %2355 = vmatprep.mubr.bf16.mxu0 %v1656
  %2356 = vmatmul.mubr.bf16.gmra.mrb[0].mxu0 %v1655
  %v2357 = vpop.f32.mrb[0].mxu0
  %v2358 = vadd.f32 %v2185, %v2357
  %v2359 = vpop.f32.mrb[0].mxu0
  %v2360 = vadd.f32 %v2187, %v2359
  %v2361 = vpop.f32.mrb[0].mxu0
  %v2362 = vadd.f32 %v2189, %v2361
  %v2363 = vpop.f32.mrb[0].mxu0
  %v2364 = vadd.f32 %v2191, %v2363
  %2365 = vmatprep.mubr.bf16.mxu0 %v1667
  %2366 = vmatmul.mubr.bf16.gmra.mrb[0].mxu0 %v1666
  %v2367 = vpop.f32.mrb[0].mxu0
  %v2368 = vadd.f32 %v2195, %v2367
  %v2369 = vpop.f32.mrb[0].mxu0
  %v2370 = vadd.f32 %v2197, %v2369
  %v2371 = vpop.f32.mrb[0].mxu0
  %v2372 = vadd.f32 %v2199, %v2371
  %v2373 = vpop.f32.mrb[0].mxu0
  %v2374 = vadd.f32 %v2201, %v2373
  %2375 = vmatprep.mubr.bf16.mxu0 %v1678
  %2376 = vmatmul.mubr.bf16.gmra.mrb[0].mxu0 %v1677
  %v2377 = vpop.f32.mrb[0].mxu0
  %v2378 = vadd.f32 %v2205, %v2377
  %v2379 = vpop.f32.mrb[0].mxu0
  %v2380 = vadd.f32 %v2207, %v2379
  %v2381 = vpop.f32.mrb[0].mxu0
  %v2382 = vadd.f32 %v2209, %v2381
  %v2383 = vpop.f32.mrb[0].mxu0
  %v2384 = vadd.f32 %v2211, %v2383
  %2385 = vdwg.mxu0
  %2386 = vmatprep.subr.bf16.mxu0 %v983
  %2387 = vmatpush1.bf16.msra.mxu0 %v982
  %2388 = vmatprep.subr.bf16.mxu0 %v985
  %2389 = vmatpush1.bf16.msra.mxu0 %v984
  %2390 = vmatprep.subr.bf16.mxu0 %v987
  %2391 = vmatpush1.bf16.msra.mxu0 %v986
  %2392 = vmatprep.subr.bf16.mxu0 %v989
  %2393 = vmatpush1.bf16.msra.mxu0 %v988
  %2394 = vmatprep.subr.bf16.mxu0 %v991
  %2395 = vmatpush1.bf16.msra.mxu0 %v990
  %2396 = vmatprep.subr.bf16.mxu0 %v993
  %2397 = vmatpush1.bf16.msra.mxu0 %v992
  %2398 = vmatprep.subr.bf16.mxu0 %v995
  %2399 = vmatpush1.bf16.msra.mxu0 %v994
  %2400 = vmatprep.subr.bf16.mxu0 %v997
  %2401 = vmatpush1.bf16.msra.mxu0 %v996
  %2402 = vmatprep.subr.bf16.mxu0 %v999
  %2403 = vmatpush1.bf16.msra.mxu0 %v998
  %2404 = vmatprep.subr.bf16.mxu0 %v1001
  %2405 = vmatpush1.bf16.msra.mxu0 %v1000
  %2406 = vmatprep.subr.bf16.mxu0 %v1003
  %2407 = vmatpush1.bf16.msra.mxu0 %v1002
  %2408 = vmatprep.subr.bf16.mxu0 %v1005
  %2409 = vmatpush1.bf16.msra.mxu0 %v1004
  %2410 = vmatprep.subr.bf16.mxu0 %v1007
  %2411 = vmatpush1.bf16.msra.mxu0 %v1006
  %2412 = vmatprep.subr.bf16.mxu0 %v1009
  %2413 = vmatpush1.bf16.msra.mxu0 %v1008
  %2414 = vmatprep.subr.bf16.mxu0 %v1011
  %2415 = vmatpush1.bf16.msra.mxu0 %v1010
  %2416 = vmatprep.subr.bf16.mxu0 %v1013
  %2417 = vmatpush1.bf16.msra.mxu0 %v1012
  %2418 = vmatprep.mubr.bf16.mxu0 %v1537
  %2419 = vmatmul.mubr.bf16.gmra.mrb[0].mxu0 %v1536
  %v2420 = vpop.f32.mrb[0].mxu0
  %v2421 = vadd.f32 %v2248, %v2420
  %v2422 = vpop.f32.mrb[0].mxu0
  %v2423 = vadd.f32 %v2250, %v2422
  %v2424 = vpop.f32.mrb[0].mxu0
  %v2425 = vadd.f32 %v2252, %v2424
  %v2426 = vpop.f32.mrb[0].mxu0
  %v2427 = vadd.f32 %v2254, %v2426
  %2428 = vmatprep.mubr.bf16.mxu0 %v1548
  %2429 = vmatmul.mubr.bf16.gmra.mrb[0].mxu0 %v1547
  %v2430 = vpop.f32.mrb[0].mxu0
  %v2431 = vadd.f32 %v2258, %v2430
  %v2432 = vpop.f32.mrb[0].mxu0
  %v2433 = vadd.f32 %v2260, %v2432
  %v2434 = vpop.f32.mrb[0].mxu0
  %v2435 = vadd.f32 %v2262, %v2434
  %v2436 = vpop.f32.mrb[0].mxu0
  %v2437 = vadd.f32 %v2264, %v2436
  %2438 = vmatprep.mubr.bf16.mxu0 %v1559
  %2439 = vmatmul.mubr.bf16.gmra.mrb[0].mxu0 %v1558
  %v2440 = vpop.f32.mrb[0].mxu0
  %v2441 = vadd.f32 %v2268, %v2440
  %v2442 = vpop.f32.mrb[0].mxu0
  %v2443 = vadd.f32 %v2270, %v2442
  %v2444 = vpop.f32.mrb[0].mxu0
  %v2445 = vadd.f32 %v2272, %v2444
  %v2446 = vpop.f32.mrb[0].mxu0
  %v2447 = vadd.f32 %v2274, %v2446
  %2448 = vmatprep.mubr.bf16.mxu0 %v1570
  %2449 = vmatmul.mubr.bf16.gmra.mrb[0].mxu0 %v1569
  %v2450 = vpop.f32.mrb[0].mxu0
  %v2451 = vadd.f32 %v2278, %v2450
  %v2452 = vpop.f32.mrb[0].mxu0
  %v2453 = vadd.f32 %v2280, %v2452
  %v2454 = vpop.f32.mrb[0].mxu0
  %v2455 = vadd.f32 %v2282, %v2454
  %v2456 = vpop.f32.mrb[0].mxu0
  %v2457 = vadd.f32 %v2284, %v2456
  %2458 = vmatprep.mubr.bf16.mxu0 %v1581
  %2459 = vmatmul.mubr.bf16.gmra.mrb[0].mxu0 %v1580
  %v2460 = vpop.f32.mrb[0].mxu0
  %v2461 = vadd.f32 %v2288, %v2460
  %v2462 = vpop.f32.mrb[0].mxu0
  %v2463 = vadd.f32 %v2290, %v2462
  %v2464 = vpop.f32.mrb[0].mxu0
  %v2465 = vadd.f32 %v2292, %v2464
  %v2466 = vpop.f32.mrb[0].mxu0
  %v2467 = vadd.f32 %v2294, %v2466
  %2468 = vmatprep.mubr.bf16.mxu0 %v1592
  %2469 = vmatmul.mubr.bf16.gmra.mrb[0].mxu0 %v1591
  %v2470 = vpop.f32.mrb[0].mxu0
  %v2471 = vadd.f32 %v2298, %v2470
  %v2472 = vpop.f32.mrb[0].mxu0
  %v2473 = vadd.f32 %v2300, %v2472
  %v2474 = vpop.f32.mrb[0].mxu0
  %v2475 = vadd.f32 %v2302, %v2474
  %v2476 = vpop.f32.mrb[0].mxu0
  %v2477 = vadd.f32 %v2304, %v2476
  %2478 = vmatprep.mubr.bf16.mxu0 %v1603
  %2479 = vmatmul.mubr.bf16.gmra.mrb[0].mxu0 %v1602
  %v2480 = vpop.f32.mrb[0].mxu0
  %v2481 = vadd.f32 %v2308, %v2480
  %v2482 = vpop.f32.mrb[0].mxu0
  %v2483 = vadd.f32 %v2310, %v2482
  %v2484 = vpop.f32.mrb[0].mxu0
  %v2485 = vadd.f32 %v2312, %v2484
  %v2486 = vpop.f32.mrb[0].mxu0
  %v2487 = vadd.f32 %v2314, %v2486
  %2488 = vmatprep.mubr.bf16.mxu0 %v1614
  %2489 = vmatmul.mubr.bf16.gmra.mrb[0].mxu0 %v1613
  %v2490 = vpop.f32.mrb[0].mxu0
  %v2491 = vadd.f32 %v2318, %v2490
  %v2492 = vpop.f32.mrb[0].mxu0
  %v2493 = vadd.f32 %v2320, %v2492
  %v2494 = vpop.f32.mrb[0].mxu0
  %v2495 = vadd.f32 %v2322, %v2494
  %v2496 = vpop.f32.mrb[0].mxu0
  %v2497 = vadd.f32 %v2324, %v2496
  %2498 = vmatprep.mubr.bf16.mxu0 %v1625
  %2499 = vmatmul.mubr.bf16.gmra.mrb[0].mxu0 %v1624
  %v2500 = vpop.f32.mrb[0].mxu0
  %v2501 = vadd.f32 %v2328, %v2500
  %v2502 = vpop.f32.mrb[0].mxu0
  %v2503 = vadd.f32 %v2330, %v2502
  %v2504 = vpop.f32.mrb[0].mxu0
  %v2505 = vadd.f32 %v2332, %v2504
  %v2506 = vpop.f32.mrb[0].mxu0
  %v2507 = vadd.f32 %v2334, %v2506
  %2508 = vmatprep.mubr.bf16.mxu0 %v1636
  %2509 = vmatmul.mubr.bf16.gmra.mrb[0].mxu0 %v1635
  %v2510 = vpop.f32.mrb[0].mxu0
  %v2511 = vadd.f32 %v2338, %v2510
  %v2512 = vpop.f32.mrb[0].mxu0
  %v2513 = vadd.f32 %v2340, %v2512
  %v2514 = vpop.f32.mrb[0].mxu0
  %v2515 = vadd.f32 %v2342, %v2514
  %v2516 = vpop.f32.mrb[0].mxu0
  %v2517 = vadd.f32 %v2344, %v2516
  %2518 = vmatprep.mubr.bf16.mxu0 %v1647
  %2519 = vmatmul.mubr.bf16.gmra.mrb[0].mxu0 %v1646
  %v2520 = vpop.f32.mrb[0].mxu0
  %v2521 = vadd.f32 %v2348, %v2520
  %v2522 = vpop.f32.mrb[0].mxu0
  %v2523 = vadd.f32 %v2350, %v2522
  %v2524 = vpop.f32.mrb[0].mxu0
  %v2525 = vadd.f32 %v2352, %v2524
  %v2526 = vpop.f32.mrb[0].mxu0
  %v2527 = vadd.f32 %v2354, %v2526
  %2528 = vmatprep.mubr.bf16.mxu0 %v1658
  %2529 = vmatmul.mubr.bf16.gmra.mrb[0].mxu0 %v1657
  %v2530 = vpop.f32.mrb[0].mxu0
  %v2531 = vadd.f32 %v2358, %v2530
  %v2532 = vpop.f32.mrb[0].mxu0
  %v2533 = vadd.f32 %v2360, %v2532
  %v2534 = vpop.f32.mrb[0].mxu0
  %v2535 = vadd.f32 %v2362, %v2534
  %v2536 = vpop.f32.mrb[0].mxu0
  %v2537 = vadd.f32 %v2364, %v2536
  %2538 = vmatprep.mubr.bf16.mxu0 %v1669
  %2539 = vmatmul.mubr.bf16.gmra.mrb[0].mxu0 %v1668
  %v2540 = vpop.f32.mrb[0].mxu0
  %v2541 = vadd.f32 %v2368, %v2540
  %v2542 = vpop.f32.mrb[0].mxu0
  %v2543 = vadd.f32 %v2370, %v2542
  %v2544 = vpop.f32.mrb[0].mxu0
  %v2545 = vadd.f32 %v2372, %v2544
  %v2546 = vpop.f32.mrb[0].mxu0
  %v2547 = vadd.f32 %v2374, %v2546
  %2548 = vmatprep.mubr.bf16.mxu0 %v1680
  %2549 = vmatmul.mubr.bf16.gmra.mrb[0].mxu0 %v1679
  %v2550 = vpop.f32.mrb[0].mxu0
  %v2551 = vadd.f32 %v2378, %v2550
  %v2552 = vpop.f32.mrb[0].mxu0
  %v2553 = vadd.f32 %v2380, %v2552
  %v2554 = vpop.f32.mrb[0].mxu0
  %v2555 = vadd.f32 %v2382, %v2554
  %v2556 = vpop.f32.mrb[0].mxu0
  %v2557 = vadd.f32 %v2384, %v2556
  %2558 = vdwg.mxu0
  %2559 = vmatprep.subr.bf16.mxu0 %v1015
  %2560 = vmatpush1.bf16.msra.mxu0 %v1014
  %2561 = vmatprep.subr.bf16.mxu0 %v1017
  %2562 = vmatpush1.bf16.msra.mxu0 %v1016
  %2563 = vmatprep.subr.bf16.mxu0 %v1019
  %2564 = vmatpush1.bf16.msra.mxu0 %v1018
  %2565 = vmatprep.subr.bf16.mxu0 %v1021
  %2566 = vmatpush1.bf16.msra.mxu0 %v1020
  %2567 = vmatprep.subr.bf16.mxu0 %v1023
  %2568 = vmatpush1.bf16.msra.mxu0 %v1022
  %2569 = vmatprep.subr.bf16.mxu0 %v1025
  %2570 = vmatpush1.bf16.msra.mxu0 %v1024
  %2571 = vmatprep.subr.bf16.mxu0 %v1027
  %2572 = vmatpush1.bf16.msra.mxu0 %v1026
  %2573 = vmatprep.subr.bf16.mxu0 %v1029
  %2574 = vmatpush1.bf16.msra.mxu0 %v1028
  %2575 = vmatprep.subr.bf16.mxu0 %v1031
  %2576 = vmatpush1.bf16.msra.mxu0 %v1030
  %2577 = vmatprep.subr.bf16.mxu0 %v1033
  %2578 = vmatpush1.bf16.msra.mxu0 %v1032
  %2579 = vmatprep.subr.bf16.mxu0 %v1035
  %2580 = vmatpush1.bf16.msra.mxu0 %v1034
  %2581 = vmatprep.subr.bf16.mxu0 %v1037
  %2582 = vmatpush1.bf16.msra.mxu0 %v1036
  %2583 = vmatprep.subr.bf16.mxu0 %v1039
  %2584 = vmatpush1.bf16.msra.mxu0 %v1038
  %2585 = vmatprep.subr.bf16.mxu0 %v1041
  %2586 = vmatpush1.bf16.msra.mxu0 %v1040
  %2587 = vmatprep.subr.bf16.mxu0 %v1043
  %2588 = vmatpush1.bf16.msra.mxu0 %v1042
  %2589 = vmatprep.subr.bf16.mxu0 %v1045
  %2590 = vmatpush1.bf16.msra.mxu0 %v1044
  %2591 = vmatprep.mubr.bf16.mxu0 %v1539
  %2592 = vmatmul.mubr.bf16.gmra.mrb[0].mxu0 %v1538
  %v2593 = vpop.f32.mrb[0].mxu0
  %v2594 = vadd.f32 %v2421, %v2593
  %v2595 = vpop.f32.mrb[0].mxu0
  %v2596 = vadd.f32 %v2423, %v2595
  %v2597 = vpop.f32.mrb[0].mxu0
  %v2598 = vadd.f32 %v2425, %v2597
  %v2599 = vpop.f32.mrb[0].mxu0
  %v2600 = vadd.f32 %v2427, %v2599
  %2601 = vmatprep.mubr.bf16.mxu0 %v1550
  %2602 = vmatmul.mubr.bf16.gmra.mrb[0].mxu0 %v1549
  %v2603 = vpop.f32.mrb[0].mxu0
  %v2604 = vadd.f32 %v2431, %v2603
  %v2605 = vpop.f32.mrb[0].mxu0
  %v2606 = vadd.f32 %v2433, %v2605
  %v2607 = vpop.f32.mrb[0].mxu0
  %v2608 = vadd.f32 %v2435, %v2607
  %v2609 = vpop.f32.mrb[0].mxu0
  %v2610 = vadd.f32 %v2437, %v2609
  %2611 = vmatprep.mubr.bf16.mxu0 %v1561
  %2612 = vmatmul.mubr.bf16.gmra.mrb[0].mxu0 %v1560
  %v2613 = vpop.f32.mrb[0].mxu0
  %v2614 = vadd.f32 %v2441, %v2613
  %v2615 = vpop.f32.mrb[0].mxu0
  %v2616 = vadd.f32 %v2443, %v2615
  %v2617 = vpop.f32.mrb[0].mxu0
  %v2618 = vadd.f32 %v2445, %v2617
  %v2619 = vpop.f32.mrb[0].mxu0
  %v2620 = vadd.f32 %v2447, %v2619
  %2621 = vmatprep.mubr.bf16.mxu0 %v1572
  %2622 = vmatmul.mubr.bf16.gmra.mrb[0].mxu0 %v1571
  %v2623 = vpop.f32.mrb[0].mxu0
  %v2624 = vadd.f32 %v2451, %v2623
  %v2625 = vpop.f32.mrb[0].mxu0
  %v2626 = vadd.f32 %v2453, %v2625
  %v2627 = vpop.f32.mrb[0].mxu0
  %v2628 = vadd.f32 %v2455, %v2627
  %v2629 = vpop.f32.mrb[0].mxu0
  %v2630 = vadd.f32 %v2457, %v2629
  %2631 = vmatprep.mubr.bf16.mxu0 %v1583
  %2632 = vmatmul.mubr.bf16.gmra.mrb[0].mxu0 %v1582
  %v2633 = vpop.f32.mrb[0].mxu0
  %v2634 = vadd.f32 %v2461, %v2633
  %v2635 = vpop.f32.mrb[0].mxu0
  %v2636 = vadd.f32 %v2463, %v2635
  %v2637 = vpop.f32.mrb[0].mxu0
  %v2638 = vadd.f32 %v2465, %v2637
  %v2639 = vpop.f32.mrb[0].mxu0
  %v2640 = vadd.f32 %v2467, %v2639
  %2641 = vmatprep.mubr.bf16.mxu0 %v1594
  %2642 = vmatmul.mubr.bf16.gmra.mrb[0].mxu0 %v1593
  %v2643 = vpop.f32.mrb[0].mxu0
  %v2644 = vadd.f32 %v2471, %v2643
  %v2645 = vpop.f32.mrb[0].mxu0
  %v2646 = vadd.f32 %v2473, %v2645
  %v2647 = vpop.f32.mrb[0].mxu0
  %v2648 = vadd.f32 %v2475, %v2647
  %v2649 = vpop.f32.mrb[0].mxu0
  %v2650 = vadd.f32 %v2477, %v2649
  %2651 = vmatprep.mubr.bf16.mxu0 %v1605
  %2652 = vmatmul.mubr.bf16.gmra.mrb[0].mxu0 %v1604
  %v2653 = vpop.f32.mrb[0].mxu0
  %v2654 = vadd.f32 %v2481, %v2653
  %v2655 = vpop.f32.mrb[0].mxu0
  %v2656 = vadd.f32 %v2483, %v2655
  %v2657 = vpop.f32.mrb[0].mxu0
  %v2658 = vadd.f32 %v2485, %v2657
  %v2659 = vpop.f32.mrb[0].mxu0
  %v2660 = vadd.f32 %v2487, %v2659
  %2661 = vmatprep.mubr.bf16.mxu0 %v1616
  %2662 = vmatmul.mubr.bf16.gmra.mrb[0].mxu0 %v1615
  %v2663 = vpop.f32.mrb[0].mxu0
  %v2664 = vadd.f32 %v2491, %v2663
  %v2665 = vpop.f32.mrb[0].mxu0
  %v2666 = vadd.f32 %v2493, %v2665
  %v2667 = vpop.f32.mrb[0].mxu0
  %v2668 = vadd.f32 %v2495, %v2667
  %v2669 = vpop.f32.mrb[0].mxu0
  %v2670 = vadd.f32 %v2497, %v2669
  %2671 = vmatprep.mubr.bf16.mxu0 %v1627
  %2672 = vmatmul.mubr.bf16.gmra.mrb[0].mxu0 %v1626
  %v2673 = vpop.f32.mrb[0].mxu0
  %v2674 = vadd.f32 %v2501, %v2673
  %v2675 = vpop.f32.mrb[0].mxu0
  %v2676 = vadd.f32 %v2503, %v2675
  %v2677 = vpop.f32.mrb[0].mxu0
  %v2678 = vadd.f32 %v2505, %v2677
  %v2679 = vpop.f32.mrb[0].mxu0
  %v2680 = vadd.f32 %v2507, %v2679
  %2681 = vmatprep.mubr.bf16.mxu0 %v1638
  %2682 = vmatmul.mubr.bf16.gmra.mrb[0].mxu0 %v1637
  %v2683 = vpop.f32.mrb[0].mxu0
  %v2684 = vadd.f32 %v2511, %v2683
  %v2685 = vpop.f32.mrb[0].mxu0
  %v2686 = vadd.f32 %v2513, %v2685
  %v2687 = vpop.f32.mrb[0].mxu0
  %v2688 = vadd.f32 %v2515, %v2687
  %v2689 = vpop.f32.mrb[0].mxu0
  %v2690 = vadd.f32 %v2517, %v2689
  %2691 = vmatprep.mubr.bf16.mxu0 %v1649
  %2692 = vmatmul.mubr.bf16.gmra.mrb[0].mxu0 %v1648
  %v2693 = vpop.f32.mrb[0].mxu0
  %v2694 = vadd.f32 %v2521, %v2693
  %v2695 = vpop.f32.mrb[0].mxu0
  %v2696 = vadd.f32 %v2523, %v2695
  %v2697 = vpop.f32.mrb[0].mxu0
  %v2698 = vadd.f32 %v2525, %v2697
  %v2699 = vpop.f32.mrb[0].mxu0
  %v2700 = vadd.f32 %v2527, %v2699
  %2701 = vmatprep.mubr.bf16.mxu0 %v1660
  %2702 = vmatmul.mubr.bf16.gmra.mrb[0].mxu0 %v1659
  %v2703 = vpop.f32.mrb[0].mxu0
  %v2704 = vadd.f32 %v2531, %v2703
  %v2705 = vpop.f32.mrb[0].mxu0
  %v2706 = vadd.f32 %v2533, %v2705
  %v2707 = vpop.f32.mrb[0].mxu0
  %v2708 = vadd.f32 %v2535, %v2707
  %v2709 = vpop.f32.mrb[0].mxu0
  %v2710 = vadd.f32 %v2537, %v2709
  %2711 = vmatprep.mubr.bf16.mxu0 %v1671
  %2712 = vmatmul.mubr.bf16.gmra.mrb[0].mxu0 %v1670
  %v2713 = vpop.f32.mrb[0].mxu0
  %v2714 = vadd.f32 %v2541, %v2713
  %v2715 = vpop.f32.mrb[0].mxu0
  %v2716 = vadd.f32 %v2543, %v2715
  %v2717 = vpop.f32.mrb[0].mxu0
  %v2718 = vadd.f32 %v2545, %v2717
  %v2719 = vpop.f32.mrb[0].mxu0
  %v2720 = vadd.f32 %v2547, %v2719
  %2721 = vmatprep.mubr.bf16.mxu0 %v1682
  %2722 = vmatmul.mubr.bf16.gmra.mrb[0].mxu0 %v1681
  %v2723 = vpop.f32.mrb[0].mxu0
  %v2724 = vadd.f32 %v2551, %v2723
  %v2725 = vpop.f32.mrb[0].mxu0
  %v2726 = vadd.f32 %v2553, %v2725
  %v2727 = vpop.f32.mrb[0].mxu0
  %v2728 = vadd.f32 %v2555, %v2727
  %v2729 = vpop.f32.mrb[0].mxu0
  %v2730 = vadd.f32 %v2557, %v2729
  %2731 = vdwg.mxu0
  %2732 = vmatprep.subr.bf16.mxu0 %v1047
  %2733 = vmatpush1.bf16.msra.mxu0 %v1046
  %2734 = vmatprep.subr.bf16.mxu0 %v1049
  %2735 = vmatpush1.bf16.msra.mxu0 %v1048
  %2736 = vmatprep.subr.bf16.mxu0 %v1051
  %2737 = vmatpush1.bf16.msra.mxu0 %v1050
  %2738 = vmatprep.subr.bf16.mxu0 %v1053
  %2739 = vmatpush1.bf16.msra.mxu0 %v1052
  %2740 = vmatprep.subr.bf16.mxu0 0
  %2741 = vmatpush1.bf16.msra.mxu0 0
  %2742 = vmatprep.subr.bf16.mxu0 0
  %2743 = vmatpush1.bf16.msra.mxu0 0
  %2744 = vmatprep.subr.bf16.mxu0 0
  %2745 = vmatpush1.bf16.msra.mxu0 0
  %2746 = vmatprep.subr.bf16.mxu0 0
  %2747 = vmatpush1.bf16.msra.mxu0 0
  %2748 = vmatprep.subr.bf16.mxu0 0
  %2749 = vmatpush1.bf16.msra.mxu0 0
  %2750 = vmatprep.subr.bf16.mxu0 0
  %2751 = vmatpush1.bf16.msra.mxu0 0
  %2752 = vmatprep.subr.bf16.mxu0 0
  %2753 = vmatpush1.bf16.msra.mxu0 0
  %2754 = vmatprep.subr.bf16.mxu0 0
  %2755 = vmatpush1.bf16.msra.mxu0 0
  %2756 = vmatprep.subr.bf16.mxu0 0
  %2757 = vmatpush1.bf16.msra.mxu0 0
  %2758 = vmatprep.subr.bf16.mxu0 0
  %2759 = vmatpush1.bf16.msra.mxu0 0
  %2760 = vmatprep.subr.bf16.mxu0 0
  %2761 = vmatpush1.bf16.msra.mxu0 0
  %2762 = vmatprep.subr.bf16.mxu0 0
  %2763 = vmatpush1.bf16.msra.mxu0 0
  %2764 = vmatprep.mubr.bf16.mxu0 0
  %2765 = vmatmul.mubr.bf16.gmra.mrb[0].mxu0 %v1826
  %v2766 = vpop.f32.mrb[0].mxu0
  %v2767 = vadd.f32 %v2594, %v2766
  %v2768 = vpop.f32.mrb[0].mxu0
  %v2769 = vadd.f32 %v2596, %v2768
  %v2770 = vpop.f32.mrb[0].mxu0
  %v2771 = vadd.f32 %v2598, %v2770
  %v2772 = vpop.f32.mrb[0].mxu0
  %v2773 = vadd.f32 %v2600, %v2772
  %2774 = vmatprep.mubr.bf16.mxu0 0
  %2775 = vmatmul.mubr.bf16.gmra.mrb[0].mxu0 %v1829
  %v2776 = vpop.f32.mrb[0].mxu0
  %v2777 = vadd.f32 %v2604, %v2776
  %v2778 = vpop.f32.mrb[0].mxu0
  %v2779 = vadd.f32 %v2606, %v2778
  %v2780 = vpop.f32.mrb[0].mxu0
  %v2781 = vadd.f32 %v2608, %v2780
  %v2782 = vpop.f32.mrb[0].mxu0
  %v2783 = vadd.f32 %v2610, %v2782
  %2784 = vmatprep.mubr.bf16.mxu0 0
  %2785 = vmatmul.mubr.bf16.gmra.mrb[0].mxu0 %v1832
  %v2786 = vpop.f32.mrb[0].mxu0
  %v2787 = vadd.f32 %v2614, %v2786
  %v2788 = vpop.f32.mrb[0].mxu0
  %v2789 = vadd.f32 %v2616, %v2788
  %v2790 = vpop.f32.mrb[0].mxu0
  %v2791 = vadd.f32 %v2618, %v2790
  %v2792 = vpop.f32.mrb[0].mxu0
  %v2793 = vadd.f32 %v2620, %v2792
  %2794 = vmatprep.mubr.bf16.mxu0 0
  %2795 = vmatmul.mubr.bf16.gmra.mrb[0].mxu0 %v1835
  %v2796 = vpop.f32.mrb[0].mxu0
  %v2797 = vadd.f32 %v2624, %v2796
  %v2798 = vpop.f32.mrb[0].mxu0
  %v2799 = vadd.f32 %v2626, %v2798
  %v2800 = vpop.f32.mrb[0].mxu0
  %v2801 = vadd.f32 %v2628, %v2800
  %v2802 = vpop.f32.mrb[0].mxu0
  %v2803 = vadd.f32 %v2630, %v2802
  %2804 = vmatprep.mubr.bf16.mxu0 0
  %2805 = vmatmul.mubr.bf16.gmra.mrb[0].mxu0 %v1838
  %v2806 = vpop.f32.mrb[0].mxu0
  %v2807 = vadd.f32 %v2634, %v2806
  %v2808 = vpop.f32.mrb[0].mxu0
  %v2809 = vadd.f32 %v2636, %v2808
  %v2810 = vpop.f32.mrb[0].mxu0
  %v2811 = vadd.f32 %v2638, %v2810
  %v2812 = vpop.f32.mrb[0].mxu0
  %v2813 = vadd.f32 %v2640, %v2812
  %2814 = vmatprep.mubr.bf16.mxu0 0
  %2815 = vmatmul.mubr.bf16.gmra.mrb[0].mxu0 %v1841
  %v2816 = vpop.f32.mrb[0].mxu0
  %v2817 = vadd.f32 %v2644, %v2816
  %v2818 = vpop.f32.mrb[0].mxu0
  %v2819 = vadd.f32 %v2646, %v2818
  %v2820 = vpop.f32.mrb[0].mxu0
  %v2821 = vadd.f32 %v2648, %v2820
  %v2822 = vpop.f32.mrb[0].mxu0
  %v2823 = vadd.f32 %v2650, %v2822
  %2824 = vmatprep.mubr.bf16.mxu0 0
  %2825 = vmatmul.mubr.bf16.gmra.mrb[0].mxu0 %v1844
  %v2826 = vpop.f32.mrb[0].mxu0
  %v2827 = vadd.f32 %v2654, %v2826
  %v2828 = vpop.f32.mrb[0].mxu0
  %v2829 = vadd.f32 %v2656, %v2828
  %v2830 = vpop.f32.mrb[0].mxu0
  %v2831 = vadd.f32 %v2658, %v2830
  %v2832 = vpop.f32.mrb[0].mxu0
  %v2833 = vadd.f32 %v2660, %v2832
  %2834 = vmatprep.mubr.bf16.mxu0 0
  %2835 = vmatmul.mubr.bf16.gmra.mrb[0].mxu0 %v1847
  %v2836 = vpop.f32.mrb[0].mxu0
  %v2837 = vadd.f32 %v2664, %v2836
  %v2838 = vpop.f32.mrb[0].mxu0
  %v2839 = vadd.f32 %v2666, %v2838
  %v2840 = vpop.f32.mrb[0].mxu0
  %v2841 = vadd.f32 %v2668, %v2840
  %v2842 = vpop.f32.mrb[0].mxu0
  %v2843 = vadd.f32 %v2670, %v2842
  %2844 = vmatprep.mubr.bf16.mxu0 0
  %2845 = vmatmul.mubr.bf16.gmra.mrb[0].mxu0 %v1850
  %v2846 = vpop.f32.mrb[0].mxu0
  %v2847 = vadd.f32 %v2674, %v2846
  %v2848 = vpop.f32.mrb[0].mxu0
  %v2849 = vadd.f32 %v2676, %v2848
  %v2850 = vpop.f32.mrb[0].mxu0
  %v2851 = vadd.f32 %v2678, %v2850
  %v2852 = vpop.f32.mrb[0].mxu0
  %v2853 = vadd.f32 %v2680, %v2852
  %2854 = vmatprep.mubr.bf16.mxu0 0
  %2855 = vmatmul.mubr.bf16.gmra.mrb[0].mxu0 %v1853
  %v2856 = vpop.f32.mrb[0].mxu0
  %v2857 = vadd.f32 %v2684, %v2856
  %v2858 = vpop.f32.mrb[0].mxu0
  %v2859 = vadd.f32 %v2686, %v2858
  %v2860 = vpop.f32.mrb[0].mxu0
  %v2861 = vadd.f32 %v2688, %v2860
  %v2862 = vpop.f32.mrb[0].mxu0
  %v2863 = vadd.f32 %v2690, %v2862
  %2864 = vmatprep.mubr.bf16.mxu0 0
  %2865 = vmatmul.mubr.bf16.gmra.mrb[0].mxu0 %v1856
  %v2866 = vpop.f32.mrb[0].mxu0
  %v2867 = vadd.f32 %v2694, %v2866
  %v2868 = vpop.f32.mrb[0].mxu0
  %v2869 = vadd.f32 %v2696, %v2868
  %v2870 = vpop.f32.mrb[0].mxu0
  %v2871 = vadd.f32 %v2698, %v2870
  %v2872 = vpop.f32.mrb[0].mxu0
  %v2873 = vadd.f32 %v2700, %v2872
  %2874 = vmatprep.mubr.bf16.mxu0 0
  %2875 = vmatmul.mubr.bf16.gmra.mrb[0].mxu0 %v1859
  %v2876 = vpop.f32.mrb[0].mxu0
  %v2877 = vadd.f32 %v2704, %v2876
  %v2878 = vpop.f32.mrb[0].mxu0
  %v2879 = vadd.f32 %v2706, %v2878
  %v2880 = vpop.f32.mrb[0].mxu0
  %v2881 = vadd.f32 %v2708, %v2880
  %v2882 = vpop.f32.mrb[0].mxu0
  %v2883 = vadd.f32 %v2710, %v2882
  %2884 = vmatprep.mubr.bf16.mxu0 0
  %2885 = vmatmul.mubr.bf16.gmra.mrb[0].mxu0 %v1862
  %v2886 = vpop.f32.mrb[0].mxu0
  %v2887 = vadd.f32 %v2714, %v2886
  %v2888 = vpop.f32.mrb[0].mxu0
  %v2889 = vadd.f32 %v2716, %v2888
  %v2890 = vpop.f32.mrb[0].mxu0
  %v2891 = vadd.f32 %v2718, %v2890
  %v2892 = vpop.f32.mrb[0].mxu0
  %v2893 = vadd.f32 %v2720, %v2892
  %2894 = vmatprep.mubr.bf16.mxu0 0
  %2895 = vmatmul.mubr.bf16.gmra.mrb[0].mxu0 %v1865
  %v2896 = vpop.f32.mrb[0].mxu0
  %v2897 = vadd.f32 %v2724, %v2896
  %v2898 = vpop.f32.mrb[0].mxu0
  %v2899 = vadd.f32 %v2726, %v2898
  %v2900 = vpop.f32.mrb[0].mxu0
  %v2901 = vadd.f32 %v2728, %v2900
  %v2902 = vpop.f32.mrb[0].mxu0
  %v2903 = vadd.f32 %v2730, %v2902
  %2904 = vdwg.mxu0
  %vm2905 = vcmask 556032
  %v2906 = vsel %vm2905, %v2769, 0.0
  %v2907 = vadd.f32 %v2767, %v2906
  %2908 = vadd.xlane.f32.xlu0 %v2907
  %v2909 = vpop.xlane.xlu0 %2908
  %v2910 = vsel %vm2905, %v2773, 0.0
  %v2911 = vadd.f32 %v2771, %v2910
  %2912 = vadd.xlane.f32.xlu0 %v2911
  %v2913 = vpop.xlane.xlu0 %2912
  %v2914 = vsel %vm2905, %v2779, 0.0
  %v2915 = vadd.f32 %v2777, %v2914
  %2916 = vadd.xlane.f32.xlu0 %v2915
  %v2917 = vpop.xlane.xlu0 %2916
  %v2918 = vsel %vm2905, %v2783, 0.0
  %v2919 = vadd.f32 %v2781, %v2918
  %2920 = vadd.xlane.f32.xlu0 %v2919
  %v2921 = vpop.xlane.xlu0 %2920
  %v2922 = vsel %vm2905, %v2789, 0.0
  %v2923 = vadd.f32 %v2787, %v2922
  %2924 = vadd.xlane.f32.xlu0 %v2923
  %v2925 = vpop.xlane.xlu0 %2924
  %v2926 = vsel %vm2905, %v2793, 0.0
  %v2927 = vadd.f32 %v2791, %v2926
  %2928 = vadd.xlane.f32.xlu0 %v2927
  %v2929 = vpop.xlane.xlu0 %2928
  %v2930 = vsel %vm2905, %v2799, 0.0
  %v2931 = vadd.f32 %v2797, %v2930
  %2932 = vadd.xlane.f32.xlu0 %v2931
  %v2933 = vpop.xlane.xlu0 %2932
  %v2934 = vsel %vm2905, %v2803, 0.0
  %v2935 = vadd.f32 %v2801, %v2934
  %2936 = vadd.xlane.f32.xlu0 %v2935
  %v2937 = vpop.xlane.xlu0 %2936
  %v2938 = vsel %vm2905, %v2809, 0.0
  %v2939 = vadd.f32 %v2807, %v2938
  %2940 = vadd.xlane.f32.xlu0 %v2939
  %v2941 = vpop.xlane.xlu0 %2940
  %v2942 = vsel %vm2905, %v2813, 0.0
  %v2943 = vadd.f32 %v2811, %v2942
  %2944 = vadd.xlane.f32.xlu0 %v2943
  %v2945 = vpop.xlane.xlu0 %2944
  %v2946 = vsel %vm2905, %v2819, 0.0
  %v2947 = vadd.f32 %v2817, %v2946
  %2948 = vadd.xlane.f32.xlu0 %v2947
  %v2949 = vpop.xlane.xlu0 %2948
  %v2950 = vsel %vm2905, %v2823, 0.0
  %v2951 = vadd.f32 %v2821, %v2950
  %2952 = vadd.xlane.f32.xlu0 %v2951
  %v2953 = vpop.xlane.xlu0 %2952
  %v2954 = vsel %vm2905, %v2829, 0.0
  %v2955 = vadd.f32 %v2827, %v2954
  %2956 = vadd.xlane.f32.xlu0 %v2955
  %v2957 = vpop.xlane.xlu0 %2956
  %v2958 = vsel %vm2905, %v2833, 0.0
  %v2959 = vadd.f32 %v2831, %v2958
  %2960 = vadd.xlane.f32.xlu0 %v2959
  %v2961 = vpop.xlane.xlu0 %2960
  %v2962 = vsel %vm2905, %v2839, 0.0
  %v2963 = vadd.f32 %v2837, %v2962
  %2964 = vadd.xlane.f32.xlu0 %v2963
  %v2965 = vpop.xlane.xlu0 %2964
  %v2966 = vsel %vm2905, %v2843, 0.0
  %v2967 = vadd.f32 %v2841, %v2966
  %2968 = vadd.xlane.f32.xlu0 %v2967
  %v2969 = vpop.xlane.xlu0 %2968
  %v2970 = vsel %vm2905, %v2849, 0.0
  %v2971 = vadd.f32 %v2847, %v2970
  %2972 = vadd.xlane.f32.xlu0 %v2971
  %v2973 = vpop.xlane.xlu0 %2972
  %v2974 = vsel %vm2905, %v2853, 0.0
  %v2975 = vadd.f32 %v2851, %v2974
  %2976 = vadd.xlane.f32.xlu0 %v2975
  %v2977 = vpop.xlane.xlu0 %2976
  %v2978 = vsel %vm2905, %v2859, 0.0
  %v2979 = vadd.f32 %v2857, %v2978
  %2980 = vadd.xlane.f32.xlu0 %v2979
  %v2981 = vpop.xlane.xlu0 %2980
  %v2982 = vsel %vm2905, %v2863, 0.0
  %v2983 = vadd.f32 %v2861, %v2982
  %2984 = vadd.xlane.f32.xlu0 %v2983
  %v2985 = vpop.xlane.xlu0 %2984
  %v2986 = vsel %vm2905, %v2869, 0.0
  %v2987 = vadd.f32 %v2867, %v2986
  %2988 = vadd.xlane.f32.xlu0 %v2987
  %v2989 = vpop.xlane.xlu0 %2988
  %v2990 = vsel %vm2905, %v2873, 0.0
  %v2991 = vadd.f32 %v2871, %v2990
  %2992 = vadd.xlane.f32.xlu0 %v2991
  %v2993 = vpop.xlane.xlu0 %2992
  %v2994 = vsel %vm2905, %v2879, 0.0
  %v2995 = vadd.f32 %v2877, %v2994
  %2996 = vadd.xlane.f32.xlu0 %v2995
  %v2997 = vpop.xlane.xlu0 %2996
  %v2998 = vsel %vm2905, %v2883, 0.0
  %v2999 = vadd.f32 %v2881, %v2998
  %3000 = vadd.xlane.f32.xlu0 %v2999
  %v3001 = vpop.xlane.xlu0 %3000
  %v3002 = vsel %vm2905, %v2889, 0.0
  %v3003 = vadd.f32 %v2887, %v3002
  %3004 = vadd.xlane.f32.xlu0 %v3003
  %v3005 = vpop.xlane.xlu0 %3004
  %v3006 = vsel %vm2905, %v2893, 0.0
  %v3007 = vadd.f32 %v2891, %v3006
  %3008 = vadd.xlane.f32.xlu0 %v3007
  %v3009 = vpop.xlane.xlu0 %3008
  %v3010 = vsel %vm2905, %v2899, 0.0
  %v3011 = vadd.f32 %v2897, %v3010
  %3012 = vadd.xlane.f32.xlu0 %v3011
  %v3013 = vpop.xlane.xlu0 %3012
  %v3014 = vsel %vm2905, %v2903, 0.0
  %v3015 = vadd.f32 %v2901, %v3014
  %3016 = vadd.xlane.f32.xlu0 %v3015
  %v3017 = vpop.xlane.xlu0 %3016
  %v3018 = vmul.f32 %v2767, %v2767
  %v3019 = vmul.f32 %v2769, %v2769
  %v3020 = vmul.f32 %v2771, %v2771
  %v3021 = vmul.f32 %v2773, %v2773
  %v3022 = vmul.f32 %v2777, %v2777
  %v3023 = vmul.f32 %v2779, %v2779
  %v3024 = vmul.f32 %v2781, %v2781
  %v3025 = vmul.f32 %v2783, %v2783
  %v3026 = vmul.f32 %v2787, %v2787
  %v3027 = vmul.f32 %v2789, %v2789
  %v3028 = vmul.f32 %v2791, %v2791
  %v3029 = vmul.f32 %v2793, %v2793
  %v3030 = vmul.f32 %v2797, %v2797
  %v3031 = vmul.f32 %v2799, %v2799
  %v3032 = vmul.f32 %v2801, %v2801
  %v3033 = vmul.f32 %v2803, %v2803
  %v3034 = vmul.f32 %v2807, %v2807
  %v3035 = vmul.f32 %v2809, %v2809
  %v3036 = vmul.f32 %v2811, %v2811
  %v3037 = vmul.f32 %v2813, %v2813
  %v3038 = vmul.f32 %v2817, %v2817
  %v3039 = vmul.f32 %v2819, %v2819
  %v3040 = vmul.f32 %v2821, %v2821
  %v3041 = vmul.f32 %v2823, %v2823
  %v3042 = vmul.f32 %v2827, %v2827
  %v3043 = vmul.f32 %v2829, %v2829
  %v3044 = vmul.f32 %v2831, %v2831
  %v3045 = vmul.f32 %v2833, %v2833
  %v3046 = vmul.f32 %v2837, %v2837
  %v3047 = vmul.f32 %v2839, %v2839
  %v3048 = vmul.f32 %v2841, %v2841
  %v3049 = vmul.f32 %v2843, %v2843
  %v3050 = vmul.f32 %v2847, %v2847
  %v3051 = vmul.f32 %v2849, %v2849
  %v3052 = vmul.f32 %v2851, %v2851
  %v3053 = vmul.f32 %v2853, %v2853
  %v3054 = vmul.f32 %v2857, %v2857
  %v3055 = vmul.f32 %v2859, %v2859
  %v3056 = vmul.f32 %v2861, %v2861
  %v3057 = vmul.f32 %v2863, %v2863
  %v3058 = vmul.f32 %v2867, %v2867
  %v3059 = vmul.f32 %v2869, %v2869
  %v3060 = vmul.f32 %v2871, %v2871
  %v3061 = vmul.f32 %v2873, %v2873
  %v3062 = vmul.f32 %v2877, %v2877
  %v3063 = vmul.f32 %v2879, %v2879
  %v3064 = vmul.f32 %v2881, %v2881
  %v3065 = vmul.f32 %v2883, %v2883
  %v3066 = vmul.f32 %v2887, %v2887
  %v3067 = vmul.f32 %v2889, %v2889
  %v3068 = vmul.f32 %v2891, %v2891
  %v3069 = vmul.f32 %v2893, %v2893
  %v3070 = vmul.f32 %v2897, %v2897
  %v3071 = vmul.f32 %v2899, %v2899
  %v3072 = vmul.f32 %v2901, %v2901
  %v3073 = vmul.f32 %v2903, %v2903
  %v3074 = vsel %vm2905, %v3019, 0.0
  %v3075 = vadd.f32 %v3018, %v3074
  %3076 = vadd.xlane.f32.xlu0 %v3075
  %v3077 = vpop.xlane.xlu0 %3076
  %v3078 = vsel %vm2905, %v3021, 0.0
  %v3079 = vadd.f32 %v3020, %v3078
  %3080 = vadd.xlane.f32.xlu0 %v3079
  %v3081 = vpop.xlane.xlu0 %3080
  %v3082 = vsel %vm2905, %v3023, 0.0
  %v3083 = vadd.f32 %v3022, %v3082
  %3084 = vadd.xlane.f32.xlu0 %v3083
  %v3085 = vpop.xlane.xlu0 %3084
  %v3086 = vsel %vm2905, %v3025, 0.0
  %v3087 = vadd.f32 %v3024, %v3086
  %3088 = vadd.xlane.f32.xlu0 %v3087
  %v3089 = vpop.xlane.xlu0 %3088
  %v3090 = vsel %vm2905, %v3027, 0.0
  %v3091 = vadd.f32 %v3026, %v3090
  %3092 = vadd.xlane.f32.xlu0 %v3091
  %v3093 = vpop.xlane.xlu0 %3092
  %v3094 = vsel %vm2905, %v3029, 0.0
  %v3095 = vadd.f32 %v3028, %v3094
  %3096 = vadd.xlane.f32.xlu0 %v3095
  %v3097 = vpop.xlane.xlu0 %3096
  %v3098 = vsel %vm2905, %v3031, 0.0
  %v3099 = vadd.f32 %v3030, %v3098
  %3100 = vadd.xlane.f32.xlu0 %v3099
  %v3101 = vpop.xlane.xlu0 %3100
  %v3102 = vsel %vm2905, %v3033, 0.0
  %v3103 = vadd.f32 %v3032, %v3102
  %3104 = vadd.xlane.f32.xlu0 %v3103
  %v3105 = vpop.xlane.xlu0 %3104
  %v3106 = vsel %vm2905, %v3035, 0.0
  %v3107 = vadd.f32 %v3034, %v3106
  %3108 = vadd.xlane.f32.xlu0 %v3107
  %v3109 = vpop.xlane.xlu0 %3108
  %v3110 = vsel %vm2905, %v3037, 0.0
  %v3111 = vadd.f32 %v3036, %v3110
  %3112 = vadd.xlane.f32.xlu0 %v3111
  %v3113 = vpop.xlane.xlu0 %3112
  %v3114 = vsel %vm2905, %v3039, 0.0
  %v3115 = vadd.f32 %v3038, %v3114
  %3116 = vadd.xlane.f32.xlu0 %v3115
  %v3117 = vpop.xlane.xlu0 %3116
  %v3118 = vsel %vm2905, %v3041, 0.0
  %v3119 = vadd.f32 %v3040, %v3118
  %3120 = vadd.xlane.f32.xlu0 %v3119
  %v3121 = vpop.xlane.xlu0 %3120
  %v3122 = vsel %vm2905, %v3043, 0.0
  %v3123 = vadd.f32 %v3042, %v3122
  %3124 = vadd.xlane.f32.xlu0 %v3123
  %v3125 = vpop.xlane.xlu0 %3124
  %v3126 = vsel %vm2905, %v3045, 0.0
  %v3127 = vadd.f32 %v3044, %v3126
  %3128 = vadd.xlane.f32.xlu0 %v3127
  %v3129 = vpop.xlane.xlu0 %3128
  %v3130 = vsel %vm2905, %v3047, 0.0
  %v3131 = vadd.f32 %v3046, %v3130
  %3132 = vadd.xlane.f32.xlu0 %v3131
  %v3133 = vpop.xlane.xlu0 %3132
  %v3134 = vsel %vm2905, %v3049, 0.0
  %v3135 = vadd.f32 %v3048, %v3134
  %3136 = vadd.xlane.f32.xlu0 %v3135
  %v3137 = vpop.xlane.xlu0 %3136
  %v3138 = vsel %vm2905, %v3051, 0.0
  %v3139 = vadd.f32 %v3050, %v3138
  %3140 = vadd.xlane.f32.xlu0 %v3139
  %v3141 = vpop.xlane.xlu0 %3140
  %v3142 = vsel %vm2905, %v3053, 0.0
  %v3143 = vadd.f32 %v3052, %v3142
  %3144 = vadd.xlane.f32.xlu0 %v3143
  %v3145 = vpop.xlane.xlu0 %3144
  %v3146 = vsel %vm2905, %v3055, 0.0
  %v3147 = vadd.f32 %v3054, %v3146
  %3148 = vadd.xlane.f32.xlu0 %v3147
  %v3149 = vpop.xlane.xlu0 %3148
  %v3150 = vsel %vm2905, %v3057, 0.0
  %v3151 = vadd.f32 %v3056, %v3150
  %3152 = vadd.xlane.f32.xlu0 %v3151
  %v3153 = vpop.xlane.xlu0 %3152
  %v3154 = vsel %vm2905, %v3059, 0.0
  %v3155 = vadd.f32 %v3058, %v3154
  %3156 = vadd.xlane.f32.xlu0 %v3155
  %v3157 = vpop.xlane.xlu0 %3156
  %v3158 = vsel %vm2905, %v3061, 0.0
  %v3159 = vadd.f32 %v3060, %v3158
  %3160 = vadd.xlane.f32.xlu0 %v3159
  %v3161 = vpop.xlane.xlu0 %3160
  %v3162 = vsel %vm2905, %v3063, 0.0
  %v3163 = vadd.f32 %v3062, %v3162
  %3164 = vadd.xlane.f32.xlu0 %v3163
  %v3165 = vpop.xlane.xlu0 %3164
  %v3166 = vsel %vm2905, %v3065, 0.0
  %v3167 = vadd.f32 %v3064, %v3166
  %3168 = vadd.xlane.f32.xlu0 %v3167
  %v3169 = vpop.xlane.xlu0 %3168
  %v3170 = vsel %vm2905, %v3067, 0.0
  %v3171 = vadd.f32 %v3066, %v3170
  %3172 = vadd.xlane.f32.xlu0 %v3171
  %v3173 = vpop.xlane.xlu0 %3172
  %v3174 = vsel %vm2905, %v3069, 0.0
  %v3175 = vadd.f32 %v3068, %v3174
  %3176 = vadd.xlane.f32.xlu0 %v3175
  %v3177 = vpop.xlane.xlu0 %3176
  %v3178 = vsel %vm2905, %v3071, 0.0
  %v3179 = vadd.f32 %v3070, %v3178
  %3180 = vadd.xlane.f32.xlu0 %v3179
  %v3181 = vpop.xlane.xlu0 %3180
  %v3182 = vsel %vm2905, %v3073, 0.0
  %v3183 = vadd.f32 %v3072, %v3182
  %3184 = vadd.xlane.f32.xlu0 %v3183
  %v3185 = vpop.xlane.xlu0 %3184
  %v3186 = vmul.f32 %v2909, 0.0051020407
  %v3187 = vmul.f32 %v2913, 0.0051020407
  %v3188 = vmul.f32 %v2917, 0.0051020407
  %v3189 = vmul.f32 %v2921, 0.0051020407
  %v3190 = vmul.f32 %v2925, 0.0051020407
  %v3191 = vmul.f32 %v2929, 0.0051020407
  %v3192 = vmul.f32 %v2933, 0.0051020407
  %v3193 = vmul.f32 %v2937, 0.0051020407
  %v3194 = vmul.f32 %v2941, 0.0051020407
  %v3195 = vmul.f32 %v2945, 0.0051020407
  %v3196 = vmul.f32 %v2949, 0.0051020407
  %v3197 = vmul.f32 %v2953, 0.0051020407
  %v3198 = vmul.f32 %v2957, 0.0051020407
  %v3199 = vmul.f32 %v2961, 0.0051020407
  %v3200 = vmul.f32 %v2965, 0.0051020407
  %v3201 = vmul.f32 %v2969, 0.0051020407
  %v3202 = vmul.f32 %v2973, 0.0051020407
  %v3203 = vmul.f32 %v2977, 0.0051020407
  %v3204 = vmul.f32 %v2981, 0.0051020407
  %v3205 = vmul.f32 %v2985, 0.0051020407
  %v3206 = vmul.f32 %v2989, 0.0051020407
  %v3207 = vmul.f32 %v2993, 0.0051020407
  %v3208 = vmul.f32 %v2997, 0.0051020407
  %v3209 = vmul.f32 %v3001, 0.0051020407
  %v3210 = vmul.f32 %v3005, 0.0051020407
  %v3211 = vmul.f32 %v3009, 0.0051020407
  %v3212 = vmul.f32 %v3013, 0.0051020407
  %v3213 = vmul.f32 %v3017, 0.0051020407
  %v3214 = vmul.f32 %v3077, 0.0051020407
  %v3215 = vmul.f32 %v3081, 0.0051020407
  %v3216 = vmul.f32 %v3085, 0.0051020407
  %v3217 = vmul.f32 %v3089, 0.0051020407
  %v3218 = vmul.f32 %v3093, 0.0051020407
  %v3219 = vmul.f32 %v3097, 0.0051020407
  %v3220 = vmul.f32 %v3101, 0.0051020407
  %v3221 = vmul.f32 %v3105, 0.0051020407
  %v3222 = vmul.f32 %v3109, 0.0051020407
  %v3223 = vmul.f32 %v3113, 0.0051020407
  %v3224 = vmul.f32 %v3117, 0.0051020407
  %v3225 = vmul.f32 %v3121, 0.0051020407
  %v3226 = vmul.f32 %v3125, 0.0051020407
  %v3227 = vmul.f32 %v3129, 0.0051020407
  %v3228 = vmul.f32 %v3133, 0.0051020407
  %v3229 = vmul.f32 %v3137, 0.0051020407
  %v3230 = vmul.f32 %v3141, 0.0051020407
  %v3231 = vmul.f32 %v3145, 0.0051020407
  %v3232 = vmul.f32 %v3149, 0.0051020407
  %v3233 = vmul.f32 %v3153, 0.0051020407
  %v3234 = vmul.f32 %v3157, 0.0051020407
  %v3235 = vmul.f32 %v3161, 0.0051020407
  %v3236 = vmul.f32 %v3165, 0.0051020407
  %v3237 = vmul.f32 %v3169, 0.0051020407
  %v3238 = vmul.f32 %v3173, 0.0051020407
  %v3239 = vmul.f32 %v3177, 0.0051020407
  %v3240 = vmul.f32 %v3181, 0.0051020407
  %v3241 = vmul.f32 %v3185, 0.0051020407
  %v3242 = vmul.f32 %v3186, %v3186
  %v3243 = vmul.f32 %v3187, %v3187
  %v3244 = vmul.f32 %v3188, %v3188
  %v3245 = vmul.f32 %v3189, %v3189
  %v3246 = vmul.f32 %v3190, %v3190
  %v3247 = vmul.f32 %v3191, %v3191
  %v3248 = vmul.f32 %v3192, %v3192
  %v3249 = vmul.f32 %v3193, %v3193
  %v3250 = vmul.f32 %v3194, %v3194
  %v3251 = vmul.f32 %v3195, %v3195
  %v3252 = vmul.f32 %v3196, %v3196
  %v3253 = vmul.f32 %v3197, %v3197
  %v3254 = vmul.f32 %v3198, %v3198
  %v3255 = vmul.f32 %v3199, %v3199
  %v3256 = vmul.f32 %v3200, %v3200
  %v3257 = vmul.f32 %v3201, %v3201
  %v3258 = vmul.f32 %v3202, %v3202
  %v3259 = vmul.f32 %v3203, %v3203
  %v3260 = vmul.f32 %v3204, %v3204
  %v3261 = vmul.f32 %v3205, %v3205
  %v3262 = vmul.f32 %v3206, %v3206
  %v3263 = vmul.f32 %v3207, %v3207
  %v3264 = vmul.f32 %v3208, %v3208
  %v3265 = vmul.f32 %v3209, %v3209
  %v3266 = vmul.f32 %v3210, %v3210
  %v3267 = vmul.f32 %v3211, %v3211
  %v3268 = vmul.f32 %v3212, %v3212
  %v3269 = vmul.f32 %v3213, %v3213
  %v3270 = vsub.f32 %v3214, %v3242
  %v3271 = vsub.f32 %v3215, %v3243
  %v3272 = vsub.f32 %v3216, %v3244
  %v3273 = vsub.f32 %v3217, %v3245
  %v3274 = vsub.f32 %v3218, %v3246
  %v3275 = vsub.f32 %v3219, %v3247
  %v3276 = vsub.f32 %v3220, %v3248
  %v3277 = vsub.f32 %v3221, %v3249
  %v3278 = vsub.f32 %v3222, %v3250
  %v3279 = vsub.f32 %v3223, %v3251
  %v3280 = vsub.f32 %v3224, %v3252
  %v3281 = vsub.f32 %v3225, %v3253
  %v3282 = vsub.f32 %v3226, %v3254
  %v3283 = vsub.f32 %v3227, %v3255
  %v3284 = vsub.f32 %v3228, %v3256
  %v3285 = vsub.f32 %v3229, %v3257
  %v3286 = vsub.f32 %v3230, %v3258
  %v3287 = vsub.f32 %v3231, %v3259
  %v3288 = vsub.f32 %v3232, %v3260
  %v3289 = vsub.f32 %v3233, %v3261
  %v3290 = vsub.f32 %v3234, %v3262
  %v3291 = vsub.f32 %v3235, %v3263
  %v3292 = vsub.f32 %v3236, %v3264
  %v3293 = vsub.f32 %v3237, %v3265
  %v3294 = vsub.f32 %v3238, %v3266
  %v3295 = vsub.f32 %v3239, %v3267
  %v3296 = vsub.f32 %v3240, %v3268
  %v3297 = vsub.f32 %v3241, %v3269
  %v3298 = vmax.f32 %v3270, 0.0
  %v3299 = vmax.f32 %v3271, 0.0
  %v3300 = vmax.f32 %v3272, 0.0
  %v3301 = vmax.f32 %v3273, 0.0
  %v3302 = vmax.f32 %v3274, 0.0
  %v3303 = vmax.f32 %v3275, 0.0
  %v3304 = vmax.f32 %v3276, 0.0
  %v3305 = vmax.f32 %v3277, 0.0
  %v3306 = vmax.f32 %v3278, 0.0
  %v3307 = vmax.f32 %v3279, 0.0
  %v3308 = vmax.f32 %v3280, 0.0
  %v3309 = vmax.f32 %v3281, 0.0
  %v3310 = vmax.f32 %v3282, 0.0
  %v3311 = vmax.f32 %v3283, 0.0
  %v3312 = vmax.f32 %v3284, 0.0
  %v3313 = vmax.f32 %v3285, 0.0
  %v3314 = vmax.f32 %v3286, 0.0
  %v3315 = vmax.f32 %v3287, 0.0
  %v3316 = vmax.f32 %v3288, 0.0
  %v3317 = vmax.f32 %v3289, 0.0
  %v3318 = vmax.f32 %v3290, 0.0
  %v3319 = vmax.f32 %v3291, 0.0
  %v3320 = vmax.f32 %v3292, 0.0
  %v3321 = vmax.f32 %v3293, 0.0
  %v3322 = vmax.f32 %v3294, 0.0
  %v3323 = vmax.f32 %v3295, 0.0
  %v3324 = vmax.f32 %v3296, 0.0
  %v3325 = vmax.f32 %v3297, 0.0
  %v3326 = vld [vmem:[%s3] sm:$0xff]
  %v3327 = vld [vmem:[%s3 + $0x8] sm:$0xff]
  %v3328 = vld [vmem:[%s3 + $0x10] sm:$0xff]
  %v3329 = vld [vmem:[%s3 + $0x18] sm:$0xff]
  %v3330 = vld [vmem:[%s3 + $0x20] sm:$0xff]
  %v3331 = vld [vmem:[%s3 + $0x28] sm:$0xff]
  %v3332 = vld [vmem:[%s3 + $0x30] sm:$0xff]
  %v3333 = vld [vmem:[%s3 + $0x38] sm:$0xff]
  %v3334 = vld [vmem:[%s3 + $0x40] sm:$0xff]
  %v3335 = vld [vmem:[%s3 + $0x48] sm:$0xff]
  %v3336 = vld [vmem:[%s3 + $0x50] sm:$0xff]
  %v3337 = vld [vmem:[%s3 + $0x58] sm:$0xff]
  %v3338 = vld [vmem:[%s3 + $0x60] sm:$0xff]
  %v3339 = vld [vmem:[%s3 + $0x68] sm:$0xff]
  %v3340 = vld [vmem:[%s3 + $0x70] sm:$0xff]
  %v3341 = vld [vmem:[%s3 + $0x78] sm:$0xff]
  %v3342 = vld [vmem:[%s3 + $0x80] sm:$0xff]
  %v3343 = vld [vmem:[%s3 + $0x88] sm:$0xff]
  %v3344 = vld [vmem:[%s3 + $0x90] sm:$0xff]
  %v3345 = vld [vmem:[%s3 + $0x98] sm:$0xff]
  %v3346 = vld [vmem:[%s3 + $0xa0] sm:$0xff]
  %v3347 = vld [vmem:[%s3 + $0xa8] sm:$0xff]
  %v3348 = vld [vmem:[%s3 + $0xb0] sm:$0xff]
  %v3349 = vld [vmem:[%s3 + $0xb8] sm:$0xff]
  %v3350 = vld [vmem:[%s3 + $0xc0] sm:$0xff]
  %v3351 = vld [vmem:[%s3 + $0xc8] sm:$0xff]
  %v3352 = vld [vmem:[%s3 + $0xd0] sm:$0xff]
  %v3353 = vld [vmem:[%s3 + $0xd8] sm:$0xff]
  %v3354 = vadd.f32 %v3298, 1e-05
  %v3355 = vadd.f32 %v3299, 1e-05
  %v3356 = vadd.f32 %v3300, 1e-05
  %v3357 = vadd.f32 %v3301, 1e-05
  %v3358 = vadd.f32 %v3302, 1e-05
  %v3359 = vadd.f32 %v3303, 1e-05
  %v3360 = vadd.f32 %v3304, 1e-05
  %v3361 = vadd.f32 %v3305, 1e-05
  %v3362 = vadd.f32 %v3306, 1e-05
  %v3363 = vadd.f32 %v3307, 1e-05
  %v3364 = vadd.f32 %v3308, 1e-05
  %v3365 = vadd.f32 %v3309, 1e-05
  %v3366 = vadd.f32 %v3310, 1e-05
  %v3367 = vadd.f32 %v3311, 1e-05
  %v3368 = vadd.f32 %v3312, 1e-05
  %v3369 = vadd.f32 %v3313, 1e-05
  %v3370 = vadd.f32 %v3314, 1e-05
  %v3371 = vadd.f32 %v3315, 1e-05
  %v3372 = vadd.f32 %v3316, 1e-05
  %v3373 = vadd.f32 %v3317, 1e-05
  %v3374 = vadd.f32 %v3318, 1e-05
  %v3375 = vadd.f32 %v3319, 1e-05
  %v3376 = vadd.f32 %v3320, 1e-05
  %v3377 = vadd.f32 %v3321, 1e-05
  %v3378 = vadd.f32 %v3322, 1e-05
  %v3379 = vadd.f32 %v3323, 1e-05
  %v3380 = vadd.f32 %v3324, 1e-05
  %v3381 = vadd.f32 %v3325, 1e-05
  %v3382 = vrsqrt.pop %v3354
  %v3383 = vrsqrt.pop %v3355
  %v3384 = vrsqrt.pop %v3356
  %v3385 = vrsqrt.pop %v3357
  %v3386 = vrsqrt.pop %v3358
  %v3387 = vrsqrt.pop %v3359
  %v3388 = vrsqrt.pop %v3360
  %v3389 = vrsqrt.pop %v3361
  %v3390 = vrsqrt.pop %v3362
  %v3391 = vrsqrt.pop %v3363
  %v3392 = vrsqrt.pop %v3364
  %v3393 = vrsqrt.pop %v3365
  %v3394 = vrsqrt.pop %v3366
  %v3395 = vrsqrt.pop %v3367
  %v3396 = vrsqrt.pop %v3368
  %v3397 = vrsqrt.pop %v3369
  %v3398 = vrsqrt.pop %v3370
  %v3399 = vrsqrt.pop %v3371
  %v3400 = vrsqrt.pop %v3372
  %v3401 = vrsqrt.pop %v3373
  %v3402 = vrsqrt.pop %v3374
  %v3403 = vrsqrt.pop %v3375
  %v3404 = vrsqrt.pop %v3376
  %v3405 = vrsqrt.pop %v3377
  %v3406 = vrsqrt.pop %v3378
  %v3407 = vrsqrt.pop %v3379
  %v3408 = vrsqrt.pop %v3380
  %v3409 = vrsqrt.pop %v3381
  %v3410 = vmul.f32 %v3326, %v3382
  %v3411 = vmul.f32 %v3327, %v3383
  %v3412 = vmul.f32 %v3328, %v3384
  %v3413 = vmul.f32 %v3329, %v3385
  %v3414 = vmul.f32 %v3330, %v3386
  %v3415 = vmul.f32 %v3331, %v3387
  %v3416 = vmul.f32 %v3332, %v3388
  %v3417 = vmul.f32 %v3333, %v3389
  %v3418 = vmul.f32 %v3334, %v3390
  %v3419 = vmul.f32 %v3335, %v3391
  %v3420 = vmul.f32 %v3336, %v3392
  %v3421 = vmul.f32 %v3337, %v3393
  %v3422 = vmul.f32 %v3338, %v3394
  %v3423 = vmul.f32 %v3339, %v3395
  %v3424 = vmul.f32 %v3340, %v3396
  %v3425 = vmul.f32 %v3341, %v3397
  %v3426 = vmul.f32 %v3342, %v3398
  %v3427 = vmul.f32 %v3343, %v3399
  %v3428 = vmul.f32 %v3344, %v3400
  %v3429 = vmul.f32 %v3345, %v3401
  %v3430 = vmul.f32 %v3346, %v3402
  %v3431 = vmul.f32 %v3347, %v3403
  %v3432 = vmul.f32 %v3348, %v3404
  %v3433 = vmul.f32 %v3349, %v3405
  %v3434 = vmul.f32 %v3350, %v3406
  %v3435 = vmul.f32 %v3351, %v3407
  %v3436 = vmul.f32 %v3352, %v3408
  %v3437 = vmul.f32 %v3353, %v3409
  %v3438 = vld [vmem:[%s4] sm:$0xff]
  %v3439 = vld [vmem:[%s4 + $0x8] sm:$0xff]
  %v3440 = vld [vmem:[%s4 + $0x10] sm:$0xff]
  %v3441 = vld [vmem:[%s4 + $0x18] sm:$0xff]
  %v3442 = vld [vmem:[%s4 + $0x20] sm:$0xff]
  %v3443 = vld [vmem:[%s4 + $0x28] sm:$0xff]
  %v3444 = vld [vmem:[%s4 + $0x30] sm:$0xff]
  %v3445 = vld [vmem:[%s4 + $0x38] sm:$0xff]
  %v3446 = vld [vmem:[%s4 + $0x40] sm:$0xff]
  %v3447 = vld [vmem:[%s4 + $0x48] sm:$0xff]
  %v3448 = vld [vmem:[%s4 + $0x50] sm:$0xff]
  %v3449 = vld [vmem:[%s4 + $0x58] sm:$0xff]
  %v3450 = vld [vmem:[%s4 + $0x60] sm:$0xff]
  %v3451 = vld [vmem:[%s4 + $0x68] sm:$0xff]
  %v3452 = vld [vmem:[%s4 + $0x70] sm:$0xff]
  %v3453 = vld [vmem:[%s4 + $0x78] sm:$0xff]
  %v3454 = vld [vmem:[%s4 + $0x80] sm:$0xff]
  %v3455 = vld [vmem:[%s4 + $0x88] sm:$0xff]
  %v3456 = vld [vmem:[%s4 + $0x90] sm:$0xff]
  %v3457 = vld [vmem:[%s4 + $0x98] sm:$0xff]
  %v3458 = vld [vmem:[%s4 + $0xa0] sm:$0xff]
  %v3459 = vld [vmem:[%s4 + $0xa8] sm:$0xff]
  %v3460 = vld [vmem:[%s4 + $0xb0] sm:$0xff]
  %v3461 = vld [vmem:[%s4 + $0xb8] sm:$0xff]
  %v3462 = vld [vmem:[%s4 + $0xc0] sm:$0xff]
  %v3463 = vld [vmem:[%s4 + $0xc8] sm:$0xff]
  %v3464 = vld [vmem:[%s4 + $0xd0] sm:$0xff]
  %v3465 = vld [vmem:[%s4 + $0xd8] sm:$0xff]
  %v3466 = vmul.f32 %v3186, %v3410
  %v3467 = vmul.f32 %v3187, %v3411
  %v3468 = vmul.f32 %v3188, %v3412
  %v3469 = vmul.f32 %v3189, %v3413
  %v3470 = vmul.f32 %v3190, %v3414
  %v3471 = vmul.f32 %v3191, %v3415
  %v3472 = vmul.f32 %v3192, %v3416
  %v3473 = vmul.f32 %v3193, %v3417
  %v3474 = vmul.f32 %v3194, %v3418
  %v3475 = vmul.f32 %v3195, %v3419
  %v3476 = vmul.f32 %v3196, %v3420
  %v3477 = vmul.f32 %v3197, %v3421
  %v3478 = vmul.f32 %v3198, %v3422
  %v3479 = vmul.f32 %v3199, %v3423
  %v3480 = vmul.f32 %v3200, %v3424
  %v3481 = vmul.f32 %v3201, %v3425
  %v3482 = vmul.f32 %v3202, %v3426
  %v3483 = vmul.f32 %v3203, %v3427
  %v3484 = vmul.f32 %v3204, %v3428
  %v3485 = vmul.f32 %v3205, %v3429
  %v3486 = vmul.f32 %v3206, %v3430
  %v3487 = vmul.f32 %v3207, %v3431
  %v3488 = vmul.f32 %v3208, %v3432
  %v3489 = vmul.f32 %v3209, %v3433
  %v3490 = vmul.f32 %v3210, %v3434
  %v3491 = vmul.f32 %v3211, %v3435
  %v3492 = vmul.f32 %v3212, %v3436
  %v3493 = vmul.f32 %v3213, %v3437
  %v3494 = vsub.f32 %v3438, %v3466
  %v3495 = vsub.f32 %v3439, %v3467
  %v3496 = vsub.f32 %v3440, %v3468
  %v3497 = vsub.f32 %v3441, %v3469
  %v3498 = vsub.f32 %v3442, %v3470
  %v3499 = vsub.f32 %v3443, %v3471
  %v3500 = vsub.f32 %v3444, %v3472
  %v3501 = vsub.f32 %v3445, %v3473
  %v3502 = vsub.f32 %v3446, %v3474
  %v3503 = vsub.f32 %v3447, %v3475
  %v3504 = vsub.f32 %v3448, %v3476
  %v3505 = vsub.f32 %v3449, %v3477
  %v3506 = vsub.f32 %v3450, %v3478
  %v3507 = vsub.f32 %v3451, %v3479
  %v3508 = vsub.f32 %v3452, %v3480
  %v3509 = vsub.f32 %v3453, %v3481
  %v3510 = vsub.f32 %v3454, %v3482
  %v3511 = vsub.f32 %v3455, %v3483
  %v3512 = vsub.f32 %v3456, %v3484
  %v3513 = vsub.f32 %v3457, %v3485
  %v3514 = vsub.f32 %v3458, %v3486
  %v3515 = vsub.f32 %v3459, %v3487
  %v3516 = vsub.f32 %v3460, %v3488
  %v3517 = vsub.f32 %v3461, %v3489
  %v3518 = vsub.f32 %v3462, %v3490
  %v3519 = vsub.f32 %v3463, %v3491
  %v3520 = vsub.f32 %v3464, %v3492
  %v3521 = vsub.f32 %v3465, %v3493
  %3523 = vset.pattern.permute.xlu0 0
  %3524 = vperm.xlu0 %3523, %v3410
  %v3525 = vpop.permute.xlu0 %3524
  %3528 = vset.pattern.permute.xlu0 0
  %3529 = vperm.xlu0 %3528, %v3411
  %v3530 = vpop.permute.xlu0 %3529
  %3533 = vset.pattern.permute.xlu0 0
  %3534 = vperm.xlu0 %3533, %v3412
  %v3535 = vpop.permute.xlu0 %3534
  %3538 = vset.pattern.permute.xlu0 0
  %3539 = vperm.xlu0 %3538, %v3413
  %v3540 = vpop.permute.xlu0 %3539
  %3543 = vset.pattern.permute.xlu0 0
  %3544 = vperm.xlu0 %3543, %v3414
  %v3545 = vpop.permute.xlu0 %3544
  %3548 = vset.pattern.permute.xlu0 0
  %3549 = vperm.xlu0 %3548, %v3415
  %v3550 = vpop.permute.xlu0 %3549
  %3553 = vset.pattern.permute.xlu0 0
  %3554 = vperm.xlu0 %3553, %v3416
  %v3555 = vpop.permute.xlu0 %3554
  %3558 = vset.pattern.permute.xlu0 0
  %3559 = vperm.xlu0 %3558, %v3417
  %v3560 = vpop.permute.xlu0 %3559
  %3563 = vset.pattern.permute.xlu0 0
  %3564 = vperm.xlu0 %3563, %v3418
  %v3565 = vpop.permute.xlu0 %3564
  %3568 = vset.pattern.permute.xlu0 0
  %3569 = vperm.xlu0 %3568, %v3419
  %v3570 = vpop.permute.xlu0 %3569
  %3573 = vset.pattern.permute.xlu0 0
  %3574 = vperm.xlu0 %3573, %v3420
  %v3575 = vpop.permute.xlu0 %3574
  %3578 = vset.pattern.permute.xlu0 0
  %3579 = vperm.xlu0 %3578, %v3421
  %v3580 = vpop.permute.xlu0 %3579
  %3583 = vset.pattern.permute.xlu0 0
  %3584 = vperm.xlu0 %3583, %v3422
  %v3585 = vpop.permute.xlu0 %3584
  %3588 = vset.pattern.permute.xlu0 0
  %3589 = vperm.xlu0 %3588, %v3423
  %v3590 = vpop.permute.xlu0 %3589
  %3593 = vset.pattern.permute.xlu0 0
  %3594 = vperm.xlu0 %3593, %v3424
  %v3595 = vpop.permute.xlu0 %3594
  %3598 = vset.pattern.permute.xlu0 0
  %3599 = vperm.xlu0 %3598, %v3425
  %v3600 = vpop.permute.xlu0 %3599
  %3603 = vset.pattern.permute.xlu0 0
  %3604 = vperm.xlu0 %3603, %v3426
  %v3605 = vpop.permute.xlu0 %3604
  %3608 = vset.pattern.permute.xlu0 0
  %3609 = vperm.xlu0 %3608, %v3427
  %v3610 = vpop.permute.xlu0 %3609
  %3613 = vset.pattern.permute.xlu0 0
  %3614 = vperm.xlu0 %3613, %v3428
  %v3615 = vpop.permute.xlu0 %3614
  %3618 = vset.pattern.permute.xlu0 0
  %3619 = vperm.xlu0 %3618, %v3429
  %v3620 = vpop.permute.xlu0 %3619
  %3623 = vset.pattern.permute.xlu0 0
  %3624 = vperm.xlu0 %3623, %v3430
  %v3625 = vpop.permute.xlu0 %3624
  %3628 = vset.pattern.permute.xlu0 0
  %3629 = vperm.xlu0 %3628, %v3431
  %v3630 = vpop.permute.xlu0 %3629
  %3633 = vset.pattern.permute.xlu0 0
  %3634 = vperm.xlu0 %3633, %v3432
  %v3635 = vpop.permute.xlu0 %3634
  %3638 = vset.pattern.permute.xlu0 0
  %3639 = vperm.xlu0 %3638, %v3433
  %v3640 = vpop.permute.xlu0 %3639
  %3643 = vset.pattern.permute.xlu0 0
  %3644 = vperm.xlu0 %3643, %v3434
  %v3645 = vpop.permute.xlu0 %3644
  %3648 = vset.pattern.permute.xlu0 0
  %3649 = vperm.xlu0 %3648, %v3435
  %v3650 = vpop.permute.xlu0 %3649
  %3653 = vset.pattern.permute.xlu0 0
  %3654 = vperm.xlu0 %3653, %v3436
  %v3655 = vpop.permute.xlu0 %3654
  %3658 = vset.pattern.permute.xlu0 0
  %3659 = vperm.xlu0 %3658, %v3437
  %v3660 = vpop.permute.xlu0 %3659
  %v3662 = vmul.f32 %v2767, %v3525
  %v3663 = vmul.f32 %v2769, %v3525
  %v3664 = vmul.f32 %v2771, %v3530
  %v3665 = vmul.f32 %v2773, %v3530
  %v3666 = vmul.f32 %v2777, %v3535
  %v3667 = vmul.f32 %v2779, %v3535
  %v3668 = vmul.f32 %v2781, %v3540
  %v3669 = vmul.f32 %v2783, %v3540
  %v3670 = vmul.f32 %v2787, %v3545
  %v3671 = vmul.f32 %v2789, %v3545
  %v3672 = vmul.f32 %v2791, %v3550
  %v3673 = vmul.f32 %v2793, %v3550
  %v3674 = vmul.f32 %v2797, %v3555
  %v3675 = vmul.f32 %v2799, %v3555
  %v3676 = vmul.f32 %v2801, %v3560
  %v3677 = vmul.f32 %v2803, %v3560
  %v3678 = vmul.f32 %v2807, %v3565
  %v3679 = vmul.f32 %v2809, %v3565
  %v3680 = vmul.f32 %v2811, %v3570
  %v3681 = vmul.f32 %v2813, %v3570
  %v3682 = vmul.f32 %v2817, %v3575
  %v3683 = vmul.f32 %v2819, %v3575
  %v3684 = vmul.f32 %v2821, %v3580
  %v3685 = vmul.f32 %v2823, %v3580
  %v3686 = vmul.f32 %v2827, %v3585
  %v3687 = vmul.f32 %v2829, %v3585
  %v3688 = vmul.f32 %v2831, %v3590
  %v3689 = vmul.f32 %v2833, %v3590
  %v3690 = vmul.f32 %v2837, %v3595
  %v3691 = vmul.f32 %v2839, %v3595
  %v3692 = vmul.f32 %v2841, %v3600
  %v3693 = vmul.f32 %v2843, %v3600
  %v3694 = vmul.f32 %v2847, %v3605
  %v3695 = vmul.f32 %v2849, %v3605
  %v3696 = vmul.f32 %v2851, %v3610
  %v3697 = vmul.f32 %v2853, %v3610
  %v3698 = vmul.f32 %v2857, %v3615
  %v3699 = vmul.f32 %v2859, %v3615
  %v3700 = vmul.f32 %v2861, %v3620
  %v3701 = vmul.f32 %v2863, %v3620
  %v3702 = vmul.f32 %v2867, %v3625
  %v3703 = vmul.f32 %v2869, %v3625
  %v3704 = vmul.f32 %v2871, %v3630
  %v3705 = vmul.f32 %v2873, %v3630
  %v3706 = vmul.f32 %v2877, %v3635
  %v3707 = vmul.f32 %v2879, %v3635
  %v3708 = vmul.f32 %v2881, %v3640
  %v3709 = vmul.f32 %v2883, %v3640
  %v3710 = vmul.f32 %v2887, %v3645
  %v3711 = vmul.f32 %v2889, %v3645
  %v3712 = vmul.f32 %v2891, %v3650
  %v3713 = vmul.f32 %v2893, %v3650
  %v3714 = vmul.f32 %v2897, %v3655
  %v3715 = vmul.f32 %v2899, %v3655
  %v3716 = vmul.f32 %v2901, %v3660
  %v3717 = vmul.f32 %v2903, %v3660
  %3719 = vset.pattern.permute.xlu0 0
  %3720 = vperm.xlu0 %3719, %v3494
  %v3721 = vpop.permute.xlu0 %3720
  %3724 = vset.pattern.permute.xlu0 0
  %3725 = vperm.xlu0 %3724, %v3495
  %v3726 = vpop.permute.xlu0 %3725
  %3729 = vset.pattern.permute.xlu0 0
  %3730 = vperm.xlu0 %3729, %v3496
  %v3731 = vpop.permute.xlu0 %3730
  %3734 = vset.pattern.permute.xlu0 0
  %3735 = vperm.xlu0 %3734, %v3497
  %v3736 = vpop.permute.xlu0 %3735
  %3739 = vset.pattern.permute.xlu0 0
  %3740 = vperm.xlu0 %3739, %v3498
  %v3741 = vpop.permute.xlu0 %3740
  %3744 = vset.pattern.permute.xlu0 0
  %3745 = vperm.xlu0 %3744, %v3499
  %v3746 = vpop.permute.xlu0 %3745
  %3749 = vset.pattern.permute.xlu0 0
  %3750 = vperm.xlu0 %3749, %v3500
  %v3751 = vpop.permute.xlu0 %3750
  %3754 = vset.pattern.permute.xlu0 0
  %3755 = vperm.xlu0 %3754, %v3501
  %v3756 = vpop.permute.xlu0 %3755
  %3759 = vset.pattern.permute.xlu0 0
  %3760 = vperm.xlu0 %3759, %v3502
  %v3761 = vpop.permute.xlu0 %3760
  %3764 = vset.pattern.permute.xlu0 0
  %3765 = vperm.xlu0 %3764, %v3503
  %v3766 = vpop.permute.xlu0 %3765
  %3769 = vset.pattern.permute.xlu0 0
  %3770 = vperm.xlu0 %3769, %v3504
  %v3771 = vpop.permute.xlu0 %3770
  %3774 = vset.pattern.permute.xlu0 0
  %3775 = vperm.xlu0 %3774, %v3505
  %v3776 = vpop.permute.xlu0 %3775
  %3779 = vset.pattern.permute.xlu0 0
  %3780 = vperm.xlu0 %3779, %v3506
  %v3781 = vpop.permute.xlu0 %3780
  %3784 = vset.pattern.permute.xlu0 0
  %3785 = vperm.xlu0 %3784, %v3507
  %v3786 = vpop.permute.xlu0 %3785
  %3789 = vset.pattern.permute.xlu0 0
  %3790 = vperm.xlu0 %3789, %v3508
  %v3791 = vpop.permute.xlu0 %3790
  %3794 = vset.pattern.permute.xlu0 0
  %3795 = vperm.xlu0 %3794, %v3509
  %v3796 = vpop.permute.xlu0 %3795
  %3799 = vset.pattern.permute.xlu0 0
  %3800 = vperm.xlu0 %3799, %v3510
  %v3801 = vpop.permute.xlu0 %3800
  %3804 = vset.pattern.permute.xlu0 0
  %3805 = vperm.xlu0 %3804, %v3511
  %v3806 = vpop.permute.xlu0 %3805
  %3809 = vset.pattern.permute.xlu0 0
  %3810 = vperm.xlu0 %3809, %v3512
  %v3811 = vpop.permute.xlu0 %3810
  %3814 = vset.pattern.permute.xlu0 0
  %3815 = vperm.xlu0 %3814, %v3513
  %v3816 = vpop.permute.xlu0 %3815
  %3819 = vset.pattern.permute.xlu0 0
  %3820 = vperm.xlu0 %3819, %v3514
  %v3821 = vpop.permute.xlu0 %3820
  %3824 = vset.pattern.permute.xlu0 0
  %3825 = vperm.xlu0 %3824, %v3515
  %v3826 = vpop.permute.xlu0 %3825
  %3829 = vset.pattern.permute.xlu0 0
  %3830 = vperm.xlu0 %3829, %v3516
  %v3831 = vpop.permute.xlu0 %3830
  %3834 = vset.pattern.permute.xlu0 0
  %3835 = vperm.xlu0 %3834, %v3517
  %v3836 = vpop.permute.xlu0 %3835
  %3839 = vset.pattern.permute.xlu0 0
  %3840 = vperm.xlu0 %3839, %v3518
  %v3841 = vpop.permute.xlu0 %3840
  %3844 = vset.pattern.permute.xlu0 0
  %3845 = vperm.xlu0 %3844, %v3519
  %v3846 = vpop.permute.xlu0 %3845
  %3849 = vset.pattern.permute.xlu0 0
  %3850 = vperm.xlu0 %3849, %v3520
  %v3851 = vpop.permute.xlu0 %3850
  %3854 = vset.pattern.permute.xlu0 0
  %3855 = vperm.xlu0 %3854, %v3521
  %v3856 = vpop.permute.xlu0 %3855
  %v3858 = vadd.f32 %v3662, %v3721
  %v3859 = vadd.f32 %v3663, %v3721
  %v3860 = vadd.f32 %v3664, %v3726
  %v3861 = vadd.f32 %v3665, %v3726
  %v3862 = vadd.f32 %v3666, %v3731
  %v3863 = vadd.f32 %v3667, %v3731
  %v3864 = vadd.f32 %v3668, %v3736
  %v3865 = vadd.f32 %v3669, %v3736
  %v3866 = vadd.f32 %v3670, %v3741
  %v3867 = vadd.f32 %v3671, %v3741
  %v3868 = vadd.f32 %v3672, %v3746
  %v3869 = vadd.f32 %v3673, %v3746
  %v3870 = vadd.f32 %v3674, %v3751
  %v3871 = vadd.f32 %v3675, %v3751
  %v3872 = vadd.f32 %v3676, %v3756
  %v3873 = vadd.f32 %v3677, %v3756
  %v3874 = vadd.f32 %v3678, %v3761
  %v3875 = vadd.f32 %v3679, %v3761
  %v3876 = vadd.f32 %v3680, %v3766
  %v3877 = vadd.f32 %v3681, %v3766
  %v3878 = vadd.f32 %v3682, %v3771
  %v3879 = vadd.f32 %v3683, %v3771
  %v3880 = vadd.f32 %v3684, %v3776
  %v3881 = vadd.f32 %v3685, %v3776
  %v3882 = vadd.f32 %v3686, %v3781
  %v3883 = vadd.f32 %v3687, %v3781
  %v3884 = vadd.f32 %v3688, %v3786
  %v3885 = vadd.f32 %v3689, %v3786
  %v3886 = vadd.f32 %v3690, %v3791
  %v3887 = vadd.f32 %v3691, %v3791
  %v3888 = vadd.f32 %v3692, %v3796
  %v3889 = vadd.f32 %v3693, %v3796
  %v3890 = vadd.f32 %v3694, %v3801
  %v3891 = vadd.f32 %v3695, %v3801
  %v3892 = vadd.f32 %v3696, %v3806
  %v3893 = vadd.f32 %v3697, %v3806
  %v3894 = vadd.f32 %v3698, %v3811
  %v3895 = vadd.f32 %v3699, %v3811
  %v3896 = vadd.f32 %v3700, %v3816
  %v3897 = vadd.f32 %v3701, %v3816
  %v3898 = vadd.f32 %v3702, %v3821
  %v3899 = vadd.f32 %v3703, %v3821
  %v3900 = vadd.f32 %v3704, %v3826
  %v3901 = vadd.f32 %v3705, %v3826
  %v3902 = vadd.f32 %v3706, %v3831
  %v3903 = vadd.f32 %v3707, %v3831
  %v3904 = vadd.f32 %v3708, %v3836
  %v3905 = vadd.f32 %v3709, %v3836
  %v3906 = vadd.f32 %v3710, %v3841
  %v3907 = vadd.f32 %v3711, %v3841
  %v3908 = vadd.f32 %v3712, %v3846
  %v3909 = vadd.f32 %v3713, %v3846
  %v3910 = vadd.f32 %v3714, %v3851
  %v3911 = vadd.f32 %v3715, %v3851
  %v3912 = vadd.f32 %v3716, %v3856
  %v3913 = vadd.f32 %v3717, %v3856
  %3914 = vst [vmem:[%s5] sm:$0xff] %v3858
  %3915 = vst.msk [vmem:[%s5 + $0x8] sm:$0xff] %vm2905, %v3859
  %3916 = vst [vmem:[%s5 + $0x10] sm:$0xff] %v3860
  %3917 = vst.msk [vmem:[%s5 + $0x18] sm:$0xff] %vm2905, %v3861
  %3918 = vst [vmem:[%s5 + $0x20] sm:$0xff] %v3862
  %3919 = vst.msk [vmem:[%s5 + $0x28] sm:$0xff] %vm2905, %v3863
  %3920 = vst [vmem:[%s5 + $0x30] sm:$0xff] %v3864
  %3921 = vst.msk [vmem:[%s5 + $0x38] sm:$0xff] %vm2905, %v3865
  %3922 = vst [vmem:[%s5 + $0x40] sm:$0xff] %v3866
  %3923 = vst.msk [vmem:[%s5 + $0x48] sm:$0xff] %vm2905, %v3867
  %3924 = vst [vmem:[%s5 + $0x50] sm:$0xff] %v3868
  %3925 = vst.msk [vmem:[%s5 + $0x58] sm:$0xff] %vm2905, %v3869
  %3926 = vst [vmem:[%s5 + $0x60] sm:$0xff] %v3870
  %3927 = vst.msk [vmem:[%s5 + $0x68] sm:$0xff] %vm2905, %v3871
  %3928 = vst [vmem:[%s5 + $0x70] sm:$0xff] %v3872
  %3929 = vst.msk [vmem:[%s5 + $0x78] sm:$0xff] %vm2905, %v3873
  %3930 = vst [vmem:[%s5 + $0x80] sm:$0xff] %v3874
  %3931 = vst.msk [vmem:[%s5 + $0x88] sm:$0xff] %vm2905, %v3875
  %3932 = vst [vmem:[%s5 + $0x90] sm:$0xff] %v3876
  %3933 = vst.msk [vmem:[%s5 + $0x98] sm:$0xff] %vm2905, %v3877
  %3934 = vst [vmem:[%s5 + $0xa0] sm:$0xff] %v3878
  %3935 = vst.msk [vmem:[%s5 + $0xa8] sm:$0xff] %vm2905, %v3879
  %3936 = vst [vmem:[%s5 + $0xb0] sm:$0xff] %v3880
  %3937 = vst.msk [vmem:[%s5 + $0xb8] sm:$0xff] %vm2905, %v3881
  %3938 = vst [vmem:[%s5 + $0xc0] sm:$0xff] %v3882
  %3939 = vst.msk [vmem:[%s5 + $0xc8] sm:$0xff] %vm2905, %v3883
  %3940 = vst [vmem:[%s5 + $0xd0] sm:$0xff] %v3884
  %3941 = vst.msk [vmem:[%s5 + $0xd8] sm:$0xff] %vm2905, %v3885
  %3942 = vst [vmem:[%s5 + $0xe0] sm:$0xff] %v3886
  %3943 = vst.msk [vmem:[%s5 + $0xe8] sm:$0xff] %vm2905, %v3887
  %3944 = vst [vmem:[%s5 + $0xf0] sm:$0xff] %v3888
  %3945 = vst.msk [vmem:[%s5 + $0xf8] sm:$0xff] %vm2905, %v3889
  %3946 = vst [vmem:[%s5 + $0x100] sm:$0xff] %v3890
  %3947 = vst.msk [vmem:[%s5 + $0x108] sm:$0xff] %vm2905, %v3891
  %3948 = vst [vmem:[%s5 + $0x110] sm:$0xff] %v3892
  %3949 = vst.msk [vmem:[%s5 + $0x118] sm:$0xff] %vm2905, %v3893
  %3950 = vst [vmem:[%s5 + $0x120] sm:$0xff] %v3894
  %3951 = vst.msk [vmem:[%s5 + $0x128] sm:$0xff] %vm2905, %v3895
  %3952 = vst [vmem:[%s5 + $0x130] sm:$0xff] %v3896
  %3953 = vst.msk [vmem:[%s5 + $0x138] sm:$0xff] %vm2905, %v3897
  %3954 = vst [vmem:[%s5 + $0x140] sm:$0xff] %v3898
  %3955 = vst.msk [vmem:[%s5 + $0x148] sm:$0xff] %vm2905, %v3899
  %3956 = vst [vmem:[%s5 + $0x150] sm:$0xff] %v3900
  %3957 = vst.msk [vmem:[%s5 + $0x158] sm:$0xff] %vm2905, %v3901
  %3958 = vst [vmem:[%s5 + $0x160] sm:$0xff] %v3902
  %3959 = vst.msk [vmem:[%s5 + $0x168] sm:$0xff] %vm2905, %v3903
  %3960 = vst [vmem:[%s5 + $0x170] sm:$0xff] %v3904
  %3961 = vst.msk [vmem:[%s5 + $0x178] sm:$0xff] %vm2905, %v3905
  %3962 = vst [vmem:[%s5 + $0x180] sm:$0xff] %v3906
  %3963 = vst.msk [vmem:[%s5 + $0x188] sm:$0xff] %vm2905, %v3907
  %3964 = vst [vmem:[%s5 + $0x190] sm:$0xff] %v3908
  %3965 = vst.msk [vmem:[%s5 + $0x198] sm:$0xff] %vm2905, %v3909
  %3966 = vst [vmem:[%s5 + $0x1a0] sm:$0xff] %v3910
  %3967 = vst.msk [vmem:[%s5 + $0x1a8] sm:$0xff] %vm2905, %v3911
  %3968 = vst [vmem:[%s5 + $0x1b0] sm:$0xff] %v3912
  %3969 = vst.msk [vmem:[%s5 + $0x1b8] sm:$0xff] %vm2905, %v3913
  // Predicated region
  $region22: #{tpu_custom_call.1} parent=0 // pred_check
    _
  $region23: #{tpu_custom_call.1} parent=0 // pred_check_branch
    %3971 = sbr.rel (0) target = $region25
  $region24: #{tpu_custom_call.1} parent=0 // pred_region
    _
  $region25: #{tpu_custom_call.1} parent=0 // pred_fallthru
    _
  // Predicated region
  $region26: #{tpu_custom_call.1} parent=0 // pred_check
    _
  $region27: #{tpu_custom_call.1} parent=0 // pred_check_branch
    %3973 = sbr.rel (0) target = $region29
  $region28: #{tpu_custom_call.1} parent=0 // pred_region
    _
  $region29: #{tpu_custom_call.1} parent=0 // pred_fallthru
    _

</llo_original>
